<compile_context>
chip_gen: v7x
topology: tpu7x:2x2x1
jax: 0.10.0
libtpu: 0.0.40
codegen_flags: <defaults>
</compile_context>

<pallas_src>
import functools
import math

import jax
import jax.numpy as jnp
from jax.experimental import pallas as pl
from jax.experimental.pallas import tpu as pltpu

_LN_EPS = 1e-5


def _layer_norm(x, gamma, beta):
    mean = jnp.mean(x, axis=-1, keepdims=True)
    var = jnp.mean((x - mean) ** 2, axis=-1, keepdims=True)
    return (x - mean) * jax.lax.rsqrt(var + _LN_EPS) * gamma + beta


def _gpt_kernel(tok_ref, pos_ref, vel_ref, wv_ref, bv_ref,
                ln1g_ref, ln1b_ref, wqkv_ref, bqkv_ref, wp_ref, bp_ref,
                ln2g_ref, ln2b_ref, w1_ref, b1_ref, w2_ref, b2_ref,
                lnfg_ref, lnfb_ref, out_ref, *, n_layer, n_head):
    """Whole GPT core (embed + all blocks + ln_f) for one batch element."""
    b = pl.program_id(0)
    T, C = tok_ref.shape[1], tok_ref.shape[2]
    hd = C // n_head
    scale = 1.0 / math.sqrt(hd)
    bf16 = jnp.bfloat16

    # ---- embedding: pos_emb + tokens + velocity embedding ------------------
    # TODO(synk): dropout layers (embd/attn/resid) are identity in eval mode.
    vel = vel_ref[b]                                     # scalar from SMEM
    vel_e = vel * wv_ref[...] + bv_ref[...]              # (1, C)
    x = tok_ref[0] + pos_ref[...] + vel_e                # (T, C), f32

    # ---- transformer blocks, activation resident in VMEM -------------------
    # TODO(synk): for non-toy n_layer, stream one layer's weights per grid
    # step (grid=(bz, n_layer) + scratch accumulator) instead of this static
    # unroll with all layers resident; fine at n_layer == 2.
    for l in range(n_layer):
        # --- self-attention sub-block ---
        h = _layer_norm(x, ln1g_ref[l], ln1b_ref[l])
        qkv = jnp.dot(h.astype(bf16), wqkv_ref[l],
                      preferred_element_type=jnp.float32) + bqkv_ref[l]   # (T, 3C)
        qb = (qkv[:, :C] * scale).astype(bf16)
        kb = qkv[:, C:2 * C].astype(bf16)
        vb = qkv[:, 2 * C:].astype(bf16)

        heads = []
        for hh in range(n_head):
            lo, hi = hh * hd, (hh + 1) * hd
            # q @ k^T without materializing a transpose (NT dot), bf16 -> f32 acc.
            att = jax.lax.dot_general(
                qb[:, lo:hi], kb[:, lo:hi], (((1,), (1,)), ((), ())),
                preferred_element_type=jnp.float32)                      # (T, T)
            att = jnp.exp(att - jnp.max(att, axis=-1, keepdims=True))
            att = att * pl.reciprocal(
                jnp.sum(att, axis=-1, keepdims=True), approx=True)
            heads.append(jnp.dot(att.astype(bf16), vb[:, lo:hi],
                                 preferred_element_type=jnp.float32))    # (T, hd)
        # concat(heads) -> one lane-dense (T, C) value -> single K=C projection.
        y_all = jnp.concatenate(heads, axis=-1)
        y = jnp.dot(y_all.astype(bf16), wp_ref[l],
                    preferred_element_type=jnp.float32)
        x = x + y + bp_ref[l]

        # --- MLP sub-block ---
        h2 = _layer_norm(x, ln2g_ref[l], ln2b_ref[l])
        m = jnp.dot(h2.astype(bf16), w1_ref[l],
                    preferred_element_type=jnp.float32) + b1_ref[l]
        m = jnp.maximum(m, 0.0)
        m = jnp.dot(m.astype(bf16), w2_ref[l],
                    preferred_element_type=jnp.float32) + b2_ref[l]
        x = x + m

    # ---- final LayerNorm ----------------------------------------------------
    x = _layer_norm(x, lnfg_ref[...], lnfb_ref[...])
    out_ref[0] = x


def _gpt_core(tok, velocity, p, *, n_head, n_layer):
    """Single fused pallas_call over the whole transformer stack."""
    bz, T, C = tok.shape
    bf16 = jnp.bfloat16

    kernel = functools.partial(_gpt_kernel, n_layer=n_layer, n_head=n_head)

    # Weights / pos_emb: constant across the grid -> whole-array VMEM residency,
    # no pipelining / double-buffering of these blocks.
    vmem = pl.BlockSpec(memory_space=pltpu.MemorySpace.VMEM)
    smem = pl.BlockSpec(memory_space=pltpu.MemorySpace.SMEM)

    grid_spec = pltpu.PrefetchScalarGridSpec(
        num_scalar_prefetch=0,
        grid=(bz,),
        in_specs=[
            pl.BlockSpec((1, T, C), lambda b: (b, 0, 0)),    # tokens (pipelined)
            vmem,                                            # pos_emb
            smem,                                            # velocity
            vmem, vmem,                                      # vel_emb W/b
            vmem, vmem,                                      # ln1 g/b
            vmem, vmem,                                      # qkv W/b
            vmem, vmem,                                      # proj W/b
            vmem, vmem,                                      # ln2 g/b
            vmem, vmem,                                      # mlp W1/b1
            vmem, vmem,                                      # mlp W2/b2
            vmem, vmem,                                      # ln_f g/b
        ],
        out_specs=pl.BlockSpec((1, T, C), lambda b: (b, 0, 0)),
    )

    return pl.pallas_call(
        kernel,
        out_shape=jax.ShapeDtypeStruct((bz, T, C), jnp.float32),
        grid_spec=grid_spec,
        compiler_params=pltpu.CompilerParams(
            dimension_semantics=("parallel",),
            vmem_limit_bytes=64 * 1024 * 1024),
    )(tok, p["pos_emb"], velocity,
      p["w_vel"], p["b_vel"],
      p["ln1_g"], p["ln1_b"],
      p["w_qkv"].astype(bf16), p["b_qkv"],
      p["w_proj"].astype(bf16), p["b_proj"],
      p["ln2_g"], p["ln2_b"],
      p["w1"].astype(bf16), p["b1"],
      p["w2"].astype(bf16), p["b2"],
      p["lnf_g"], p["lnf_b"])


@functools.partial(jax.jit, static_argnames=("n_views", "seq_len", "n_head", "n_layer"))
def gpt_forward(image, lidar, maps, velocity, params, *,
                n_views, seq_len, n_head, n_layer):
    """Matches GPT.forward: returns (image_out, lidar_out, map_out)."""
    bz = lidar.shape[0] // seq_len
    C = lidar.shape[1]
    h, w = lidar.shape[2], lidar.shape[3]

    img = image.reshape(bz, n_views * seq_len, C, h, w)
    lid = lidar.reshape(bz, seq_len, C, h, w)
    mp_ = maps.reshape(bz, seq_len, C, h, w)
    tok = jnp.concatenate([img, lid, mp_], axis=1)             # (bz, S, C, h, w)
    S = tok.shape[1]
    tok = jnp.transpose(tok, (0, 1, 3, 4, 2)).reshape(bz, S * h * w, C)

    x = _gpt_core(tok.astype(jnp.float32), velocity.astype(jnp.float32),
                  params, n_head=n_head, n_layer=n_layer)      # (bz, T, C)

    y = x.reshape(bz, S, h, w, C)
    y = jnp.transpose(y, (0, 1, 4, 2, 3))                      # (bz, S, C, h, w)
    img_out = y[:, :n_views * seq_len].reshape(bz * n_views * seq_len, C, h, w)
    lid_out = y[:, n_views * seq_len:(n_views + 1) * seq_len].reshape(bz * seq_len, C, h, w)
    map_out = y[:, (n_views + 1) * seq_len:].reshape(bz * seq_len, C, h, w)
    return img_out, lid_out, map_out


def init_gpt_params(key, C, n_head, block_exp, n_layer, T):
    """Synthetic GPT parameters, Linear weights stored as (in, out)."""
    H = block_exp * C
    std = 0.02

    def nrm(k, shape, s=std):
        return jax.random.normal(k, shape, jnp.float32) * s

    ks = jax.random.split(key, 17)
    return dict(
        pos_emb=nrm(ks[0], (T, C)),
        w_vel=nrm(ks[1], (1, C)),
        b_vel=nrm(ks[2], (1, C), 0.01),
        ln1_g=1.0 + nrm(ks[3], (n_layer, 1, C), 0.01),
        ln1_b=nrm(ks[4], (n_layer, 1, C), 0.01),
        w_qkv=nrm(ks[5], (n_layer, C, 3 * C)),       # [Wq | Wk | Wv]
        b_qkv=nrm(ks[6], (n_layer, 1, 3 * C), 0.01),
        w_proj=nrm(ks[7], (n_layer, C, C)),
        b_proj=nrm(ks[8], (n_layer, 1, C), 0.01),
        ln2_g=1.0 + nrm(ks[9], (n_layer, 1, C), 0.01),
        ln2_b=nrm(ks[10], (n_layer, 1, C), 0.01),
        w1=nrm(ks[11], (n_layer, C, H)),
        b1=nrm(ks[12], (n_layer, 1, H), 0.01),
        w2=nrm(ks[13], (n_layer, H, C)),
        b2=nrm(ks[14], (n_layer, 1, C), 0.01),
        lnf_g=1.0 + nrm(ks[15], (1, C), 0.01),
        lnf_b=nrm(ks[16], (1, C), 0.01),
    )


def gpt_ref(image, lidar, maps, velocity, p, *, n_views, seq_len, n_head, n_layer):
    """Pure-JAX f32 reference mirroring the PyTorch forward (eval mode)."""
    bz = lidar.shape[0] // seq_len
    C = lidar.shape[1]
    h, w = lidar.shape[2], lidar.shape[3]
    hd = C // n_head

    img = image.reshape(bz, n_views * seq_len, C, h, w)
    lid = lidar.reshape(bz, seq_len, C, h, w)
    mp_ = maps.reshape(bz, seq_len, C, h, w)
    tok = jnp.concatenate([img, lid, mp_], axis=1)
    S = tok.shape[1]
    tok = jnp.transpose(tok, (0, 1, 3, 4, 2)).reshape(bz, S * h * w, C)

    def ln(x, g, b_):
        mean = x.mean(-1, keepdims=True)
        var = ((x - mean) ** 2).mean(-1, keepdims=True)
        return (x - mean) / jnp.sqrt(var + _LN_EPS) * g + b_

    vel_e = velocity[:, None] * p["w_vel"] + p["b_vel"]          # (bz, C)
    x = tok + p["pos_emb"][None] + vel_e[:, None, :]
    B, T, _ = x.shape
    for l in range(n_layer):
        hln = ln(x, p["ln1_g"][l, 0], p["ln1_b"][l, 0])
        qkv = hln @ p["w_qkv"][l] + p["b_qkv"][l, 0]
        q, k, v = qkv[..., :C], qkv[..., C:2 * C], qkv[..., 2 * C:]
        qh = q.reshape(B, T, n_head, hd).transpose(0, 2, 1, 3)
        kh = k.reshape(B, T, n_head, hd).transpose(0, 2, 1, 3)
        vh = v.reshape(B, T, n_head, hd).transpose(0, 2, 1, 3)
        att = (qh @ kh.transpose(0, 1, 3, 2)) / math.sqrt(hd)
        att = jax.nn.softmax(att, axis=-1)
        y = (att @ vh).transpose(0, 2, 1, 3).reshape(B, T, C)
        x = x + y @ p["w_proj"][l] + p["b_proj"][l, 0]
        h2 = ln(x, p["ln2_g"][l, 0], p["ln2_b"][l, 0])
        m = jnp.maximum(h2 @ p["w1"][l] + p["b1"][l, 0], 0.0)
        x = x + m @ p["w2"][l] + p["b2"][l, 0]
    x = ln(x, p["lnf_g"][0], p["lnf_b"][0])

    y = x.reshape(bz, S, h, w, C)
    y = jnp.transpose(y, (0, 1, 4, 2, 3))
    img_out = y[:, :n_views * seq_len].reshape(bz * n_views * seq_len, C, h, w)
    lid_out = y[:, n_views * seq_len:(n_views + 1) * seq_len].reshape(bz * seq_len, C, h, w)
    map_out = y[:, (n_views + 1) * seq_len:].reshape(bz * seq_len, C, h, w)
    return img_out, lid_out, map_out


if __name__ == "__main__":
    # Small shapes consistent with the module.
    N_EMBD, N_HEAD, BLOCK_EXP, N_LAYER = 128, 4, 4, 2
    N_VIEWS, SEQ_LEN, VERT, HORZ = 1, 1, 4, 4
    BZ = 2
    T = (N_VIEWS + 2) * SEQ_LEN * VERT * HORZ        # 48 tokens

    key = jax.random.PRNGKey(0)
    key, k1, k2, k3, k4 = jax.random.split(key, 5)
    image = jax.random.normal(k1, (BZ * N_VIEWS * SEQ_LEN, N_EMBD, VERT, HORZ), jnp.float32)
    lidar = jax.random.normal(k2, (BZ * SEQ_LEN, N_EMBD, VERT, HORZ), jnp.float32)
    maps = jax.random.normal(k3, (BZ * SEQ_LEN, N_EMBD, VERT, HORZ), jnp.float32)
    velocity = jax.random.normal(k4, (BZ,), jnp.float32)

    params = init_gpt_params(key, N_EMBD, N_HEAD, BLOCK_EXP, N_LAYER, T)

    outs = gpt_forward(image, lidar, maps, velocity, params,
                       n_views=N_VIEWS, seq_len=SEQ_LEN,
                       n_head=N_HEAD, n_layer=N_LAYER)
    outs = jax.block_until_ready(outs)

    refs = gpt_ref(image, lidar, maps, velocity, params,
                   n_views=N_VIEWS, seq_len=SEQ_LEN,
                   n_head=N_HEAD, n_layer=N_LAYER)

    assert outs[0].shape == (BZ * N_VIEWS * SEQ_LEN, N_EMBD, VERT, HORZ), outs[0].shape
    assert outs[1].shape == (BZ * SEQ_LEN, N_EMBD, VERT, HORZ), outs[1].shape
    assert outs[2].shape == (BZ * SEQ_LEN, N_EMBD, VERT, HORZ), outs[2].shape
    # bf16 matmul operands / f32 accumulation -> slightly relaxed tolerance.
    for o, r in zip(outs, refs):
        err = float(jnp.max(jnp.abs(o - r)))
        assert err < 3e-2, err

    print("KERNEL_OK")
</pallas_src>

<mosaic_0001>
module attributes {stable_mosaic.version = 11 : i64} {
  func.func @_gpt_kernel(%arg0: i32, %arg1: memref<1x48x128xf32, #tpu.memory_space<vmem>>, %arg2: memref<48x128xf32, #tpu.memory_space<vmem>>, %arg3: memref<2xf32, #tpu.memory_space<smem>>, %arg4: memref<1x128xf32, #tpu.memory_space<vmem>>, %arg5: memref<1x128xf32, #tpu.memory_space<vmem>>, %arg6: memref<2x1x128xf32, #tpu.memory_space<vmem>>, %arg7: memref<2x1x128xf32, #tpu.memory_space<vmem>>, %arg8: memref<2x128x384xbf16, #tpu.memory_space<vmem>>, %arg9: memref<2x1x384xf32, #tpu.memory_space<vmem>>, %arg10: memref<2x128x128xbf16, #tpu.memory_space<vmem>>, %arg11: memref<2x1x128xf32, #tpu.memory_space<vmem>>, %arg12: memref<2x1x128xf32, #tpu.memory_space<vmem>>, %arg13: memref<2x1x128xf32, #tpu.memory_space<vmem>>, %arg14: memref<2x128x512xbf16, #tpu.memory_space<vmem>>, %arg15: memref<2x1x512xf32, #tpu.memory_space<vmem>>, %arg16: memref<2x512x128xbf16, #tpu.memory_space<vmem>>, %arg17: memref<2x1x128xf32, #tpu.memory_space<vmem>>, %arg18: memref<1x128xf32, #tpu.memory_space<vmem>>, %arg19: memref<1x128xf32, #tpu.memory_space<vmem>>, %arg20: memref<1x48x128xf32, #tpu.memory_space<vmem>>) attributes {dimension_semantics = [#tpu.dimension_semantics<parallel>], iteration_bounds = array<i64: 2>, scalar_prefetch = 0 : i64, scratch_operands = 0 : i64, tpu.core_type = #tpu.core_type<tc>, window_params = [{transform_indices = @transform_0, window_bounds = array<i64: 1, 48, 128>}, {pipeline_mode = #tpu.pipeline_mode<synchronous>, transform_indices = @transform_1, window_bounds = array<i64: 48, 128>}, {transform_indices = @transform_2, window_bounds = array<i64: 2>}, {pipeline_mode = #tpu.pipeline_mode<synchronous>, transform_indices = @transform_3, window_bounds = array<i64: 1, 128>}, {pipeline_mode = #tpu.pipeline_mode<synchronous>, transform_indices = @transform_4, window_bounds = array<i64: 1, 128>}, {pipeline_mode = #tpu.pipeline_mode<synchronous>, transform_indices = @transform_5, window_bounds = array<i64: 2, 1, 128>}, {pipeline_mode = #tpu.pipeline_mode<synchronous>, transform_indices = @transform_6, window_bounds = array<i64: 2, 1, 128>}, {pipeline_mode = #tpu.pipeline_mode<synchronous>, transform_indices = @transform_7, window_bounds = array<i64: 2, 128, 384>}, {pipeline_mode = #tpu.pipeline_mode<synchronous>, transform_indices = @transform_8, window_bounds = array<i64: 2, 1, 384>}, {pipeline_mode = #tpu.pipeline_mode<synchronous>, transform_indices = @transform_9, window_bounds = array<i64: 2, 128, 128>}, {pipeline_mode = #tpu.pipeline_mode<synchronous>, transform_indices = @transform_10, window_bounds = array<i64: 2, 1, 128>}, {pipeline_mode = #tpu.pipeline_mode<synchronous>, transform_indices = @transform_11, window_bounds = array<i64: 2, 1, 128>}, {pipeline_mode = #tpu.pipeline_mode<synchronous>, transform_indices = @transform_12, window_bounds = array<i64: 2, 1, 128>}, {pipeline_mode = #tpu.pipeline_mode<synchronous>, transform_indices = @transform_13, window_bounds = array<i64: 2, 128, 512>}, {pipeline_mode = #tpu.pipeline_mode<synchronous>, transform_indices = @transform_14, window_bounds = array<i64: 2, 1, 512>}, {pipeline_mode = #tpu.pipeline_mode<synchronous>, transform_indices = @transform_15, window_bounds = array<i64: 2, 512, 128>}, {pipeline_mode = #tpu.pipeline_mode<synchronous>, transform_indices = @transform_16, window_bounds = array<i64: 2, 1, 128>}, {pipeline_mode = #tpu.pipeline_mode<synchronous>, transform_indices = @transform_17, window_bounds = array<i64: 1, 128>}, {pipeline_mode = #tpu.pipeline_mode<synchronous>, transform_indices = @transform_18, window_bounds = array<i64: 1, 128>}, {transform_indices = @transform_19, window_bounds = array<i64: 1, 48, 128>}]} {
    %0 = arith.index_cast %arg0 : i32 to index
    %1 = memref.load %arg3[%0] : memref<2xf32, #tpu.memory_space<smem>>
    %c0 = arith.constant 0 : index
    %c0_0 = arith.constant 0 : index
    %2 = vector.load %arg4[%c0, %c0_0] : memref<1x128xf32, #tpu.memory_space<vmem>>, vector<1x128xf32>
    %3 = vector.broadcast %1 : f32 to vector<1x128xf32>
    %4 = arith.mulf %3, %2 : vector<1x128xf32>
    %c0_1 = arith.constant 0 : index
    %c0_2 = arith.constant 0 : index
    %5 = vector.load %arg5[%c0_1, %c0_2] : memref<1x128xf32, #tpu.memory_space<vmem>>, vector<1x128xf32>
    %6 = arith.addf %4, %5 : vector<1x128xf32>
    %c0_3 = arith.constant 0 : index
    %c0_4 = arith.constant 0 : index
    %c0_5 = arith.constant 0 : index
    %7 = vector.load %arg1[%c0_3, %c0_4, %c0_5] : memref<1x48x128xf32, #tpu.memory_space<vmem>>, vector<1x48x128xf32>
    %8 = vector.shape_cast %7 : vector<1x48x128xf32> to vector<48x128xf32>
    %c0_6 = arith.constant 0 : index
    %c0_7 = arith.constant 0 : index
    %9 = vector.load %arg2[%c0_6, %c0_7] : memref<48x128xf32, #tpu.memory_space<vmem>>, vector<48x128xf32>
    %10 = arith.addf %8, %9 : vector<48x128xf32>
    %11 = vector.broadcast %6 : vector<1x128xf32> to vector<48x128xf32>
    %12 = arith.addf %10, %11 : vector<48x128xf32>
    %c0_8 = arith.constant 0 : index
    %c0_9 = arith.constant 0 : index
    %c0_10 = arith.constant 0 : index
    %13 = vector.load %arg6[%c0_8, %c0_9, %c0_10] : memref<2x1x128xf32, #tpu.memory_space<vmem>>, vector<1x1x128xf32>
    %14 = vector.shape_cast %13 : vector<1x1x128xf32> to vector<1x128xf32>
    %c0_11 = arith.constant 0 : index
    %c0_12 = arith.constant 0 : index
    %c0_13 = arith.constant 0 : index
    %15 = vector.load %arg7[%c0_11, %c0_12, %c0_13] : memref<2x1x128xf32, #tpu.memory_space<vmem>>, vector<1x1x128xf32>
    %16 = vector.shape_cast %15 : vector<1x1x128xf32> to vector<1x128xf32>
    %cst = arith.constant dense<0.000000e+00> : vector<48xf32>
    %17 = vector.multi_reduction <add>, %12, %cst [1] : vector<48x128xf32> to vector<48xf32>
    %18 = vector.shape_cast %17 : vector<48xf32> to vector<48x1xf32>
    %cst_14 = arith.constant 1.280000e+02 : f32
    %19 = vector.broadcast %cst_14 : f32 to vector<48x1xf32>
    %20 = arith.divf %18, %19 : vector<48x1xf32>
    %21 = vector.broadcast %20 : vector<48x1xf32> to vector<48x128xf32>
    %22 = arith.subf %12, %21 : vector<48x128xf32>
    %23 = arith.mulf %22, %22 : vector<48x128xf32>
    %cst_15 = arith.constant dense<0.000000e+00> : vector<48xf32>
    %24 = vector.multi_reduction <add>, %23, %cst_15 [1] : vector<48x128xf32> to vector<48xf32>
    %25 = vector.shape_cast %24 : vector<48xf32> to vector<48x1xf32>
    %cst_16 = arith.constant 1.280000e+02 : f32
    %26 = vector.broadcast %cst_16 : f32 to vector<48x1xf32>
    %27 = arith.divf %25, %26 : vector<48x1xf32>
    %28 = vector.broadcast %20 : vector<48x1xf32> to vector<48x128xf32>
    %29 = arith.subf %12, %28 : vector<48x128xf32>
    %cst_17 = arith.constant 9.99999974E-6 : f32
    %30 = vector.broadcast %cst_17 : f32 to vector<48x1xf32>
    %31 = arith.addf %27, %30 : vector<48x1xf32>
    %32 = math.rsqrt %31 : vector<48x1xf32>
    %33 = vector.broadcast %32 : vector<48x1xf32> to vector<48x128xf32>
    %34 = arith.mulf %29, %33 : vector<48x128xf32>
    %35 = vector.broadcast %14 : vector<1x128xf32> to vector<48x128xf32>
    %36 = arith.mulf %34, %35 : vector<48x128xf32>
    %37 = vector.broadcast %16 : vector<1x128xf32> to vector<48x128xf32>
    %38 = arith.addf %36, %37 : vector<48x128xf32>
    %39 = arith.truncf %38 : vector<48x128xf32> to vector<48x128xbf16>
    %c0_18 = arith.constant 0 : index
    %c0_19 = arith.constant 0 : index
    %c0_20 = arith.constant 0 : index
    %40 = vector.load %arg8[%c0_18, %c0_19, %c0_20] : memref<2x128x384xbf16, #tpu.memory_space<vmem>>, vector<1x128x384xbf16>
    %41 = vector.shape_cast %40 : vector<1x128x384xbf16> to vector<128x384xbf16>
    %cst_21 = arith.constant dense<0.000000e+00> : vector<48x384xf32>
    %42 = tpu.matmul %39, %41, %cst_21 {dimension_numbers = #tpu.dot_dimension_numbers<[1], [0], [0], [1], [0, 0, 1, 1], [], []>} : vector<48x128xbf16>, vector<128x384xbf16>, vector<48x384xf32> -> vector<48x384xf32>
    %c0_22 = arith.constant 0 : index
    %c0_23 = arith.constant 0 : index
    %c0_24 = arith.constant 0 : index
    %43 = vector.load %arg9[%c0_22, %c0_23, %c0_24] : memref<2x1x384xf32, #tpu.memory_space<vmem>>, vector<1x1x384xf32>
    %44 = vector.shape_cast %43 : vector<1x1x384xf32> to vector<1x384xf32>
    %45 = vector.broadcast %44 : vector<1x384xf32> to vector<48x384xf32>
    %46 = arith.addf %42, %45 : vector<48x384xf32>
    %47 = vector.extract_strided_slice %46 {offsets = [0, 0], sizes = [48, 128], strides = [1, 1]} : vector<48x384xf32> to vector<48x128xf32>
    %cst_25 = arith.constant 0.176776692 : f32
    %48 = vector.broadcast %cst_25 : f32 to vector<48x128xf32>
    %49 = arith.mulf %47, %48 : vector<48x128xf32>
    %50 = arith.truncf %49 : vector<48x128xf32> to vector<48x128xbf16>
    %51 = vector.extract_strided_slice %46 {offsets = [0, 128], sizes = [48, 128], strides = [1, 1]} : vector<48x384xf32> to vector<48x128xf32>
    %52 = arith.truncf %51 : vector<48x128xf32> to vector<48x128xbf16>
    %53 = vector.extract_strided_slice %46 {offsets = [0, 256], sizes = [48, 128], strides = [1, 1]} : vector<48x384xf32> to vector<48x128xf32>
    %54 = arith.truncf %53 : vector<48x128xf32> to vector<48x128xbf16>
    %55 = vector.extract_strided_slice %50 {offsets = [0, 0], sizes = [48, 32], strides = [1, 1]} : vector<48x128xbf16> to vector<48x32xbf16>
    %56 = vector.extract_strided_slice %52 {offsets = [0, 0], sizes = [48, 32], strides = [1, 1]} : vector<48x128xbf16> to vector<48x32xbf16>
    %cst_26 = arith.constant dense<0.000000e+00> : vector<48x48xf32>
    %57 = tpu.matmul %55, %56, %cst_26 {dimension_numbers = #tpu.dot_dimension_numbers<[1], [1], [0], [0], [0, 0, 1, 0], [], []>} : vector<48x32xbf16>, vector<48x32xbf16>, vector<48x48xf32> -> vector<48x48xf32>
    %cst_27 = arith.constant dense<0xFF800000> : vector<48xf32>
    %58 = vector.multi_reduction <maximumf>, %57, %cst_27 [1] : vector<48x48xf32> to vector<48xf32>
    %59 = vector.shape_cast %58 : vector<48xf32> to vector<48x1xf32>
    %60 = vector.broadcast %59 : vector<48x1xf32> to vector<48x48xf32>
    %61 = arith.subf %57, %60 : vector<48x48xf32>
    %62 = math.exp %61 : vector<48x48xf32>
    %cst_28 = arith.constant dense<0.000000e+00> : vector<48xf32>
    %63 = vector.multi_reduction <add>, %62, %cst_28 [1] : vector<48x48xf32> to vector<48xf32>
    %64 = vector.shape_cast %63 : vector<48xf32> to vector<48x1xf32>
    %65 = tpu.reciprocal %64 {approx = true} : vector<48x1xf32> -> vector<48x1xf32>
    %66 = vector.broadcast %65 : vector<48x1xf32> to vector<48x48xf32>
    %67 = arith.mulf %62, %66 : vector<48x48xf32>
    %68 = arith.truncf %67 : vector<48x48xf32> to vector<48x48xbf16>
    %69 = vector.extract_strided_slice %54 {offsets = [0, 0], sizes = [48, 32], strides = [1, 1]} : vector<48x128xbf16> to vector<48x32xbf16>
    %cst_29 = arith.constant dense<0.000000e+00> : vector<48x32xf32>
    %70 = tpu.matmul %68, %69, %cst_29 {dimension_numbers = #tpu.dot_dimension_numbers<[1], [0], [0], [1], [0, 0, 1, 1], [], []>} : vector<48x48xbf16>, vector<48x32xbf16>, vector<48x32xf32> -> vector<48x32xf32>
    %71 = vector.extract_strided_slice %50 {offsets = [0, 32], sizes = [48, 32], strides = [1, 1]} : vector<48x128xbf16> to vector<48x32xbf16>
    %72 = vector.extract_strided_slice %52 {offsets = [0, 32], sizes = [48, 32], strides = [1, 1]} : vector<48x128xbf16> to vector<48x32xbf16>
    %cst_30 = arith.constant dense<0.000000e+00> : vector<48x48xf32>
    %73 = tpu.matmul %71, %72, %cst_30 {dimension_numbers = #tpu.dot_dimension_numbers<[1], [1], [0], [0], [0, 0, 1, 0], [], []>} : vector<48x32xbf16>, vector<48x32xbf16>, vector<48x48xf32> -> vector<48x48xf32>
    %cst_31 = arith.constant dense<0xFF800000> : vector<48xf32>
    %74 = vector.multi_reduction <maximumf>, %73, %cst_31 [1] : vector<48x48xf32> to vector<48xf32>
    %75 = vector.shape_cast %74 : vector<48xf32> to vector<48x1xf32>
    %76 = vector.broadcast %75 : vector<48x1xf32> to vector<48x48xf32>
    %77 = arith.subf %73, %76 : vector<48x48xf32>
    %78 = math.exp %77 : vector<48x48xf32>
    %cst_32 = arith.constant dense<0.000000e+00> : vector<48xf32>
    %79 = vector.multi_reduction <add>, %78, %cst_32 [1] : vector<48x48xf32> to vector<48xf32>
    %80 = vector.shape_cast %79 : vector<48xf32> to vector<48x1xf32>
    %81 = tpu.reciprocal %80 {approx = true} : vector<48x1xf32> -> vector<48x1xf32>
    %82 = vector.broadcast %81 : vector<48x1xf32> to vector<48x48xf32>
    %83 = arith.mulf %78, %82 : vector<48x48xf32>
    %84 = arith.truncf %83 : vector<48x48xf32> to vector<48x48xbf16>
    %85 = vector.extract_strided_slice %54 {offsets = [0, 32], sizes = [48, 32], strides = [1, 1]} : vector<48x128xbf16> to vector<48x32xbf16>
    %cst_33 = arith.constant dense<0.000000e+00> : vector<48x32xf32>
    %86 = tpu.matmul %84, %85, %cst_33 {dimension_numbers = #tpu.dot_dimension_numbers<[1], [0], [0], [1], [0, 0, 1, 1], [], []>} : vector<48x48xbf16>, vector<48x32xbf16>, vector<48x32xf32> -> vector<48x32xf32>
    %87 = vector.extract_strided_slice %50 {offsets = [0, 64], sizes = [48, 32], strides = [1, 1]} : vector<48x128xbf16> to vector<48x32xbf16>
    %88 = vector.extract_strided_slice %52 {offsets = [0, 64], sizes = [48, 32], strides = [1, 1]} : vector<48x128xbf16> to vector<48x32xbf16>
    %cst_34 = arith.constant dense<0.000000e+00> : vector<48x48xf32>
    %89 = tpu.matmul %87, %88, %cst_34 {dimension_numbers = #tpu.dot_dimension_numbers<[1], [1], [0], [0], [0, 0, 1, 0], [], []>} : vector<48x32xbf16>, vector<48x32xbf16>, vector<48x48xf32> -> vector<48x48xf32>
    %cst_35 = arith.constant dense<0xFF800000> : vector<48xf32>
    %90 = vector.multi_reduction <maximumf>, %89, %cst_35 [1] : vector<48x48xf32> to vector<48xf32>
    %91 = vector.shape_cast %90 : vector<48xf32> to vector<48x1xf32>
    %92 = vector.broadcast %91 : vector<48x1xf32> to vector<48x48xf32>
    %93 = arith.subf %89, %92 : vector<48x48xf32>
    %94 = math.exp %93 : vector<48x48xf32>
    %cst_36 = arith.constant dense<0.000000e+00> : vector<48xf32>
    %95 = vector.multi_reduction <add>, %94, %cst_36 [1] : vector<48x48xf32> to vector<48xf32>
    %96 = vector.shape_cast %95 : vector<48xf32> to vector<48x1xf32>
    %97 = tpu.reciprocal %96 {approx = true} : vector<48x1xf32> -> vector<48x1xf32>
    %98 = vector.broadcast %97 : vector<48x1xf32> to vector<48x48xf32>
    %99 = arith.mulf %94, %98 : vector<48x48xf32>
    %100 = arith.truncf %99 : vector<48x48xf32> to vector<48x48xbf16>
    %101 = vector.extract_strided_slice %54 {offsets = [0, 64], sizes = [48, 32], strides = [1, 1]} : vector<48x128xbf16> to vector<48x32xbf16>
    %cst_37 = arith.constant dense<0.000000e+00> : vector<48x32xf32>
    %102 = tpu.matmul %100, %101, %cst_37 {dimension_numbers = #tpu.dot_dimension_numbers<[1], [0], [0], [1], [0, 0, 1, 1], [], []>} : vector<48x48xbf16>, vector<48x32xbf16>, vector<48x32xf32> -> vector<48x32xf32>
    %103 = vector.extract_strided_slice %50 {offsets = [0, 96], sizes = [48, 32], strides = [1, 1]} : vector<48x128xbf16> to vector<48x32xbf16>
    %104 = vector.extract_strided_slice %52 {offsets = [0, 96], sizes = [48, 32], strides = [1, 1]} : vector<48x128xbf16> to vector<48x32xbf16>
    %cst_38 = arith.constant dense<0.000000e+00> : vector<48x48xf32>
    %105 = tpu.matmul %103, %104, %cst_38 {dimension_numbers = #tpu.dot_dimension_numbers<[1], [1], [0], [0], [0, 0, 1, 0], [], []>} : vector<48x32xbf16>, vector<48x32xbf16>, vector<48x48xf32> -> vector<48x48xf32>
    %cst_39 = arith.constant dense<0xFF800000> : vector<48xf32>
    %106 = vector.multi_reduction <maximumf>, %105, %cst_39 [1] : vector<48x48xf32> to vector<48xf32>
    %107 = vector.shape_cast %106 : vector<48xf32> to vector<48x1xf32>
    %108 = vector.broadcast %107 : vector<48x1xf32> to vector<48x48xf32>
    %109 = arith.subf %105, %108 : vector<48x48xf32>
    %110 = math.exp %109 : vector<48x48xf32>
    %cst_40 = arith.constant dense<0.000000e+00> : vector<48xf32>
    %111 = vector.multi_reduction <add>, %110, %cst_40 [1] : vector<48x48xf32> to vector<48xf32>
    %112 = vector.shape_cast %111 : vector<48xf32> to vector<48x1xf32>
    %113 = tpu.reciprocal %112 {approx = true} : vector<48x1xf32> -> vector<48x1xf32>
    %114 = vector.broadcast %113 : vector<48x1xf32> to vector<48x48xf32>
    %115 = arith.mulf %110, %114 : vector<48x48xf32>
    %116 = arith.truncf %115 : vector<48x48xf32> to vector<48x48xbf16>
    %117 = vector.extract_strided_slice %54 {offsets = [0, 96], sizes = [48, 32], strides = [1, 1]} : vector<48x128xbf16> to vector<48x32xbf16>
    %cst_41 = arith.constant dense<0.000000e+00> : vector<48x32xf32>
    %118 = tpu.matmul %116, %117, %cst_41 {dimension_numbers = #tpu.dot_dimension_numbers<[1], [0], [0], [1], [0, 0, 1, 1], [], []>} : vector<48x48xbf16>, vector<48x32xbf16>, vector<48x32xf32> -> vector<48x32xf32>
    %119 = tpu.concatenate %70, %86, %102, %118 in 1 : vector<48x32xf32>, vector<48x32xf32>, vector<48x32xf32>, vector<48x32xf32> -> vector<48x128xf32>
    %120 = arith.truncf %119 : vector<48x128xf32> to vector<48x128xbf16>
    %c0_42 = arith.constant 0 : index
    %c0_43 = arith.constant 0 : index
    %c0_44 = arith.constant 0 : index
    %121 = vector.load %arg10[%c0_42, %c0_43, %c0_44] : memref<2x128x128xbf16, #tpu.memory_space<vmem>>, vector<1x128x128xbf16>
    %122 = vector.shape_cast %121 : vector<1x128x128xbf16> to vector<128x128xbf16>
    %cst_45 = arith.constant dense<0.000000e+00> : vector<48x128xf32>
    %123 = tpu.matmul %120, %122, %cst_45 {dimension_numbers = #tpu.dot_dimension_numbers<[1], [0], [0], [1], [0, 0, 1, 1], [], []>} : vector<48x128xbf16>, vector<128x128xbf16>, vector<48x128xf32> -> vector<48x128xf32>
    %124 = arith.addf %12, %123 : vector<48x128xf32>
    %c0_46 = arith.constant 0 : index
    %c0_47 = arith.constant 0 : index
    %c0_48 = arith.constant 0 : index
    %125 = vector.load %arg11[%c0_46, %c0_47, %c0_48] : memref<2x1x128xf32, #tpu.memory_space<vmem>>, vector<1x1x128xf32>
    %126 = vector.shape_cast %125 : vector<1x1x128xf32> to vector<1x128xf32>
    %127 = vector.broadcast %126 : vector<1x128xf32> to vector<48x128xf32>
    %128 = arith.addf %124, %127 : vector<48x128xf32>
    %c0_49 = arith.constant 0 : index
    %c0_50 = arith.constant 0 : index
    %c0_51 = arith.constant 0 : index
    %129 = vector.load %arg12[%c0_49, %c0_50, %c0_51] : memref<2x1x128xf32, #tpu.memory_space<vmem>>, vector<1x1x128xf32>
    %130 = vector.shape_cast %129 : vector<1x1x128xf32> to vector<1x128xf32>
    %c0_52 = arith.constant 0 : index
    %c0_53 = arith.constant 0 : index
    %c0_54 = arith.constant 0 : index
    %131 = vector.load %arg13[%c0_52, %c0_53, %c0_54] : memref<2x1x128xf32, #tpu.memory_space<vmem>>, vector<1x1x128xf32>
    %132 = vector.shape_cast %131 : vector<1x1x128xf32> to vector<1x128xf32>
    %cst_55 = arith.constant dense<0.000000e+00> : vector<48xf32>
    %133 = vector.multi_reduction <add>, %128, %cst_55 [1] : vector<48x128xf32> to vector<48xf32>
    %134 = vector.shape_cast %133 : vector<48xf32> to vector<48x1xf32>
    %cst_56 = arith.constant 1.280000e+02 : f32
    %135 = vector.broadcast %cst_56 : f32 to vector<48x1xf32>
    %136 = arith.divf %134, %135 : vector<48x1xf32>
    %137 = vector.broadcast %136 : vector<48x1xf32> to vector<48x128xf32>
    %138 = arith.subf %128, %137 : vector<48x128xf32>
    %139 = arith.mulf %138, %138 : vector<48x128xf32>
    %cst_57 = arith.constant dense<0.000000e+00> : vector<48xf32>
    %140 = vector.multi_reduction <add>, %139, %cst_57 [1] : vector<48x128xf32> to vector<48xf32>
    %141 = vector.shape_cast %140 : vector<48xf32> to vector<48x1xf32>
    %cst_58 = arith.constant 1.280000e+02 : f32
    %142 = vector.broadcast %cst_58 : f32 to vector<48x1xf32>
    %143 = arith.divf %141, %142 : vector<48x1xf32>
    %144 = vector.broadcast %136 : vector<48x1xf32> to vector<48x128xf32>
    %145 = arith.subf %128, %144 : vector<48x128xf32>
    %cst_59 = arith.constant 9.99999974E-6 : f32
    %146 = vector.broadcast %cst_59 : f32 to vector<48x1xf32>
    %147 = arith.addf %143, %146 : vector<48x1xf32>
    %148 = math.rsqrt %147 : vector<48x1xf32>
    %149 = vector.broadcast %148 : vector<48x1xf32> to vector<48x128xf32>
    %150 = arith.mulf %145, %149 : vector<48x128xf32>
    %151 = vector.broadcast %130 : vector<1x128xf32> to vector<48x128xf32>
    %152 = arith.mulf %150, %151 : vector<48x128xf32>
    %153 = vector.broadcast %132 : vector<1x128xf32> to vector<48x128xf32>
    %154 = arith.addf %152, %153 : vector<48x128xf32>
    %155 = arith.truncf %154 : vector<48x128xf32> to vector<48x128xbf16>
    %c0_60 = arith.constant 0 : index
    %c0_61 = arith.constant 0 : index
    %c0_62 = arith.constant 0 : index
    %156 = vector.load %arg14[%c0_60, %c0_61, %c0_62] : memref<2x128x512xbf16, #tpu.memory_space<vmem>>, vector<1x128x512xbf16>
    %157 = vector.shape_cast %156 : vector<1x128x512xbf16> to vector<128x512xbf16>
    %cst_63 = arith.constant dense<0.000000e+00> : vector<48x512xf32>
    %158 = tpu.matmul %155, %157, %cst_63 {dimension_numbers = #tpu.dot_dimension_numbers<[1], [0], [0], [1], [0, 0, 1, 1], [], []>} : vector<48x128xbf16>, vector<128x512xbf16>, vector<48x512xf32> -> vector<48x512xf32>
    %c0_64 = arith.constant 0 : index
    %c0_65 = arith.constant 0 : index
    %c0_66 = arith.constant 0 : index
    %159 = vector.load %arg15[%c0_64, %c0_65, %c0_66] : memref<2x1x512xf32, #tpu.memory_space<vmem>>, vector<1x1x512xf32>
    %160 = vector.shape_cast %159 : vector<1x1x512xf32> to vector<1x512xf32>
    %161 = vector.broadcast %160 : vector<1x512xf32> to vector<48x512xf32>
    %162 = arith.addf %158, %161 : vector<48x512xf32>
    %cst_67 = arith.constant 0.000000e+00 : f32
    %163 = vector.broadcast %cst_67 : f32 to vector<48x512xf32>
    %164 = arith.maximumf %162, %163 : vector<48x512xf32>
    %165 = arith.truncf %164 : vector<48x512xf32> to vector<48x512xbf16>
    %c0_68 = arith.constant 0 : index
    %c0_69 = arith.constant 0 : index
    %c0_70 = arith.constant 0 : index
    %166 = vector.load %arg16[%c0_68, %c0_69, %c0_70] : memref<2x512x128xbf16, #tpu.memory_space<vmem>>, vector<1x512x128xbf16>
    %167 = vector.shape_cast %166 : vector<1x512x128xbf16> to vector<512x128xbf16>
    %cst_71 = arith.constant dense<0.000000e+00> : vector<48x128xf32>
    %168 = tpu.matmul %165, %167, %cst_71 {dimension_numbers = #tpu.dot_dimension_numbers<[1], [0], [0], [1], [0, 0, 1, 1], [], []>} : vector<48x512xbf16>, vector<512x128xbf16>, vector<48x128xf32> -> vector<48x128xf32>
    %c0_72 = arith.constant 0 : index
    %c0_73 = arith.constant 0 : index
    %c0_74 = arith.constant 0 : index
    %169 = vector.load %arg17[%c0_72, %c0_73, %c0_74] : memref<2x1x128xf32, #tpu.memory_space<vmem>>, vector<1x1x128xf32>
    %170 = vector.shape_cast %169 : vector<1x1x128xf32> to vector<1x128xf32>
    %171 = vector.broadcast %170 : vector<1x128xf32> to vector<48x128xf32>
    %172 = arith.addf %168, %171 : vector<48x128xf32>
    %173 = arith.addf %128, %172 : vector<48x128xf32>
    %c1 = arith.constant 1 : index
    %c0_75 = arith.constant 0 : index
    %c0_76 = arith.constant 0 : index
    %174 = vector.load %arg6[%c1, %c0_75, %c0_76] : memref<2x1x128xf32, #tpu.memory_space<vmem>>, vector<1x1x128xf32>
    %175 = vector.shape_cast %174 : vector<1x1x128xf32> to vector<1x128xf32>
    %c1_77 = arith.constant 1 : index
    %c0_78 = arith.constant 0 : index
    %c0_79 = arith.constant 0 : index
    %176 = vector.load %arg7[%c1_77, %c0_78, %c0_79] : memref<2x1x128xf32, #tpu.memory_space<vmem>>, vector<1x1x128xf32>
    %177 = vector.shape_cast %176 : vector<1x1x128xf32> to vector<1x128xf32>
    %cst_80 = arith.constant dense<0.000000e+00> : vector<48xf32>
    %178 = vector.multi_reduction <add>, %173, %cst_80 [1] : vector<48x128xf32> to vector<48xf32>
    %179 = vector.shape_cast %178 : vector<48xf32> to vector<48x1xf32>
    %cst_81 = arith.constant 1.280000e+02 : f32
    %180 = vector.broadcast %cst_81 : f32 to vector<48x1xf32>
    %181 = arith.divf %179, %180 : vector<48x1xf32>
    %182 = vector.broadcast %181 : vector<48x1xf32> to vector<48x128xf32>
    %183 = arith.subf %173, %182 : vector<48x128xf32>
    %184 = arith.mulf %183, %183 : vector<48x128xf32>
    %cst_82 = arith.constant dense<0.000000e+00> : vector<48xf32>
    %185 = vector.multi_reduction <add>, %184, %cst_82 [1] : vector<48x128xf32> to vector<48xf32>
    %186 = vector.shape_cast %185 : vector<48xf32> to vector<48x1xf32>
    %cst_83 = arith.constant 1.280000e+02 : f32
    %187 = vector.broadcast %cst_83 : f32 to vector<48x1xf32>
    %188 = arith.divf %186, %187 : vector<48x1xf32>
    %189 = vector.broadcast %181 : vector<48x1xf32> to vector<48x128xf32>
    %190 = arith.subf %173, %189 : vector<48x128xf32>
    %cst_84 = arith.constant 9.99999974E-6 : f32
    %191 = vector.broadcast %cst_84 : f32 to vector<48x1xf32>
    %192 = arith.addf %188, %191 : vector<48x1xf32>
    %193 = math.rsqrt %192 : vector<48x1xf32>
    %194 = vector.broadcast %193 : vector<48x1xf32> to vector<48x128xf32>
    %195 = arith.mulf %190, %194 : vector<48x128xf32>
    %196 = vector.broadcast %175 : vector<1x128xf32> to vector<48x128xf32>
    %197 = arith.mulf %195, %196 : vector<48x128xf32>
    %198 = vector.broadcast %177 : vector<1x128xf32> to vector<48x128xf32>
    %199 = arith.addf %197, %198 : vector<48x128xf32>
    %200 = arith.truncf %199 : vector<48x128xf32> to vector<48x128xbf16>
    %c1_85 = arith.constant 1 : index
    %c0_86 = arith.constant 0 : index
    %c0_87 = arith.constant 0 : index
    %201 = vector.load %arg8[%c1_85, %c0_86, %c0_87] : memref<2x128x384xbf16, #tpu.memory_space<vmem>>, vector<1x128x384xbf16>
    %202 = vector.shape_cast %201 : vector<1x128x384xbf16> to vector<128x384xbf16>
    %cst_88 = arith.constant dense<0.000000e+00> : vector<48x384xf32>
    %203 = tpu.matmul %200, %202, %cst_88 {dimension_numbers = #tpu.dot_dimension_numbers<[1], [0], [0], [1], [0, 0, 1, 1], [], []>} : vector<48x128xbf16>, vector<128x384xbf16>, vector<48x384xf32> -> vector<48x384xf32>
    %c1_89 = arith.constant 1 : index
    %c0_90 = arith.constant 0 : index
    %c0_91 = arith.constant 0 : index
    %204 = vector.load %arg9[%c1_89, %c0_90, %c0_91] : memref<2x1x384xf32, #tpu.memory_space<vmem>>, vector<1x1x384xf32>
    %205 = vector.shape_cast %204 : vector<1x1x384xf32> to vector<1x384xf32>
    %206 = vector.broadcast %205 : vector<1x384xf32> to vector<48x384xf32>
    %207 = arith.addf %203, %206 : vector<48x384xf32>
    %208 = vector.extract_strided_slice %207 {offsets = [0, 0], sizes = [48, 128], strides = [1, 1]} : vector<48x384xf32> to vector<48x128xf32>
    %cst_92 = arith.constant 0.176776692 : f32
    %209 = vector.broadcast %cst_92 : f32 to vector<48x128xf32>
    %210 = arith.mulf %208, %209 : vector<48x128xf32>
    %211 = arith.truncf %210 : vector<48x128xf32> to vector<48x128xbf16>
    %212 = vector.extract_strided_slice %207 {offsets = [0, 128], sizes = [48, 128], strides = [1, 1]} : vector<48x384xf32> to vector<48x128xf32>
    %213 = arith.truncf %212 : vector<48x128xf32> to vector<48x128xbf16>
    %214 = vector.extract_strided_slice %207 {offsets = [0, 256], sizes = [48, 128], strides = [1, 1]} : vector<48x384xf32> to vector<48x128xf32>
    %215 = arith.truncf %214 : vector<48x128xf32> to vector<48x128xbf16>
    %216 = vector.extract_strided_slice %211 {offsets = [0, 0], sizes = [48, 32], strides = [1, 1]} : vector<48x128xbf16> to vector<48x32xbf16>
    %217 = vector.extract_strided_slice %213 {offsets = [0, 0], sizes = [48, 32], strides = [1, 1]} : vector<48x128xbf16> to vector<48x32xbf16>
    %cst_93 = arith.constant dense<0.000000e+00> : vector<48x48xf32>
    %218 = tpu.matmul %216, %217, %cst_93 {dimension_numbers = #tpu.dot_dimension_numbers<[1], [1], [0], [0], [0, 0, 1, 0], [], []>} : vector<48x32xbf16>, vector<48x32xbf16>, vector<48x48xf32> -> vector<48x48xf32>
    %cst_94 = arith.constant dense<0xFF800000> : vector<48xf32>
    %219 = vector.multi_reduction <maximumf>, %218, %cst_94 [1] : vector<48x48xf32> to vector<48xf32>
    %220 = vector.shape_cast %219 : vector<48xf32> to vector<48x1xf32>
    %221 = vector.broadcast %220 : vector<48x1xf32> to vector<48x48xf32>
    %222 = arith.subf %218, %221 : vector<48x48xf32>
    %223 = math.exp %222 : vector<48x48xf32>
    %cst_95 = arith.constant dense<0.000000e+00> : vector<48xf32>
    %224 = vector.multi_reduction <add>, %223, %cst_95 [1] : vector<48x48xf32> to vector<48xf32>
    %225 = vector.shape_cast %224 : vector<48xf32> to vector<48x1xf32>
    %226 = tpu.reciprocal %225 {approx = true} : vector<48x1xf32> -> vector<48x1xf32>
    %227 = vector.broadcast %226 : vector<48x1xf32> to vector<48x48xf32>
    %228 = arith.mulf %223, %227 : vector<48x48xf32>
    %229 = arith.truncf %228 : vector<48x48xf32> to vector<48x48xbf16>
    %230 = vector.extract_strided_slice %215 {offsets = [0, 0], sizes = [48, 32], strides = [1, 1]} : vector<48x128xbf16> to vector<48x32xbf16>
    %cst_96 = arith.constant dense<0.000000e+00> : vector<48x32xf32>
    %231 = tpu.matmul %229, %230, %cst_96 {dimension_numbers = #tpu.dot_dimension_numbers<[1], [0], [0], [1], [0, 0, 1, 1], [], []>} : vector<48x48xbf16>, vector<48x32xbf16>, vector<48x32xf32> -> vector<48x32xf32>
    %232 = vector.extract_strided_slice %211 {offsets = [0, 32], sizes = [48, 32], strides = [1, 1]} : vector<48x128xbf16> to vector<48x32xbf16>
    %233 = vector.extract_strided_slice %213 {offsets = [0, 32], sizes = [48, 32], strides = [1, 1]} : vector<48x128xbf16> to vector<48x32xbf16>
    %cst_97 = arith.constant dense<0.000000e+00> : vector<48x48xf32>
    %234 = tpu.matmul %232, %233, %cst_97 {dimension_numbers = #tpu.dot_dimension_numbers<[1], [1], [0], [0], [0, 0, 1, 0], [], []>} : vector<48x32xbf16>, vector<48x32xbf16>, vector<48x48xf32> -> vector<48x48xf32>
    %cst_98 = arith.constant dense<0xFF800000> : vector<48xf32>
    %235 = vector.multi_reduction <maximumf>, %234, %cst_98 [1] : vector<48x48xf32> to vector<48xf32>
    %236 = vector.shape_cast %235 : vector<48xf32> to vector<48x1xf32>
    %237 = vector.broadcast %236 : vector<48x1xf32> to vector<48x48xf32>
    %238 = arith.subf %234, %237 : vector<48x48xf32>
    %239 = math.exp %238 : vector<48x48xf32>
    %cst_99 = arith.constant dense<0.000000e+00> : vector<48xf32>
    %240 = vector.multi_reduction <add>, %239, %cst_99 [1] : vector<48x48xf32> to vector<48xf32>
    %241 = vector.shape_cast %240 : vector<48xf32> to vector<48x1xf32>
    %242 = tpu.reciprocal %241 {approx = true} : vector<48x1xf32> -> vector<48x1xf32>
    %243 = vector.broadcast %242 : vector<48x1xf32> to vector<48x48xf32>
    %244 = arith.mulf %239, %243 : vector<48x48xf32>
    %245 = arith.truncf %244 : vector<48x48xf32> to vector<48x48xbf16>
    %246 = vector.extract_strided_slice %215 {offsets = [0, 32], sizes = [48, 32], strides = [1, 1]} : vector<48x128xbf16> to vector<48x32xbf16>
    %cst_100 = arith.constant dense<0.000000e+00> : vector<48x32xf32>
    %247 = tpu.matmul %245, %246, %cst_100 {dimension_numbers = #tpu.dot_dimension_numbers<[1], [0], [0], [1], [0, 0, 1, 1], [], []>} : vector<48x48xbf16>, vector<48x32xbf16>, vector<48x32xf32> -> vector<48x32xf32>
    %248 = vector.extract_strided_slice %211 {offsets = [0, 64], sizes = [48, 32], strides = [1, 1]} : vector<48x128xbf16> to vector<48x32xbf16>
    %249 = vector.extract_strided_slice %213 {offsets = [0, 64], sizes = [48, 32], strides = [1, 1]} : vector<48x128xbf16> to vector<48x32xbf16>
    %cst_101 = arith.constant dense<0.000000e+00> : vector<48x48xf32>
    %250 = tpu.matmul %248, %249, %cst_101 {dimension_numbers = #tpu.dot_dimension_numbers<[1], [1], [0], [0], [0, 0, 1, 0], [], []>} : vector<48x32xbf16>, vector<48x32xbf16>, vector<48x48xf32> -> vector<48x48xf32>
    %cst_102 = arith.constant dense<0xFF800000> : vector<48xf32>
    %251 = vector.multi_reduction <maximumf>, %250, %cst_102 [1] : vector<48x48xf32> to vector<48xf32>
    %252 = vector.shape_cast %251 : vector<48xf32> to vector<48x1xf32>
    %253 = vector.broadcast %252 : vector<48x1xf32> to vector<48x48xf32>
    %254 = arith.subf %250, %253 : vector<48x48xf32>
    %255 = math.exp %254 : vector<48x48xf32>
    %cst_103 = arith.constant dense<0.000000e+00> : vector<48xf32>
    %256 = vector.multi_reduction <add>, %255, %cst_103 [1] : vector<48x48xf32> to vector<48xf32>
    %257 = vector.shape_cast %256 : vector<48xf32> to vector<48x1xf32>
    %258 = tpu.reciprocal %257 {approx = true} : vector<48x1xf32> -> vector<48x1xf32>
    %259 = vector.broadcast %258 : vector<48x1xf32> to vector<48x48xf32>
    %260 = arith.mulf %255, %259 : vector<48x48xf32>
    %261 = arith.truncf %260 : vector<48x48xf32> to vector<48x48xbf16>
    %262 = vector.extract_strided_slice %215 {offsets = [0, 64], sizes = [48, 32], strides = [1, 1]} : vector<48x128xbf16> to vector<48x32xbf16>
    %cst_104 = arith.constant dense<0.000000e+00> : vector<48x32xf32>
    %263 = tpu.matmul %261, %262, %cst_104 {dimension_numbers = #tpu.dot_dimension_numbers<[1], [0], [0], [1], [0, 0, 1, 1], [], []>} : vector<48x48xbf16>, vector<48x32xbf16>, vector<48x32xf32> -> vector<48x32xf32>
    %264 = vector.extract_strided_slice %211 {offsets = [0, 96], sizes = [48, 32], strides = [1, 1]} : vector<48x128xbf16> to vector<48x32xbf16>
    %265 = vector.extract_strided_slice %213 {offsets = [0, 96], sizes = [48, 32], strides = [1, 1]} : vector<48x128xbf16> to vector<48x32xbf16>
    %cst_105 = arith.constant dense<0.000000e+00> : vector<48x48xf32>
    %266 = tpu.matmul %264, %265, %cst_105 {dimension_numbers = #tpu.dot_dimension_numbers<[1], [1], [0], [0], [0, 0, 1, 0], [], []>} : vector<48x32xbf16>, vector<48x32xbf16>, vector<48x48xf32> -> vector<48x48xf32>
    %cst_106 = arith.constant dense<0xFF800000> : vector<48xf32>
    %267 = vector.multi_reduction <maximumf>, %266, %cst_106 [1] : vector<48x48xf32> to vector<48xf32>
    %268 = vector.shape_cast %267 : vector<48xf32> to vector<48x1xf32>
    %269 = vector.broadcast %268 : vector<48x1xf32> to vector<48x48xf32>
    %270 = arith.subf %266, %269 : vector<48x48xf32>
    %271 = math.exp %270 : vector<48x48xf32>
    %cst_107 = arith.constant dense<0.000000e+00> : vector<48xf32>
    %272 = vector.multi_reduction <add>, %271, %cst_107 [1] : vector<48x48xf32> to vector<48xf32>
    %273 = vector.shape_cast %272 : vector<48xf32> to vector<48x1xf32>
    %274 = tpu.reciprocal %273 {approx = true} : vector<48x1xf32> -> vector<48x1xf32>
    %275 = vector.broadcast %274 : vector<48x1xf32> to vector<48x48xf32>
    %276 = arith.mulf %271, %275 : vector<48x48xf32>
    %277 = arith.truncf %276 : vector<48x48xf32> to vector<48x48xbf16>
    %278 = vector.extract_strided_slice %215 {offsets = [0, 96], sizes = [48, 32], strides = [1, 1]} : vector<48x128xbf16> to vector<48x32xbf16>
    %cst_108 = arith.constant dense<0.000000e+00> : vector<48x32xf32>
    %279 = tpu.matmul %277, %278, %cst_108 {dimension_numbers = #tpu.dot_dimension_numbers<[1], [0], [0], [1], [0, 0, 1, 1], [], []>} : vector<48x48xbf16>, vector<48x32xbf16>, vector<48x32xf32> -> vector<48x32xf32>
    %280 = tpu.concatenate %231, %247, %263, %279 in 1 : vector<48x32xf32>, vector<48x32xf32>, vector<48x32xf32>, vector<48x32xf32> -> vector<48x128xf32>
    %281 = arith.truncf %280 : vector<48x128xf32> to vector<48x128xbf16>
    %c1_109 = arith.constant 1 : index
    %c0_110 = arith.constant 0 : index
    %c0_111 = arith.constant 0 : index
    %282 = vector.load %arg10[%c1_109, %c0_110, %c0_111] : memref<2x128x128xbf16, #tpu.memory_space<vmem>>, vector<1x128x128xbf16>
    %283 = vector.shape_cast %282 : vector<1x128x128xbf16> to vector<128x128xbf16>
    %cst_112 = arith.constant dense<0.000000e+00> : vector<48x128xf32>
    %284 = tpu.matmul %281, %283, %cst_112 {dimension_numbers = #tpu.dot_dimension_numbers<[1], [0], [0], [1], [0, 0, 1, 1], [], []>} : vector<48x128xbf16>, vector<128x128xbf16>, vector<48x128xf32> -> vector<48x128xf32>
    %285 = arith.addf %173, %284 : vector<48x128xf32>
    %c1_113 = arith.constant 1 : index
    %c0_114 = arith.constant 0 : index
    %c0_115 = arith.constant 0 : index
    %286 = vector.load %arg11[%c1_113, %c0_114, %c0_115] : memref<2x1x128xf32, #tpu.memory_space<vmem>>, vector<1x1x128xf32>
    %287 = vector.shape_cast %286 : vector<1x1x128xf32> to vector<1x128xf32>
    %288 = vector.broadcast %287 : vector<1x128xf32> to vector<48x128xf32>
    %289 = arith.addf %285, %288 : vector<48x128xf32>
    %c1_116 = arith.constant 1 : index
    %c0_117 = arith.constant 0 : index
    %c0_118 = arith.constant 0 : index
    %290 = vector.load %arg12[%c1_116, %c0_117, %c0_118] : memref<2x1x128xf32, #tpu.memory_space<vmem>>, vector<1x1x128xf32>
    %291 = vector.shape_cast %290 : vector<1x1x128xf32> to vector<1x128xf32>
    %c1_119 = arith.constant 1 : index
    %c0_120 = arith.constant 0 : index
    %c0_121 = arith.constant 0 : index
    %292 = vector.load %arg13[%c1_119, %c0_120, %c0_121] : memref<2x1x128xf32, #tpu.memory_space<vmem>>, vector<1x1x128xf32>
    %293 = vector.shape_cast %292 : vector<1x1x128xf32> to vector<1x128xf32>
    %cst_122 = arith.constant dense<0.000000e+00> : vector<48xf32>
    %294 = vector.multi_reduction <add>, %289, %cst_122 [1] : vector<48x128xf32> to vector<48xf32>
    %295 = vector.shape_cast %294 : vector<48xf32> to vector<48x1xf32>
    %cst_123 = arith.constant 1.280000e+02 : f32
    %296 = vector.broadcast %cst_123 : f32 to vector<48x1xf32>
    %297 = arith.divf %295, %296 : vector<48x1xf32>
    %298 = vector.broadcast %297 : vector<48x1xf32> to vector<48x128xf32>
    %299 = arith.subf %289, %298 : vector<48x128xf32>
    %300 = arith.mulf %299, %299 : vector<48x128xf32>
    %cst_124 = arith.constant dense<0.000000e+00> : vector<48xf32>
    %301 = vector.multi_reduction <add>, %300, %cst_124 [1] : vector<48x128xf32> to vector<48xf32>
    %302 = vector.shape_cast %301 : vector<48xf32> to vector<48x1xf32>
    %cst_125 = arith.constant 1.280000e+02 : f32
    %303 = vector.broadcast %cst_125 : f32 to vector<48x1xf32>
    %304 = arith.divf %302, %303 : vector<48x1xf32>
    %305 = vector.broadcast %297 : vector<48x1xf32> to vector<48x128xf32>
    %306 = arith.subf %289, %305 : vector<48x128xf32>
    %cst_126 = arith.constant 9.99999974E-6 : f32
    %307 = vector.broadcast %cst_126 : f32 to vector<48x1xf32>
    %308 = arith.addf %304, %307 : vector<48x1xf32>
    %309 = math.rsqrt %308 : vector<48x1xf32>
    %310 = vector.broadcast %309 : vector<48x1xf32> to vector<48x128xf32>
    %311 = arith.mulf %306, %310 : vector<48x128xf32>
    %312 = vector.broadcast %291 : vector<1x128xf32> to vector<48x128xf32>
    %313 = arith.mulf %311, %312 : vector<48x128xf32>
    %314 = vector.broadcast %293 : vector<1x128xf32> to vector<48x128xf32>
    %315 = arith.addf %313, %314 : vector<48x128xf32>
    %316 = arith.truncf %315 : vector<48x128xf32> to vector<48x128xbf16>
    %c1_127 = arith.constant 1 : index
    %c0_128 = arith.constant 0 : index
    %c0_129 = arith.constant 0 : index
    %317 = vector.load %arg14[%c1_127, %c0_128, %c0_129] : memref<2x128x512xbf16, #tpu.memory_space<vmem>>, vector<1x128x512xbf16>
    %318 = vector.shape_cast %317 : vector<1x128x512xbf16> to vector<128x512xbf16>
    %cst_130 = arith.constant dense<0.000000e+00> : vector<48x512xf32>
    %319 = tpu.matmul %316, %318, %cst_130 {dimension_numbers = #tpu.dot_dimension_numbers<[1], [0], [0], [1], [0, 0, 1, 1], [], []>} : vector<48x128xbf16>, vector<128x512xbf16>, vector<48x512xf32> -> vector<48x512xf32>
    %c1_131 = arith.constant 1 : index
    %c0_132 = arith.constant 0 : index
    %c0_133 = arith.constant 0 : index
    %320 = vector.load %arg15[%c1_131, %c0_132, %c0_133] : memref<2x1x512xf32, #tpu.memory_space<vmem>>, vector<1x1x512xf32>
    %321 = vector.shape_cast %320 : vector<1x1x512xf32> to vector<1x512xf32>
    %322 = vector.broadcast %321 : vector<1x512xf32> to vector<48x512xf32>
    %323 = arith.addf %319, %322 : vector<48x512xf32>
    %cst_134 = arith.constant 0.000000e+00 : f32
    %324 = vector.broadcast %cst_134 : f32 to vector<48x512xf32>
    %325 = arith.maximumf %323, %324 : vector<48x512xf32>
    %326 = arith.truncf %325 : vector<48x512xf32> to vector<48x512xbf16>
    %c1_135 = arith.constant 1 : index
    %c0_136 = arith.constant 0 : index
    %c0_137 = arith.constant 0 : index
    %327 = vector.load %arg16[%c1_135, %c0_136, %c0_137] : memref<2x512x128xbf16, #tpu.memory_space<vmem>>, vector<1x512x128xbf16>
    %328 = vector.shape_cast %327 : vector<1x512x128xbf16> to vector<512x128xbf16>
    %cst_138 = arith.constant dense<0.000000e+00> : vector<48x128xf32>
    %329 = tpu.matmul %326, %328, %cst_138 {dimension_numbers = #tpu.dot_dimension_numbers<[1], [0], [0], [1], [0, 0, 1, 1], [], []>} : vector<48x512xbf16>, vector<512x128xbf16>, vector<48x128xf32> -> vector<48x128xf32>
    %c1_139 = arith.constant 1 : index
    %c0_140 = arith.constant 0 : index
    %c0_141 = arith.constant 0 : index
    %330 = vector.load %arg17[%c1_139, %c0_140, %c0_141] : memref<2x1x128xf32, #tpu.memory_space<vmem>>, vector<1x1x128xf32>
    %331 = vector.shape_cast %330 : vector<1x1x128xf32> to vector<1x128xf32>
    %332 = vector.broadcast %331 : vector<1x128xf32> to vector<48x128xf32>
    %333 = arith.addf %329, %332 : vector<48x128xf32>
    %334 = arith.addf %289, %333 : vector<48x128xf32>
    %c0_142 = arith.constant 0 : index
    %c0_143 = arith.constant 0 : index
    %335 = vector.load %arg18[%c0_142, %c0_143] : memref<1x128xf32, #tpu.memory_space<vmem>>, vector<1x128xf32>
    %c0_144 = arith.constant 0 : index
    %c0_145 = arith.constant 0 : index
    %336 = vector.load %arg19[%c0_144, %c0_145] : memref<1x128xf32, #tpu.memory_space<vmem>>, vector<1x128xf32>
    %cst_146 = arith.constant dense<0.000000e+00> : vector<48xf32>
    %337 = vector.multi_reduction <add>, %334, %cst_146 [1] : vector<48x128xf32> to vector<48xf32>
    %338 = vector.shape_cast %337 : vector<48xf32> to vector<48x1xf32>
    %cst_147 = arith.constant 1.280000e+02 : f32
    %339 = vector.broadcast %cst_147 : f32 to vector<48x1xf32>
    %340 = arith.divf %338, %339 : vector<48x1xf32>
    %341 = vector.broadcast %340 : vector<48x1xf32> to vector<48x128xf32>
    %342 = arith.subf %334, %341 : vector<48x128xf32>
    %343 = arith.mulf %342, %342 : vector<48x128xf32>
    %cst_148 = arith.constant dense<0.000000e+00> : vector<48xf32>
    %344 = vector.multi_reduction <add>, %343, %cst_148 [1] : vector<48x128xf32> to vector<48xf32>
    %345 = vector.shape_cast %344 : vector<48xf32> to vector<48x1xf32>
    %cst_149 = arith.constant 1.280000e+02 : f32
    %346 = vector.broadcast %cst_149 : f32 to vector<48x1xf32>
    %347 = arith.divf %345, %346 : vector<48x1xf32>
    %348 = vector.broadcast %340 : vector<48x1xf32> to vector<48x128xf32>
    %349 = arith.subf %334, %348 : vector<48x128xf32>
    %cst_150 = arith.constant 9.99999974E-6 : f32
    %350 = vector.broadcast %cst_150 : f32 to vector<48x1xf32>
    %351 = arith.addf %347, %350 : vector<48x1xf32>
    %352 = math.rsqrt %351 : vector<48x1xf32>
    %353 = vector.broadcast %352 : vector<48x1xf32> to vector<48x128xf32>
    %354 = arith.mulf %349, %353 : vector<48x128xf32>
    %355 = vector.broadcast %335 : vector<1x128xf32> to vector<48x128xf32>
    %356 = arith.mulf %354, %355 : vector<48x128xf32>
    %357 = vector.broadcast %336 : vector<1x128xf32> to vector<48x128xf32>
    %358 = arith.addf %356, %357 : vector<48x128xf32>
    %c0_151 = arith.constant 0 : index
    %c0_152 = arith.constant 0 : index
    %c0_153 = arith.constant 0 : index
    %359 = vector.load %arg20[%c0_151, %c0_152, %c0_153] : memref<1x48x128xf32, #tpu.memory_space<vmem>>, vector<1x48x128xf32>
    %360 = vector.shape_cast %359 : vector<1x48x128xf32> to vector<48x128xf32>
    %361 = vector.shape_cast %358 : vector<48x128xf32> to vector<1x48x128xf32>
    tpu.vector_store %arg20[%c0_151, %c0_152, %c0_153], %361 {strides = array<i32>} : memref<1x48x128xf32, #tpu.memory_space<vmem>>, vector<1x48x128xf32>,
    return
  }
  func.func @transform_0(%arg0: i32) -> (i32, i32, i32) {
    %c0_i32 = arith.constant 0 : i32
    %c0_i32_0 = arith.constant 0 : i32
    %c0_i32_1 = arith.constant 0 : i32
    return %arg0, %c0_i32, %c0_i32_0 : i32, i32, i32
  }
  func.func @transform_1(%arg0: i32) -> (i32, i32) {
    %c0_i32 = arith.constant 0 : i32
    %c0_i32_0 = arith.constant 0 : i32
    %c0_i32_1 = arith.constant 0 : i32
    return %c0_i32, %c0_i32_0 : i32, i32
  }
  func.func @transform_2(%arg0: i32) -> i32 {
    %c0_i32 = arith.constant 0 : i32
    %c0_i32_0 = arith.constant 0 : i32
    return %c0_i32 : i32
  }
  func.func @transform_3(%arg0: i32) -> (i32, i32) {
    %c0_i32 = arith.constant 0 : i32
    %c0_i32_0 = arith.constant 0 : i32
    %c0_i32_1 = arith.constant 0 : i32
    return %c0_i32, %c0_i32_0 : i32, i32
  }
  func.func @transform_4(%arg0: i32) -> (i32, i32) {
    %c0_i32 = arith.constant 0 : i32
    %c0_i32_0 = arith.constant 0 : i32
    %c0_i32_1 = arith.constant 0 : i32
    return %c0_i32, %c0_i32_0 : i32, i32
  }
  func.func @transform_5(%arg0: i32) -> (i32, i32, i32) {
    %c0_i32 = arith.constant 0 : i32
    %c0_i32_0 = arith.constant 0 : i32
    %c0_i32_1 = arith.constant 0 : i32
    %c0_i32_2 = arith.constant 0 : i32
    return %c0_i32, %c0_i32_0, %c0_i32_1 : i32, i32, i32
  }
  func.func @transform_6(%arg0: i32) -> (i32, i32, i32) {
    %c0_i32 = arith.constant 0 : i32
    %c0_i32_0 = arith.constant 0 : i32
    %c0_i32_1 = arith.constant 0 : i32
    %c0_i32_2 = arith.constant 0 : i32
    return %c0_i32, %c0_i32_0, %c0_i32_1 : i32, i32, i32
  }
  func.func @transform_7(%arg0: i32) -> (i32, i32, i32) {
    %c0_i32 = arith.constant 0 : i32
    %c0_i32_0 = arith.constant 0 : i32
    %c0_i32_1 = arith.constant 0 : i32
    %c0_i32_2 = arith.constant 0 : i32
    return %c0_i32, %c0_i32_0, %c0_i32_1 : i32, i32, i32
  }
  func.func @transform_8(%arg0: i32) -> (i32, i32, i32) {
    %c0_i32 = arith.constant 0 : i32
    %c0_i32_0 = arith.constant 0 : i32
    %c0_i32_1 = arith.constant 0 : i32
    %c0_i32_2 = arith.constant 0 : i32
    return %c0_i32, %c0_i32_0, %c0_i32_1 : i32, i32, i32
  }
  func.func @transform_9(%arg0: i32) -> (i32, i32, i32) {
    %c0_i32 = arith.constant 0 : i32
    %c0_i32_0 = arith.constant 0 : i32
    %c0_i32_1 = arith.constant 0 : i32
    %c0_i32_2 = arith.constant 0 : i32
    return %c0_i32, %c0_i32_0, %c0_i32_1 : i32, i32, i32
  }
  func.func @transform_10(%arg0: i32) -> (i32, i32, i32) {
    %c0_i32 = arith.constant 0 : i32
    %c0_i32_0 = arith.constant 0 : i32
    %c0_i32_1 = arith.constant 0 : i32
    %c0_i32_2 = arith.constant 0 : i32
    return %c0_i32, %c0_i32_0, %c0_i32_1 : i32, i32, i32
  }
  func.func @transform_11(%arg0: i32) -> (i32, i32, i32) {
    %c0_i32 = arith.constant 0 : i32
    %c0_i32_0 = arith.constant 0 : i32
    %c0_i32_1 = arith.constant 0 : i32
    %c0_i32_2 = arith.constant 0 : i32
    return %c0_i32, %c0_i32_0, %c0_i32_1 : i32, i32, i32
  }
  func.func @transform_12(%arg0: i32) -> (i32, i32, i32) {
    %c0_i32 = arith.constant 0 : i32
    %c0_i32_0 = arith.constant 0 : i32
    %c0_i32_1 = arith.constant 0 : i32
    %c0_i32_2 = arith.constant 0 : i32
    return %c0_i32, %c0_i32_0, %c0_i32_1 : i32, i32, i32
  }
  func.func @transform_13(%arg0: i32) -> (i32, i32, i32) {
    %c0_i32 = arith.constant 0 : i32
    %c0_i32_0 = arith.constant 0 : i32
    %c0_i32_1 = arith.constant 0 : i32
    %c0_i32_2 = arith.constant 0 : i32
    return %c0_i32, %c0_i32_0, %c0_i32_1 : i32, i32, i32
  }
  func.func @transform_14(%arg0: i32) -> (i32, i32, i32) {
    %c0_i32 = arith.constant 0 : i32
    %c0_i32_0 = arith.constant 0 : i32
    %c0_i32_1 = arith.constant 0 : i32
    %c0_i32_2 = arith.constant 0 : i32
    return %c0_i32, %c0_i32_0, %c0_i32_1 : i32, i32, i32
  }
  func.func @transform_15(%arg0: i32) -> (i32, i32, i32) {
    %c0_i32 = arith.constant 0 : i32
    %c0_i32_0 = arith.constant 0 : i32
    %c0_i32_1 = arith.constant 0 : i32
    %c0_i32_2 = arith.constant 0 : i32
    return %c0_i32, %c0_i32_0, %c0_i32_1 : i32, i32, i32
  }
  func.func @transform_16(%arg0: i32) -> (i32, i32, i32) {
    %c0_i32 = arith.constant 0 : i32
    %c0_i32_0 = arith.constant 0 : i32
    %c0_i32_1 = arith.constant 0 : i32
    %c0_i32_2 = arith.constant 0 : i32
    return %c0_i32, %c0_i32_0, %c0_i32_1 : i32, i32, i32
  }
  func.func @transform_17(%arg0: i32) -> (i32, i32) {
    %c0_i32 = arith.constant 0 : i32
    %c0_i32_0 = arith.constant 0 : i32
    %c0_i32_1 = arith.constant 0 : i32
    return %c0_i32, %c0_i32_0 : i32, i32
  }
  func.func @transform_18(%arg0: i32) -> (i32, i32) {
    %c0_i32 = arith.constant 0 : i32
    %c0_i32_0 = arith.constant 0 : i32
    %c0_i32_1 = arith.constant 0 : i32
    return %c0_i32, %c0_i32_0 : i32, i32
  }
  func.func @transform_19(%arg0: i32) -> (i32, i32, i32) {
    %c0_i32 = arith.constant 0 : i32
    %c0_i32_0 = arith.constant 0 : i32
    %c0_i32_1 = arith.constant 0 : i32
    return %arg0, %c0_i32, %c0_i32_0 : i32, i32, i32
  }
}

</mosaic_0001>

<llo_original>
// kernel: gpt_forward.1
$region0: #{gpt_forward.1}
  #allocation0 [shape = 'u32[]', space=smem, size = 0x4, offset = 0x4, fixed_abs, tag = 'smem constant byte address 0x4 - core index']
  #allocation1 [shape = 'u32[144,128]{1,0:T(1,128)}', space=vmem, size = 0x12000, scoped, tag = 'internal scratch']
  %s0 = inlined_call_operand.hbm [shape: f32[2,48,128], index: 0, kind: input, shape index: {}]
  %s1 = inlined_call_operand.hbm [shape: f32[48,128], index: 1, kind: input, shape index: {}]
  %s2 = inlined_call_operand.hbm [shape: f32[2], index: 2, kind: input, shape index: {}]
  %s3 = inlined_call_operand.hbm [shape: f32[1,128], index: 3, kind: input, shape index: {}]
  %s4 = inlined_call_operand.hbm [shape: f32[1,128], index: 4, kind: input, shape index: {}]
  %s5 = inlined_call_operand.hbm [shape: f32[2,1,128], index: 5, kind: input, shape index: {}]
  %s6 = inlined_call_operand.hbm [shape: f32[2,1,128], index: 6, kind: input, shape index: {}]
  %s7 = inlined_call_operand.hbm [shape: bf16[2,128,384], index: 7, kind: input, shape index: {}]
  %s8 = inlined_call_operand.hbm [shape: f32[2,1,384], index: 8, kind: input, shape index: {}]
  %s9 = inlined_call_operand.hbm [shape: bf16[2,128,128], index: 9, kind: input, shape index: {}]
  %s10 = inlined_call_operand.hbm [shape: f32[2,1,128], index: 10, kind: input, shape index: {}]
  %s11 = inlined_call_operand.hbm [shape: f32[2,1,128], index: 11, kind: input, shape index: {}]
  %s12 = inlined_call_operand.hbm [shape: f32[2,1,128], index: 12, kind: input, shape index: {}]
  %s13 = inlined_call_operand.hbm [shape: bf16[2,128,512], index: 13, kind: input, shape index: {}]
  %s14 = inlined_call_operand.hbm [shape: f32[2,1,512], index: 14, kind: input, shape index: {}]
  %s15 = inlined_call_operand.hbm [shape: bf16[2,512,128], index: 15, kind: input, shape index: {}]
  %s16 = inlined_call_operand.hbm [shape: f32[2,1,128], index: 16, kind: input, shape index: {}]
  %s17 = inlined_call_operand.hbm [shape: f32[1,128], index: 17, kind: input, shape index: {}]
  %s18 = inlined_call_operand.hbm [shape: f32[1,128], index: 18, kind: input, shape index: {}]
  %s19 = inlined_call_operand.hbm [shape: f32[2,48,128], index: 19, kind: output, shape index: {}]
  %s20 = sld [smem:[#allocation0]]
  $region185: #{gpt_forward.1} parent=0
    _
  %s22 = ssub.s32 1, %s20
  %s23 = scalar_select 0, %s22, %s20
  $region1: #{gpt_forward.1} parent=0
    #allocation2 [shape = 'u8[49152]{0}', space=vmem, size = 0xc000, scoped, tag = 'input window, operand 0']
    #allocation3 [shape = 's32[2]{0}', space=sflag, size = 0x8, scoped, tag = 'scoped memory for gpt_forward.1']
    #allocation4 [shape = 's32[2]{0}', space=sflag, size = 0x8, scoped, tag = 'scoped memory for gpt_forward.1']
    #allocation5 [shape = 's32[2]{0}', space=sflag, size = 0x8, scoped, tag = 'scoped memory for gpt_forward.1']
    #allocation6 [shape = 'u8[24576]{0}', space=vmem, size = 0x6000, scoped, tag = 'input window, operand 1, single buffered']
    #allocation7 [shape = 's32[1]{0}', space=sflag, size = 0x4, scoped, tag = 'scoped memory for gpt_forward.1']
    #allocation8 [shape = 'u8[512]{0}', space=smem, size = 0x200, scoped, tag = 'input window, operand 2, single buffered']
    #allocation9 [shape = 'u8[512]{0}', space=vmem, size = 0x400, scoped, tag = 'input window, operand 3, single buffered']
    #allocation10 [shape = 'u8[512]{0}', space=vmem, size = 0x400, scoped, tag = 'input window, operand 4, single buffered']
    #allocation11 [shape = 's32[1]{0}', space=sflag, size = 0x4, scoped, tag = 'scoped memory for gpt_forward.1']
    #allocation12 [shape = 'u8[1024]{0}', space=vmem, size = 0x400, scoped, tag = 'input window, operand 5, single buffered']
    #allocation13 [shape = 'u8[1024]{0}', space=vmem, size = 0x400, scoped, tag = 'input window, operand 6, single buffered']
    #allocation14 [shape = 's32[1]{0}', space=sflag, size = 0x4, scoped, tag = 'scoped memory for gpt_forward.1']
    #allocation15 [shape = 'u8[196608]{0}', space=vmem, size = 0x30000, scoped, tag = 'input window, operand 7, single buffered']
    #allocation16 [shape = 'u8[3072]{0}', space=vmem, size = 0xc00, scoped, tag = 'input window, operand 8, single buffered']
    #allocation17 [shape = 's32[1]{0}', space=sflag, size = 0x4, scoped, tag = 'scoped memory for gpt_forward.1']
    #allocation18 [shape = 'u8[65536]{0}', space=vmem, size = 0x10000, scoped, tag = 'input window, operand 9, single buffered']
    #allocation19 [shape = 'u8[1024]{0}', space=vmem, size = 0x400, scoped, tag = 'input window, operand 10, single buffered']
    #allocation20 [shape = 's32[1]{0}', space=sflag, size = 0x4, scoped, tag = 'scoped memory for gpt_forward.1']
    #allocation21 [shape = 'u8[1024]{0}', space=vmem, size = 0x400, scoped, tag = 'input window, operand 11, single buffered']
    #allocation22 [shape = 'u8[1024]{0}', space=vmem, size = 0x400, scoped, tag = 'input window, operand 12, single buffered']
    #allocation23 [shape = 's32[1]{0}', space=sflag, size = 0x4, scoped, tag = 'scoped memory for gpt_forward.1']
    #allocation24 [shape = 'u8[262144]{0}', space=vmem, size = 0x40000, scoped, tag = 'input window, operand 13, single buffered']
    #allocation25 [shape = 'u8[4096]{0}', space=vmem, size = 0x1000, scoped, tag = 'input window, operand 14, single buffered']
    #allocation26 [shape = 's32[1]{0}', space=sflag, size = 0x4, scoped, tag = 'scoped memory for gpt_forward.1']
    #allocation27 [shape = 'u8[262144]{0}', space=vmem, size = 0x40000, scoped, tag = 'input window, operand 15, single buffered']
    #allocation28 [shape = 'u8[1024]{0}', space=vmem, size = 0x400, scoped, tag = 'input window, operand 16, single buffered']
    #allocation29 [shape = 's32[1]{0}', space=sflag, size = 0x4, scoped, tag = 'scoped memory for gpt_forward.1']
    #allocation30 [shape = 'u8[512]{0}', space=vmem, size = 0x400, scoped, tag = 'input window, operand 17, single buffered']
    #allocation31 [shape = 'u8[512]{0}', space=vmem, size = 0x400, scoped, tag = 'input window, operand 18, single buffered']
    #allocation32 [shape = 's32[1]{0}', space=sflag, size = 0x4, scoped, tag = 'scoped memory for gpt_forward.1']
    #allocation33 [shape = 'u8[49152]{0}', space=vmem, size = 0xc000, scoped, tag = 'output window, operand 0']
    %24 = vsyncpa [#allocation3], 0
    %s25 = scalar_lea.sflag [#allocation3], 1
    %26 = vsyncpa %s25, 0
    %27 = vsyncpa [#allocation7], 0
    %28 = vsyncpa [#allocation5], 0
    %29 = vsyncpa [#allocation11], 0
    %30 = vsyncpa [#allocation14], 0
    %31 = vsyncpa [#allocation17], 0
    %32 = vsyncpa [#allocation20], 0
    %33 = vsyncpa [#allocation23], 0
    %34 = vsyncpa [#allocation26], 0
    %35 = vsyncpa [#allocation29], 0
    %36 = vsyncpa [#allocation32], 0
    %37 = vsyncpa [#allocation4], 0
    %s38 = scalar_lea.sflag [#allocation4], 1
    %39 = vsyncpa %s38, 0
    loop: start=0, step=1, limit=4
    $region2: #{gpt_forward.1} parent=1 // loop_pre_header
      _
    $region3: #{gpt_forward.1} parent=1 // loop_header
      %s41 = sphi 0, %s45
      %p42 = scmp.ge.s32.totalorder %s41, 4
      %s51 = sphi 0, %s53
      %s54 = sphi 0, %s51
      %s55 = sphi 0, %s54
      %s71 = sphi 0, %s55
      %s75 = sphi 0, %s75
      %s77 = sphi 0, %s75
      %s78 = sphi 0, %s77
      %s92 = sphi 0, %s78
      %s96 = sphi 0, %s96
      %s98 = sphi 0, %s96
      %s99 = sphi 0, %s98
      %s113 = sphi 0, %s99
      %s117 = sphi 0, %s117
      %s119 = sphi 0, %s117
      %s120 = sphi 0, %s119
      %s134 = sphi 0, %s120
      %s138 = sphi 0, %s138
      %s140 = sphi 0, %s138
      %s141 = sphi 0, %s140
      %s155 = sphi 0, %s141
      %s159 = sphi 0, %s159
      %s161 = sphi 0, %s159
      %s162 = sphi 0, %s161
      %s176 = sphi 0, %s162
      %s180 = sphi 0, %s180
      %s182 = sphi 0, %s180
      %s183 = sphi 0, %s182
      %s197 = sphi 0, %s183
      %s201 = sphi 0, %s201
      %s203 = sphi 0, %s201
      %s204 = sphi 0, %s203
      %s218 = sphi 0, %s204
      %s222 = sphi 0, %s222
      %s224 = sphi 0, %s222
      %s225 = sphi 0, %s224
      %s239 = sphi 0, %s225
      %s243 = sphi 0, %s243
      %s245 = sphi 0, %s243
      %s246 = sphi 0, %s245
      %s260 = sphi 0, %s246
      %s264 = sphi 0, %s264
      %s266 = sphi 0, %s264
      %s267 = sphi 0, %s266
      %s281 = sphi 0, %s267
      %s285 = sphi 0, %s285
      %s287 = sphi 0, %s285
      %s288 = sphi 0, %s287
      %s302 = sphi 0, %s288
      %s306 = sphi 0, %s306
      %s308 = sphi 0, %s306
      %s309 = sphi 0, %s308
      %s323 = sphi 0, %s309
      %s327 = sphi 0, %s327
      %s329 = sphi 0, %s327
      %s330 = sphi 0, %s329
      %s344 = sphi 0, %s330
      %s348 = sphi 0, %s348
      %s350 = sphi 0, %s348
      %s351 = sphi 0, %s350
      %s365 = sphi 0, %s351
      %s369 = sphi 0, %s369
      %s371 = sphi 0, %s369
      %s372 = sphi 0, %s371
      %s386 = sphi 0, %s372
      %s390 = sphi 0, %s390
      %s392 = sphi 0, %s390
      %s393 = sphi 0, %s392
      %s407 = sphi 0, %s393
      %s411 = sphi 0, %s411
      %s413 = sphi 0, %s411
      %s414 = sphi 0, %s413
      %s428 = sphi 0, %s414
      %s432 = sphi 0, %s432
      %s434 = sphi 0, %s432
      %s435 = sphi 0, %s434
      %s449 = sphi 0, %s435
      %s455 = sphi 0, %s457
      %s458 = sphi 0, %s455
      %s459 = sphi 0, %s458
      %s475 = sphi 0, %s459
    $region4: #{gpt_forward.1} parent=1 // loop_header_branch
      %44 = sbr.rel (%p42) target = $region8
    $region5: #{gpt_forward.1} parent=1 // loop_body
      %s46 = ssub.s32 %s41, 1
      %s47 = ssub.s32 %s41, 2
      %s48 = sadd.s32 %s41, 1
      %s49 = ssub.s32 %s41, %s48
      %p50 = scmp.eq.s32.totalorder %s49, 0
      %s52 = sadd.s32 %s51, 1
      %s53 = scalar_select %p50, %s51, %s52
      %p56 = pneg %p50
      %p57 = scmp.eq.s32.totalorder %s41, 1
      %p58 = por %p56, %p57
      %p59 = scmp.ne.s32.totalorder %s51, %s54
      %p60 = scmp.eq.s32.totalorder %s41, 0
      %p61 = por %p59, %p60
      %p62 = scmp.ne.s32.totalorder %s51, %s54
      %p63 = scmp.eq.s32.totalorder %s46, 1
      %p64 = por %p62, %p63
      %p65 = scmp.ne.s32.totalorder %s54, %s55
      %p66 = scmp.eq.s32.totalorder %s46, 0
      %p67 = por %p65, %p66
      %p68 = scmp.ne.s32.totalorder %s54, %s55
      %p69 = scmp.eq.s32.totalorder %s47, 1
      %p70 = por %p68, %p69
      %p72 = scmp.ne.s32.totalorder %s55, %s71
      %p73 = scmp.eq.s32.totalorder %s47, 0
      %p74 = por %p72, %p73
      %s76 = sadd.s32 %s75, 1
      %p79 = scmp.eq.s32.totalorder %s41, 1
      %p80 = scmp.ne.s32.totalorder %s75, %s77
      %p81 = scmp.eq.s32.totalorder %s41, 0
      %p82 = por %p80, %p81
      %p83 = scmp.ne.s32.totalorder %s75, %s77
      %p84 = scmp.eq.s32.totalorder %s46, 1
      %p85 = por %p83, %p84
      %p86 = scmp.ne.s32.totalorder %s77, %s78
      %p87 = scmp.eq.s32.totalorder %s46, 0
      %p88 = por %p86, %p87
      %p89 = scmp.ne.s32.totalorder %s77, %s78
      %p90 = scmp.eq.s32.totalorder %s47, 1
      %p91 = por %p89, %p90
      %p93 = scmp.ne.s32.totalorder %s78, %s92
      %p94 = scmp.eq.s32.totalorder %s47, 0
      %p95 = por %p93, %p94
      %s97 = sadd.s32 %s96, 1
      %p100 = scmp.eq.s32.totalorder %s41, 1
      %p101 = scmp.ne.s32.totalorder %s96, %s98
      %p102 = scmp.eq.s32.totalorder %s41, 0
      %p103 = por %p101, %p102
      %p104 = scmp.ne.s32.totalorder %s96, %s98
      %p105 = scmp.eq.s32.totalorder %s46, 1
      %p106 = por %p104, %p105
      %p107 = scmp.ne.s32.totalorder %s98, %s99
      %p108 = scmp.eq.s32.totalorder %s46, 0
      %p109 = por %p107, %p108
      %p110 = scmp.ne.s32.totalorder %s98, %s99
      %p111 = scmp.eq.s32.totalorder %s47, 1
      %p112 = por %p110, %p111
      %p114 = scmp.ne.s32.totalorder %s99, %s113
      %p115 = scmp.eq.s32.totalorder %s47, 0
      %p116 = por %p114, %p115
      %s118 = sadd.s32 %s117, 1
      %p121 = scmp.eq.s32.totalorder %s41, 1
      %p122 = scmp.ne.s32.totalorder %s117, %s119
      %p123 = scmp.eq.s32.totalorder %s41, 0
      %p124 = por %p122, %p123
      %p125 = scmp.ne.s32.totalorder %s117, %s119
      %p126 = scmp.eq.s32.totalorder %s46, 1
      %p127 = por %p125, %p126
      %p128 = scmp.ne.s32.totalorder %s119, %s120
      %p129 = scmp.eq.s32.totalorder %s46, 0
      %p130 = por %p128, %p129
      %p131 = scmp.ne.s32.totalorder %s119, %s120
      %p132 = scmp.eq.s32.totalorder %s47, 1
      %p133 = por %p131, %p132
      %p135 = scmp.ne.s32.totalorder %s120, %s134
      %p136 = scmp.eq.s32.totalorder %s47, 0
      %p137 = por %p135, %p136
      %s139 = sadd.s32 %s138, 1
      %p142 = scmp.eq.s32.totalorder %s41, 1
      %p143 = scmp.ne.s32.totalorder %s138, %s140
      %p144 = scmp.eq.s32.totalorder %s41, 0
      %p145 = por %p143, %p144
      %p146 = scmp.ne.s32.totalorder %s138, %s140
      %p147 = scmp.eq.s32.totalorder %s46, 1
      %p148 = por %p146, %p147
      %p149 = scmp.ne.s32.totalorder %s140, %s141
      %p150 = scmp.eq.s32.totalorder %s46, 0
      %p151 = por %p149, %p150
      %p152 = scmp.ne.s32.totalorder %s140, %s141
      %p153 = scmp.eq.s32.totalorder %s47, 1
      %p154 = por %p152, %p153
      %p156 = scmp.ne.s32.totalorder %s141, %s155
      %p157 = scmp.eq.s32.totalorder %s47, 0
      %p158 = por %p156, %p157
      %s160 = sadd.s32 %s159, 1
      %p163 = scmp.eq.s32.totalorder %s41, 1
      %p164 = scmp.ne.s32.totalorder %s159, %s161
      %p165 = scmp.eq.s32.totalorder %s41, 0
      %p166 = por %p164, %p165
      %p167 = scmp.ne.s32.totalorder %s159, %s161
      %p168 = scmp.eq.s32.totalorder %s46, 1
      %p169 = por %p167, %p168
      %p170 = scmp.ne.s32.totalorder %s161, %s162
      %p171 = scmp.eq.s32.totalorder %s46, 0
      %p172 = por %p170, %p171
      %p173 = scmp.ne.s32.totalorder %s161, %s162
      %p174 = scmp.eq.s32.totalorder %s47, 1
      %p175 = por %p173, %p174
      %p177 = scmp.ne.s32.totalorder %s162, %s176
      %p178 = scmp.eq.s32.totalorder %s47, 0
      %p179 = por %p177, %p178
      %s181 = sadd.s32 %s180, 1
      %p184 = scmp.eq.s32.totalorder %s41, 1
      %p185 = scmp.ne.s32.totalorder %s180, %s182
      %p186 = scmp.eq.s32.totalorder %s41, 0
      %p187 = por %p185, %p186
      %p188 = scmp.ne.s32.totalorder %s180, %s182
      %p189 = scmp.eq.s32.totalorder %s46, 1
      %p190 = por %p188, %p189
      %p191 = scmp.ne.s32.totalorder %s182, %s183
      %p192 = scmp.eq.s32.totalorder %s46, 0
      %p193 = por %p191, %p192
      %p194 = scmp.ne.s32.totalorder %s182, %s183
      %p195 = scmp.eq.s32.totalorder %s47, 1
      %p196 = por %p194, %p195
      %p198 = scmp.ne.s32.totalorder %s183, %s197
      %p199 = scmp.eq.s32.totalorder %s47, 0
      %p200 = por %p198, %p199
      %s202 = sadd.s32 %s201, 1
      %p205 = scmp.eq.s32.totalorder %s41, 1
      %p206 = scmp.ne.s32.totalorder %s201, %s203
      %p207 = scmp.eq.s32.totalorder %s41, 0
      %p208 = por %p206, %p207
      %p209 = scmp.ne.s32.totalorder %s201, %s203
      %p210 = scmp.eq.s32.totalorder %s46, 1
      %p211 = por %p209, %p210
      %p212 = scmp.ne.s32.totalorder %s203, %s204
      %p213 = scmp.eq.s32.totalorder %s46, 0
      %p214 = por %p212, %p213
      %p215 = scmp.ne.s32.totalorder %s203, %s204
      %p216 = scmp.eq.s32.totalorder %s47, 1
      %p217 = por %p215, %p216
      %p219 = scmp.ne.s32.totalorder %s204, %s218
      %p220 = scmp.eq.s32.totalorder %s47, 0
      %p221 = por %p219, %p220
      %s223 = sadd.s32 %s222, 1
      %p226 = scmp.eq.s32.totalorder %s41, 1
      %p227 = scmp.ne.s32.totalorder %s222, %s224
      %p228 = scmp.eq.s32.totalorder %s41, 0
      %p229 = por %p227, %p228
      %p230 = scmp.ne.s32.totalorder %s222, %s224
      %p231 = scmp.eq.s32.totalorder %s46, 1
      %p232 = por %p230, %p231
      %p233 = scmp.ne.s32.totalorder %s224, %s225
      %p234 = scmp.eq.s32.totalorder %s46, 0
      %p235 = por %p233, %p234
      %p236 = scmp.ne.s32.totalorder %s224, %s225
      %p237 = scmp.eq.s32.totalorder %s47, 1
      %p238 = por %p236, %p237
      %p240 = scmp.ne.s32.totalorder %s225, %s239
      %p241 = scmp.eq.s32.totalorder %s47, 0
      %p242 = por %p240, %p241
      %s244 = sadd.s32 %s243, 1
      %p247 = scmp.eq.s32.totalorder %s41, 1
      %p248 = scmp.ne.s32.totalorder %s243, %s245
      %p249 = scmp.eq.s32.totalorder %s41, 0
      %p250 = por %p248, %p249
      %p251 = scmp.ne.s32.totalorder %s243, %s245
      %p252 = scmp.eq.s32.totalorder %s46, 1
      %p253 = por %p251, %p252
      %p254 = scmp.ne.s32.totalorder %s245, %s246
      %p255 = scmp.eq.s32.totalorder %s46, 0
      %p256 = por %p254, %p255
      %p257 = scmp.ne.s32.totalorder %s245, %s246
      %p258 = scmp.eq.s32.totalorder %s47, 1
      %p259 = por %p257, %p258
      %p261 = scmp.ne.s32.totalorder %s246, %s260
      %p262 = scmp.eq.s32.totalorder %s47, 0
      %p263 = por %p261, %p262
      %s265 = sadd.s32 %s264, 1
      %p268 = scmp.eq.s32.totalorder %s41, 1
      %p269 = scmp.ne.s32.totalorder %s264, %s266
      %p270 = scmp.eq.s32.totalorder %s41, 0
      %p271 = por %p269, %p270
      %p272 = scmp.ne.s32.totalorder %s264, %s266
      %p273 = scmp.eq.s32.totalorder %s46, 1
      %p274 = por %p272, %p273
      %p275 = scmp.ne.s32.totalorder %s266, %s267
      %p276 = scmp.eq.s32.totalorder %s46, 0
      %p277 = por %p275, %p276
      %p278 = scmp.ne.s32.totalorder %s266, %s267
      %p279 = scmp.eq.s32.totalorder %s47, 1
      %p280 = por %p278, %p279
      %p282 = scmp.ne.s32.totalorder %s267, %s281
      %p283 = scmp.eq.s32.totalorder %s47, 0
      %p284 = por %p282, %p283
      %s286 = sadd.s32 %s285, 1
      %p289 = scmp.eq.s32.totalorder %s41, 1
      %p290 = scmp.ne.s32.totalorder %s285, %s287
      %p291 = scmp.eq.s32.totalorder %s41, 0
      %p292 = por %p290, %p291
      %p293 = scmp.ne.s32.totalorder %s285, %s287
      %p294 = scmp.eq.s32.totalorder %s46, 1
      %p295 = por %p293, %p294
      %p296 = scmp.ne.s32.totalorder %s287, %s288
      %p297 = scmp.eq.s32.totalorder %s46, 0
      %p298 = por %p296, %p297
      %p299 = scmp.ne.s32.totalorder %s287, %s288
      %p300 = scmp.eq.s32.totalorder %s47, 1
      %p301 = por %p299, %p300
      %p303 = scmp.ne.s32.totalorder %s288, %s302
      %p304 = scmp.eq.s32.totalorder %s47, 0
      %p305 = por %p303, %p304
      %s307 = sadd.s32 %s306, 1
      %p310 = scmp.eq.s32.totalorder %s41, 1
      %p311 = scmp.ne.s32.totalorder %s306, %s308
      %p312 = scmp.eq.s32.totalorder %s41, 0
      %p313 = por %p311, %p312
      %p314 = scmp.ne.s32.totalorder %s306, %s308
      %p315 = scmp.eq.s32.totalorder %s46, 1
      %p316 = por %p314, %p315
      %p317 = scmp.ne.s32.totalorder %s308, %s309
      %p318 = scmp.eq.s32.totalorder %s46, 0
      %p319 = por %p317, %p318
      %p320 = scmp.ne.s32.totalorder %s308, %s309
      %p321 = scmp.eq.s32.totalorder %s47, 1
      %p322 = por %p320, %p321
      %p324 = scmp.ne.s32.totalorder %s309, %s323
      %p325 = scmp.eq.s32.totalorder %s47, 0
      %p326 = por %p324, %p325
      %s328 = sadd.s32 %s327, 1
      %p331 = scmp.eq.s32.totalorder %s41, 1
      %p332 = scmp.ne.s32.totalorder %s327, %s329
      %p333 = scmp.eq.s32.totalorder %s41, 0
      %p334 = por %p332, %p333
      %p335 = scmp.ne.s32.totalorder %s327, %s329
      %p336 = scmp.eq.s32.totalorder %s46, 1
      %p337 = por %p335, %p336
      %p338 = scmp.ne.s32.totalorder %s329, %s330
      %p339 = scmp.eq.s32.totalorder %s46, 0
      %p340 = por %p338, %p339
      %p341 = scmp.ne.s32.totalorder %s329, %s330
      %p342 = scmp.eq.s32.totalorder %s47, 1
      %p343 = por %p341, %p342
      %p345 = scmp.ne.s32.totalorder %s330, %s344
      %p346 = scmp.eq.s32.totalorder %s47, 0
      %p347 = por %p345, %p346
      %s349 = sadd.s32 %s348, 1
      %p352 = scmp.eq.s32.totalorder %s41, 1
      %p353 = scmp.ne.s32.totalorder %s348, %s350
      %p354 = scmp.eq.s32.totalorder %s41, 0
      %p355 = por %p353, %p354
      %p356 = scmp.ne.s32.totalorder %s348, %s350
      %p357 = scmp.eq.s32.totalorder %s46, 1
      %p358 = por %p356, %p357
      %p359 = scmp.ne.s32.totalorder %s350, %s351
      %p360 = scmp.eq.s32.totalorder %s46, 0
      %p361 = por %p359, %p360
      %p362 = scmp.ne.s32.totalorder %s350, %s351
      %p363 = scmp.eq.s32.totalorder %s47, 1
      %p364 = por %p362, %p363
      %p366 = scmp.ne.s32.totalorder %s351, %s365
      %p367 = scmp.eq.s32.totalorder %s47, 0
      %p368 = por %p366, %p367
      %s370 = sadd.s32 %s369, 1
      %p373 = scmp.eq.s32.totalorder %s41, 1
      %p374 = scmp.ne.s32.totalorder %s369, %s371
      %p375 = scmp.eq.s32.totalorder %s41, 0
      %p376 = por %p374, %p375
      %p377 = scmp.ne.s32.totalorder %s369, %s371
      %p378 = scmp.eq.s32.totalorder %s46, 1
      %p379 = por %p377, %p378
      %p380 = scmp.ne.s32.totalorder %s371, %s372
      %p381 = scmp.eq.s32.totalorder %s46, 0
      %p382 = por %p380, %p381
      %p383 = scmp.ne.s32.totalorder %s371, %s372
      %p384 = scmp.eq.s32.totalorder %s47, 1
      %p385 = por %p383, %p384
      %p387 = scmp.ne.s32.totalorder %s372, %s386
      %p388 = scmp.eq.s32.totalorder %s47, 0
      %p389 = por %p387, %p388
      %s391 = sadd.s32 %s390, 1
      %p394 = scmp.eq.s32.totalorder %s41, 1
      %p395 = scmp.ne.s32.totalorder %s390, %s392
      %p396 = scmp.eq.s32.totalorder %s41, 0
      %p397 = por %p395, %p396
      %p398 = scmp.ne.s32.totalorder %s390, %s392
      %p399 = scmp.eq.s32.totalorder %s46, 1
      %p400 = por %p398, %p399
      %p401 = scmp.ne.s32.totalorder %s392, %s393
      %p402 = scmp.eq.s32.totalorder %s46, 0
      %p403 = por %p401, %p402
      %p404 = scmp.ne.s32.totalorder %s392, %s393
      %p405 = scmp.eq.s32.totalorder %s47, 1
      %p406 = por %p404, %p405
      %p408 = scmp.ne.s32.totalorder %s393, %s407
      %p409 = scmp.eq.s32.totalorder %s47, 0
      %p410 = por %p408, %p409
      %s412 = sadd.s32 %s411, 1
      %p415 = scmp.eq.s32.totalorder %s41, 1
      %p416 = scmp.ne.s32.totalorder %s411, %s413
      %p417 = scmp.eq.s32.totalorder %s41, 0
      %p418 = por %p416, %p417
      %p419 = scmp.ne.s32.totalorder %s411, %s413
      %p420 = scmp.eq.s32.totalorder %s46, 1
      %p421 = por %p419, %p420
      %p422 = scmp.ne.s32.totalorder %s413, %s414
      %p423 = scmp.eq.s32.totalorder %s46, 0
      %p424 = por %p422, %p423
      %p425 = scmp.ne.s32.totalorder %s413, %s414
      %p426 = scmp.eq.s32.totalorder %s47, 1
      %p427 = por %p425, %p426
      %p429 = scmp.ne.s32.totalorder %s414, %s428
      %p430 = scmp.eq.s32.totalorder %s47, 0
      %p431 = por %p429, %p430
      %s433 = sadd.s32 %s432, 1
      %p436 = scmp.eq.s32.totalorder %s41, 1
      %p437 = scmp.ne.s32.totalorder %s432, %s434
      %p438 = scmp.eq.s32.totalorder %s41, 0
      %p439 = por %p437, %p438
      %p440 = scmp.ne.s32.totalorder %s432, %s434
      %p441 = scmp.eq.s32.totalorder %s46, 1
      %p442 = por %p440, %p441
      %p443 = scmp.ne.s32.totalorder %s434, %s435
      %p444 = scmp.eq.s32.totalorder %s46, 0
      %p445 = por %p443, %p444
      %p446 = scmp.ne.s32.totalorder %s434, %s435
      %p447 = scmp.eq.s32.totalorder %s47, 1
      %p448 = por %p446, %p447
      %p450 = scmp.ne.s32.totalorder %s435, %s449
      %p451 = scmp.eq.s32.totalorder %s47, 0
      %p452 = por %p450, %p451
      %s453 = ssub.s32 %s41, %s48
      %p454 = scmp.eq.s32.totalorder %s453, 0
      %s456 = sadd.s32 %s455, 1
      %s457 = scalar_select %p454, %s455, %s456
      %p460 = pneg %p454
      %p461 = scmp.eq.s32.totalorder %s41, 1
      %p462 = por %p460, %p461
      %p463 = scmp.ne.s32.totalorder %s455, %s458
      %p464 = scmp.eq.s32.totalorder %s41, 0
      %p465 = por %p463, %p464
      %p466 = scmp.ne.s32.totalorder %s455, %s458
      %p467 = scmp.eq.s32.totalorder %s46, 1
      %p468 = por %p466, %p467
      %p469 = scmp.ne.s32.totalorder %s458, %s459
      %p470 = scmp.eq.s32.totalorder %s46, 0
      %p471 = por %p469, %p470
      %p472 = scmp.ne.s32.totalorder %s458, %s459
      %p473 = scmp.eq.s32.totalorder %s47, 1
      %p474 = por %p472, %p473
      %p476 = scmp.ne.s32.totalorder %s459, %s475
      %p477 = scmp.eq.s32.totalorder %s47, 0
      %p478 = por %p476, %p477
      %p479 = scmp.le.s32.totalorder 1, %s41
      %p480 = scmp.lt.s32.totalorder %s41, 3
      %p481 = pnand %p479, %p480
      %p482 = pneg %p481
      // Predicated region
      $region9: #{gpt_forward.1} parent=5 // pred_check
        _
      $region10: #{gpt_forward.1} parent=5 // pred_check_branch
        %484 = sbr.rel (%p481) target = $region12
      $region11: #{gpt_forward.1} parent=5 // pred_region
        %s485 = ssub.s32 %s41, 1
        // Predicated region
        $region13: #{gpt_forward.1} parent=11 // pred_check
          %p486 = pneg %p88
        $region14: #{gpt_forward.1} parent=11 // pred_check_branch
          %488 = sbr.rel (%p486) target = $region16
        $region15: #{gpt_forward.1} parent=11 // pred_region
          %s490 = ssub.s32 768, 768
          %491 = vsyncadd [#allocation7], %s490
          %s492 = sshll.u32 [#allocation6], 4
          %s493 = int_to_ptr.vmem [resolvable:$true] %s492
          %498 = dma.hbm_to_vmem [thread:$0]  %s1, 768, %s493, [#allocation7], 128, 128, 8
        $region16: #{gpt_forward.1} parent=11 // pred_fallthru
          _
        // Predicated region
        $region17: #{gpt_forward.1} parent=11 // pred_check
          %p499 = pneg %p109
        $region18: #{gpt_forward.1} parent=11 // pred_check_branch
          %501 = sbr.rel (%p499) target = $region20
        $region19: #{gpt_forward.1} parent=11 // pred_region
          %s503 = ssub.s32 16, 16
          %504 = vsyncadd [#allocation5], %s503
          %507 = dma.hbm_to_smem %s2, 16, [#allocation8], [#allocation5]
        $region20: #{gpt_forward.1} parent=11 // pred_fallthru
          _
        // Predicated region
        $region21: #{gpt_forward.1} parent=11 // pred_check
          %p508 = pneg %p130
        $region22: #{gpt_forward.1} parent=11 // pred_check_branch
          %510 = sbr.rel (%p508) target = $region24
        $region23: #{gpt_forward.1} parent=11 // pred_region
          %s512 = ssub.s32 16, 16
          %513 = vsyncadd [#allocation7], %s512
          %s515 = sshll.u32 [#allocation9], 4
          %s516 = int_to_ptr.vmem [resolvable:$true] %s515
          %518 = dma.hbm_to_vmem [thread:$0]  %s3, 16, %s516, [#allocation7]
        $region24: #{gpt_forward.1} parent=11 // pred_fallthru
          _
        // Predicated region
        $region25: #{gpt_forward.1} parent=11 // pred_check
          %p519 = pneg %p151
        $region26: #{gpt_forward.1} parent=11 // pred_check_branch
          %521 = sbr.rel (%p519) target = $region28
        $region27: #{gpt_forward.1} parent=11 // pred_region
          %s523 = ssub.s32 16, 16
          %524 = vsyncadd [#allocation11], %s523
          %s526 = sshll.u32 [#allocation10], 4
          %s527 = int_to_ptr.vmem [resolvable:$true] %s526
          %529 = dma.hbm_to_vmem [thread:$0]  %s4, 16, %s527, [#allocation11]
        $region28: #{gpt_forward.1} parent=11 // pred_fallthru
          _
        // Predicated region
        $region29: #{gpt_forward.1} parent=11 // pred_check
          %p530 = pneg %p172
        $region30: #{gpt_forward.1} parent=11 // pred_check_branch
          %532 = sbr.rel (%p530) target = $region32
        $region31: #{gpt_forward.1} parent=11 // pred_region
          %s534 = ssub.s32 32, 32
          %535 = vsyncadd [#allocation11], %s534
          %s536 = sshll.u32 [#allocation12], 4
          %s537 = int_to_ptr.vmem [resolvable:$true] %s536
          %542 = dma.hbm_to_vmem [thread:$0]  %s5, 32, %s537, [#allocation11], 16, 16, 1
        $region32: #{gpt_forward.1} parent=11 // pred_fallthru
          _
        // Predicated region
        $region33: #{gpt_forward.1} parent=11 // pred_check
          %p543 = pneg %p193
        $region34: #{gpt_forward.1} parent=11 // pred_check_branch
          %545 = sbr.rel (%p543) target = $region36
        $region35: #{gpt_forward.1} parent=11 // pred_region
          %s547 = ssub.s32 32, 32
          %548 = vsyncadd [#allocation14], %s547
          %s549 = sshll.u32 [#allocation13], 4
          %s550 = int_to_ptr.vmem [resolvable:$true] %s549
          %555 = dma.hbm_to_vmem [thread:$0]  %s6, 32, %s550, [#allocation14], 16, 16, 1
        $region36: #{gpt_forward.1} parent=11 // pred_fallthru
          _
        // Predicated region
        $region37: #{gpt_forward.1} parent=11 // pred_check
          %p556 = pneg %p214
        $region38: #{gpt_forward.1} parent=11 // pred_check_branch
          %558 = sbr.rel (%p556) target = $region40
        $region39: #{gpt_forward.1} parent=11 // pred_region
          %s560 = ssub.s32 6144, 6144
          %561 = vsyncadd [#allocation14], %s560
          %s562 = sshll.u32 [#allocation15], 4
          %s563 = int_to_ptr.vmem [resolvable:$true] %s562
          %568 = dma.hbm_to_vmem [thread:$0]  %s7, 6144, %s563, [#allocation14], 192, 192, 12
        $region40: #{gpt_forward.1} parent=11 // pred_fallthru
          _
        // Predicated region
        $region41: #{gpt_forward.1} parent=11 // pred_check
          %p569 = pneg %p235
        $region42: #{gpt_forward.1} parent=11 // pred_check_branch
          %571 = sbr.rel (%p569) target = $region44
        $region43: #{gpt_forward.1} parent=11 // pred_region
          %s573 = ssub.s32 96, 96
          %574 = vsyncadd [#allocation17], %s573
          %s575 = sshll.u32 [#allocation16], 4
          %s576 = int_to_ptr.vmem [resolvable:$true] %s575
          %581 = dma.hbm_to_vmem [thread:$0]  %s8, 96, %s576, [#allocation17], 48, 48, 3
        $region44: #{gpt_forward.1} parent=11 // pred_fallthru
          _
        // Predicated region
        $region45: #{gpt_forward.1} parent=11 // pred_check
          %p582 = pneg %p256
        $region46: #{gpt_forward.1} parent=11 // pred_check_branch
          %584 = sbr.rel (%p582) target = $region48
        $region47: #{gpt_forward.1} parent=11 // pred_region
          %s586 = ssub.s32 2048, 2048
          %587 = vsyncadd [#allocation17], %s586
          %s588 = sshll.u32 [#allocation18], 4
          %s589 = int_to_ptr.vmem [resolvable:$true] %s588
          %594 = dma.hbm_to_vmem [thread:$0]  %s9, 2048, %s589, [#allocation17], 64, 64, 4
        $region48: #{gpt_forward.1} parent=11 // pred_fallthru
          _
        // Predicated region
        $region49: #{gpt_forward.1} parent=11 // pred_check
          %p595 = pneg %p277
        $region50: #{gpt_forward.1} parent=11 // pred_check_branch
          %597 = sbr.rel (%p595) target = $region52
        $region51: #{gpt_forward.1} parent=11 // pred_region
          %s599 = ssub.s32 32, 32
          %600 = vsyncadd [#allocation20], %s599
          %s601 = sshll.u32 [#allocation19], 4
          %s602 = int_to_ptr.vmem [resolvable:$true] %s601
          %607 = dma.hbm_to_vmem [thread:$0]  %s10, 32, %s602, [#allocation20], 16, 16, 1
        $region52: #{gpt_forward.1} parent=11 // pred_fallthru
          _
        // Predicated region
        $region53: #{gpt_forward.1} parent=11 // pred_check
          %p608 = pneg %p298
        $region54: #{gpt_forward.1} parent=11 // pred_check_branch
          %610 = sbr.rel (%p608) target = $region56
        $region55: #{gpt_forward.1} parent=11 // pred_region
          %s612 = ssub.s32 32, 32
          %613 = vsyncadd [#allocation20], %s612
          %s614 = sshll.u32 [#allocation21], 4
          %s615 = int_to_ptr.vmem [resolvable:$true] %s614
          %620 = dma.hbm_to_vmem [thread:$0]  %s11, 32, %s615, [#allocation20], 16, 16, 1
        $region56: #{gpt_forward.1} parent=11 // pred_fallthru
          _
        // Predicated region
        $region57: #{gpt_forward.1} parent=11 // pred_check
          %p621 = pneg %p319
        $region58: #{gpt_forward.1} parent=11 // pred_check_branch
          %623 = sbr.rel (%p621) target = $region60
        $region59: #{gpt_forward.1} parent=11 // pred_region
          %s625 = ssub.s32 32, 32
          %626 = vsyncadd [#allocation23], %s625
          %s627 = sshll.u32 [#allocation22], 4
          %s628 = int_to_ptr.vmem [resolvable:$true] %s627
          %633 = dma.hbm_to_vmem [thread:$0]  %s12, 32, %s628, [#allocation23], 16, 16, 1
        $region60: #{gpt_forward.1} parent=11 // pred_fallthru
          _
        // Predicated region
        $region61: #{gpt_forward.1} parent=11 // pred_check
          %p634 = pneg %p340
        $region62: #{gpt_forward.1} parent=11 // pred_check_branch
          %636 = sbr.rel (%p634) target = $region64
        $region63: #{gpt_forward.1} parent=11 // pred_region
          %s638 = ssub.s32 8192, 8192
          %639 = vsyncadd [#allocation23], %s638
          %s640 = sshll.u32 [#allocation24], 4
          %s641 = int_to_ptr.vmem [resolvable:$true] %s640
          %646 = dma.hbm_to_vmem [thread:$0]  %s13, 8192, %s641, [#allocation23], 256, 256, 16
        $region64: #{gpt_forward.1} parent=11 // pred_fallthru
          _
        // Predicated region
        $region65: #{gpt_forward.1} parent=11 // pred_check
          %p647 = pneg %p361
        $region66: #{gpt_forward.1} parent=11 // pred_check_branch
          %649 = sbr.rel (%p647) target = $region68
        $region67: #{gpt_forward.1} parent=11 // pred_region
          %s651 = ssub.s32 128, 128
          %652 = vsyncadd [#allocation26], %s651
          %s653 = sshll.u32 [#allocation25], 4
          %s654 = int_to_ptr.vmem [resolvable:$true] %s653
          %659 = dma.hbm_to_vmem [thread:$0]  %s14, 128, %s654, [#allocation26], 64, 64, 4
        $region68: #{gpt_forward.1} parent=11 // pred_fallthru
          _
        // Predicated region
        $region69: #{gpt_forward.1} parent=11 // pred_check
          %p660 = pneg %p382
        $region70: #{gpt_forward.1} parent=11 // pred_check_branch
          %662 = sbr.rel (%p660) target = $region72
        $region71: #{gpt_forward.1} parent=11 // pred_region
          %s664 = ssub.s32 8192, 8192
          %665 = vsyncadd [#allocation26], %s664
          %s666 = sshll.u32 [#allocation27], 4
          %s667 = int_to_ptr.vmem [resolvable:$true] %s666
          %672 = dma.hbm_to_vmem [thread:$0]  %s15, 8192, %s667, [#allocation26], 64, 64, 4
        $region72: #{gpt_forward.1} parent=11 // pred_fallthru
          _
        // Predicated region
        $region73: #{gpt_forward.1} parent=11 // pred_check
          %p673 = pneg %p403
        $region74: #{gpt_forward.1} parent=11 // pred_check_branch
          %675 = sbr.rel (%p673) target = $region76
        $region75: #{gpt_forward.1} parent=11 // pred_region
          %s677 = ssub.s32 32, 32
          %678 = vsyncadd [#allocation29], %s677
          %s679 = sshll.u32 [#allocation28], 4
          %s680 = int_to_ptr.vmem [resolvable:$true] %s679
          %685 = dma.hbm_to_vmem [thread:$0]  %s16, 32, %s680, [#allocation29], 16, 16, 1
        $region76: #{gpt_forward.1} parent=11 // pred_fallthru
          _
        // Predicated region
        $region77: #{gpt_forward.1} parent=11 // pred_check
          %p686 = pneg %p424
        $region78: #{gpt_forward.1} parent=11 // pred_check_branch
          %688 = sbr.rel (%p686) target = $region80
        $region79: #{gpt_forward.1} parent=11 // pred_region
          %s690 = ssub.s32 16, 16
          %691 = vsyncadd [#allocation29], %s690
          %s693 = sshll.u32 [#allocation30], 4
          %s694 = int_to_ptr.vmem [resolvable:$true] %s693
          %696 = dma.hbm_to_vmem [thread:$0]  %s17, 16, %s694, [#allocation29]
        $region80: #{gpt_forward.1} parent=11 // pred_fallthru
          _
        // Predicated region
        $region81: #{gpt_forward.1} parent=11 // pred_check
          %p697 = pneg %p445
        $region82: #{gpt_forward.1} parent=11 // pred_check_branch
          %699 = sbr.rel (%p697) target = $region84
        $region83: #{gpt_forward.1} parent=11 // pred_region
          %s701 = ssub.s32 16, 16
          %702 = vsyncadd [#allocation32], %s701
          %s704 = sshll.u32 [#allocation31], 4
          %s705 = int_to_ptr.vmem [resolvable:$true] %s704
          %707 = dma.hbm_to_vmem [thread:$0]  %s18, 16, %s705, [#allocation32]
        $region84: #{gpt_forward.1} parent=11 // pred_fallthru
          _
      $region12: #{gpt_forward.1} parent=5 // pred_fallthru
        _
      %p708 = scmp.lt.s32.totalorder %s41, 2
      // Predicated region
      $region85: #{gpt_forward.1} parent=5 // pred_check
        %p709 = pneg %p708
      $region86: #{gpt_forward.1} parent=5 // pred_check_branch
        %711 = sbr.rel (%p709) target = $region88
      $region87: #{gpt_forward.1} parent=5 // pred_region
        // Predicated region
        $region89: #{gpt_forward.1} parent=87 // pred_check
          %p712 = pneg %p61
        $region90: #{gpt_forward.1} parent=87 // pred_check_branch
          %714 = sbr.rel (%p712) target = $region92
        $region91: #{gpt_forward.1} parent=87 // pred_region
          %s715 = sand.u32 %s51, 1
          %s716 = scalar_lea.sflag [#allocation3], %s715
          %s717 = sand.u32 %s51, 1
          %s718 = smul.addr %s717, 48
          %s719 = scalar_lea.vmem [#allocation2], %s718
          %s721 = ssub.s32 768, 768
          %722 = vsyncadd %s716, %s721
          %s723 = smul.addr %s41, 6
          %s724 = smul.addr %s723, 128
          %s725 = scalar_lea.hbm %s0, %s724
          %s726 = sshll.u32 %s719, 4
          %s727 = int_to_ptr.vmem [resolvable:$true] %s726
          %732 = dma.hbm_to_vmem [thread:$0]  %s725, 768, %s727, %s716, 128, 128, 8
        $region92: #{gpt_forward.1} parent=87 // pred_fallthru
          _
      $region88: #{gpt_forward.1} parent=5 // pred_fallthru
        _
      %p733 = scmp.le.s32.totalorder 1, %s41
      %p734 = scmp.lt.s32.totalorder %s41, 3
      %p735 = pnand %p733, %p734
      %p736 = pneg %p735
      // Predicated region
      $region93: #{gpt_forward.1} parent=5 // pred_check
        _
      $region94: #{gpt_forward.1} parent=5 // pred_check_branch
        %738 = sbr.rel (%p735) target = $region96
      $region95: #{gpt_forward.1} parent=5 // pred_region
        %s739 = ssub.s32 %s41, 1
        %s740 = sand.u32 %s54, 1
        %s741 = scalar_lea.sflag [#allocation3], %s740
        %s742 = sand.u32 %s54, 1
        %s743 = smul.addr %s742, 48
        %s744 = scalar_lea.vmem [#allocation2], %s743
        // Predicated region
        $region97: #{gpt_forward.1} parent=95 // pred_check
          %p745 = pneg %p67
        $region98: #{gpt_forward.1} parent=95 // pred_check_branch
          %747 = sbr.rel (%p745) target = $region100
        $region99: #{gpt_forward.1} parent=95 // pred_region
          %748 = dma.done %s741, 768
        $region100: #{gpt_forward.1} parent=95 // pred_fallthru
          _
        // Predicated region
        $region101: #{gpt_forward.1} parent=95 // pred_check
          %p749 = pneg %p88
        $region102: #{gpt_forward.1} parent=95 // pred_check_branch
          %751 = sbr.rel (%p749) target = $region104
        $region103: #{gpt_forward.1} parent=95 // pred_region
          %752 = dma.done [#allocation7], 768
        $region104: #{gpt_forward.1} parent=95 // pred_fallthru
          _
        // Predicated region
        $region105: #{gpt_forward.1} parent=95 // pred_check
          %p753 = pneg %p109
        $region106: #{gpt_forward.1} parent=95 // pred_check_branch
          %755 = sbr.rel (%p753) target = $region108
        $region107: #{gpt_forward.1} parent=95 // pred_region
          %756 = dma.done [#allocation5], 16
        $region108: #{gpt_forward.1} parent=95 // pred_fallthru
          _
        // Predicated region
        $region109: #{gpt_forward.1} parent=95 // pred_check
          %p757 = pneg %p130
        $region110: #{gpt_forward.1} parent=95 // pred_check_branch
          %759 = sbr.rel (%p757) target = $region112
        $region111: #{gpt_forward.1} parent=95 // pred_region
          %760 = dma.done [#allocation7], 16
        $region112: #{gpt_forward.1} parent=95 // pred_fallthru
          _
        // Predicated region
        $region113: #{gpt_forward.1} parent=95 // pred_check
          %p761 = pneg %p151
        $region114: #{gpt_forward.1} parent=95 // pred_check_branch
          %763 = sbr.rel (%p761) target = $region116
        $region115: #{gpt_forward.1} parent=95 // pred_region
          %764 = dma.done [#allocation11], 16
        $region116: #{gpt_forward.1} parent=95 // pred_fallthru
          _
        // Predicated region
        $region117: #{gpt_forward.1} parent=95 // pred_check
          %p765 = pneg %p172
        $region118: #{gpt_forward.1} parent=95 // pred_check_branch
          %767 = sbr.rel (%p765) target = $region120
        $region119: #{gpt_forward.1} parent=95 // pred_region
          %768 = dma.done [#allocation11], 32
        $region120: #{gpt_forward.1} parent=95 // pred_fallthru
          _
        // Predicated region
        $region121: #{gpt_forward.1} parent=95 // pred_check
          %p769 = pneg %p193
        $region122: #{gpt_forward.1} parent=95 // pred_check_branch
          %771 = sbr.rel (%p769) target = $region124
        $region123: #{gpt_forward.1} parent=95 // pred_region
          %772 = dma.done [#allocation14], 32
        $region124: #{gpt_forward.1} parent=95 // pred_fallthru
          _
        // Predicated region
        $region125: #{gpt_forward.1} parent=95 // pred_check
          %p773 = pneg %p214
        $region126: #{gpt_forward.1} parent=95 // pred_check_branch
          %775 = sbr.rel (%p773) target = $region128
        $region127: #{gpt_forward.1} parent=95 // pred_region
          %776 = dma.done [#allocation14], 6144
        $region128: #{gpt_forward.1} parent=95 // pred_fallthru
          _
        // Predicated region
        $region129: #{gpt_forward.1} parent=95 // pred_check
          %p777 = pneg %p235
        $region130: #{gpt_forward.1} parent=95 // pred_check_branch
          %779 = sbr.rel (%p777) target = $region132
        $region131: #{gpt_forward.1} parent=95 // pred_region
          %780 = dma.done [#allocation17], 96
        $region132: #{gpt_forward.1} parent=95 // pred_fallthru
          _
        // Predicated region
        $region133: #{gpt_forward.1} parent=95 // pred_check
          %p781 = pneg %p256
        $region134: #{gpt_forward.1} parent=95 // pred_check_branch
          %783 = sbr.rel (%p781) target = $region136
        $region135: #{gpt_forward.1} parent=95 // pred_region
          %784 = dma.done [#allocation17], 2048
        $region136: #{gpt_forward.1} parent=95 // pred_fallthru
          _
        // Predicated region
        $region137: #{gpt_forward.1} parent=95 // pred_check
          %p785 = pneg %p277
        $region138: #{gpt_forward.1} parent=95 // pred_check_branch
          %787 = sbr.rel (%p785) target = $region140
        $region139: #{gpt_forward.1} parent=95 // pred_region
          %788 = dma.done [#allocation20], 32
        $region140: #{gpt_forward.1} parent=95 // pred_fallthru
          _
        // Predicated region
        $region141: #{gpt_forward.1} parent=95 // pred_check
          %p789 = pneg %p298
        $region142: #{gpt_forward.1} parent=95 // pred_check_branch
          %791 = sbr.rel (%p789) target = $region144
        $region143: #{gpt_forward.1} parent=95 // pred_region
          %792 = dma.done [#allocation20], 32
        $region144: #{gpt_forward.1} parent=95 // pred_fallthru
          _
        // Predicated region
        $region145: #{gpt_forward.1} parent=95 // pred_check
          %p793 = pneg %p319
        $region146: #{gpt_forward.1} parent=95 // pred_check_branch
          %795 = sbr.rel (%p793) target = $region148
        $region147: #{gpt_forward.1} parent=95 // pred_region
          %796 = dma.done [#allocation23], 32
        $region148: #{gpt_forward.1} parent=95 // pred_fallthru
          _
        // Predicated region
        $region149: #{gpt_forward.1} parent=95 // pred_check
          %p797 = pneg %p340
        $region150: #{gpt_forward.1} parent=95 // pred_check_branch
          %799 = sbr.rel (%p797) target = $region152
        $region151: #{gpt_forward.1} parent=95 // pred_region
          %800 = dma.done [#allocation23], 8192
        $region152: #{gpt_forward.1} parent=95 // pred_fallthru
          _
        // Predicated region
        $region153: #{gpt_forward.1} parent=95 // pred_check
          %p801 = pneg %p361
        $region154: #{gpt_forward.1} parent=95 // pred_check_branch
          %803 = sbr.rel (%p801) target = $region156
        $region155: #{gpt_forward.1} parent=95 // pred_region
          %804 = dma.done [#allocation26], 128
        $region156: #{gpt_forward.1} parent=95 // pred_fallthru
          _
        // Predicated region
        $region157: #{gpt_forward.1} parent=95 // pred_check
          %p805 = pneg %p382
        $region158: #{gpt_forward.1} parent=95 // pred_check_branch
          %807 = sbr.rel (%p805) target = $region160
        $region159: #{gpt_forward.1} parent=95 // pred_region
          %808 = dma.done [#allocation26], 8192
        $region160: #{gpt_forward.1} parent=95 // pred_fallthru
          _
        // Predicated region
        $region161: #{gpt_forward.1} parent=95 // pred_check
          %p809 = pneg %p403
        $region162: #{gpt_forward.1} parent=95 // pred_check_branch
          %811 = sbr.rel (%p809) target = $region164
        $region163: #{gpt_forward.1} parent=95 // pred_region
          %812 = dma.done [#allocation29], 32
        $region164: #{gpt_forward.1} parent=95 // pred_fallthru
          _
        // Predicated region
        $region165: #{gpt_forward.1} parent=95 // pred_check
          %p813 = pneg %p424
        $region166: #{gpt_forward.1} parent=95 // pred_check_branch
          %815 = sbr.rel (%p813) target = $region168
        $region167: #{gpt_forward.1} parent=95 // pred_region
          %816 = dma.done [#allocation29], 16
        $region168: #{gpt_forward.1} parent=95 // pred_fallthru
          _
        // Predicated region
        $region169: #{gpt_forward.1} parent=95 // pred_check
          %p817 = pneg %p445
        $region170: #{gpt_forward.1} parent=95 // pred_check_branch
          %819 = sbr.rel (%p817) target = $region172
        $region171: #{gpt_forward.1} parent=95 // pred_region
          %820 = dma.done [#allocation32], 16
        $region172: #{gpt_forward.1} parent=95 // pred_fallthru
          _
        %821 = sfence
        %s822 = sand.u32 %s54, 1
        %s823 = scalar_lea.sflag [#allocation3], %s822
        %s824 = sand.u32 %s54, 1
        %s825 = smul.addr %s824, 48
        %s826 = scalar_lea.vmem [#allocation2], %s825
        %p827 = pneg %p67
        %p828 = pneg %p64
        %p829 = pneg %p88
        %p830 = pneg %p85
        %p831 = pneg %p109
        %p832 = pneg %p106
        %p833 = pneg %p130
        %p834 = pneg %p127
        %p835 = pneg %p151
        %p836 = pneg %p148
        %p837 = pneg %p172
        %p838 = pneg %p169
        %p839 = pneg %p193
        %p840 = pneg %p190
        %p841 = pneg %p214
        %p842 = pneg %p211
        %p843 = pneg %p235
        %p844 = pneg %p232
        %p845 = pneg %p256
        %p846 = pneg %p253
        %p847 = pneg %p277
        %p848 = pneg %p274
        %p849 = pneg %p298
        %p850 = pneg %p295
        %p851 = pneg %p319
        %p852 = pneg %p316
        %p853 = pneg %p340
        %p854 = pneg %p337
        %p855 = pneg %p361
        %p856 = pneg %p358
        %p857 = pneg %p382
        %p858 = pneg %p379
        %p859 = pneg %p403
        %p860 = pneg %p400
        %p861 = pneg %p424
        %p862 = pneg %p421
        %p863 = pneg %p445
        %p864 = pneg %p442
        %p865 = pneg %p471
        %p866 = pneg %p468
        %s867 = sand.u32 %s458, 1
        %s868 = scalar_lea.sflag [#allocation4], %s867
        %s869 = sand.u32 %s458, 1
        %s870 = smul.addr %s869, 48
        %s871 = scalar_lea.vmem [#allocation33], %s870
        %s873 = sld [smem:[#allocation8 + %s46]]
        %v874 = vld [vmem:[#allocation9] sm:$0x1]
        %v875 = vstv %s873
        %v876 = vmul.f32 %v875, %v874
        %v877 = vld [vmem:[#allocation10] sm:$0x1]
        %v878 = vadd.f32 %v876, %v877
        %v879 = vld [vmem:[%s744] sm:$0xff]
        %v880 = vld [vmem:[%s744 + $0x8] sm:$0xff]
        %v881 = vld [vmem:[%s744 + $0x10] sm:$0xff]
        %v882 = vld [vmem:[%s744 + $0x18] sm:$0xff]
        %v883 = vld [vmem:[%s744 + $0x20] sm:$0xff]
        %v884 = vld [vmem:[%s744 + $0x28] sm:$0xff]
        %v885 = vld [vmem:[#allocation6] sm:$0xff]
        %v886 = vld [vmem:[#allocation6 + $0x8] sm:$0xff]
        %v887 = vld [vmem:[#allocation6 + $0x10] sm:$0xff]
        %v888 = vld [vmem:[#allocation6 + $0x18] sm:$0xff]
        %v889 = vld [vmem:[#allocation6 + $0x20] sm:$0xff]
        %v890 = vld [vmem:[#allocation6 + $0x28] sm:$0xff]
        %v891 = vadd.f32 %v879, %v885
        %v892 = vadd.f32 %v880, %v886
        %v893 = vadd.f32 %v881, %v887
        %v894 = vadd.f32 %v882, %v888
        %v895 = vadd.f32 %v883, %v889
        %v896 = vadd.f32 %v884, %v890
        %v898 = vlaneseq
        %v899 = vshrl.u32 %v898, 7
        %v900 = vsub.s32 0, %v899
        %v901 = vrot.slane %v878, %v900
        %v903 = vadd.f32 %v891, %v901
        %v904 = vadd.f32 %v892, %v901
        %v905 = vadd.f32 %v893, %v901
        %v906 = vadd.f32 %v894, %v901
        %v907 = vadd.f32 %v895, %v901
        %v908 = vadd.f32 %v896, %v901
        %v909 = vld [vmem:[#allocation12] sm:$0x1]
        %v910 = vld [vmem:[#allocation13] sm:$0x1]
        %911 = vadd.xlane.f32.xlu0 %v903
        %v912 = vpop.xlane.xlu0 %911
        %913 = vadd.xlane.f32.xlu0 %v904
        %v914 = vpop.xlane.xlu0 %913
        %915 = vadd.xlane.f32.xlu0 %v905
        %v916 = vpop.xlane.xlu0 %915
        %917 = vadd.xlane.f32.xlu0 %v906
        %v918 = vpop.xlane.xlu0 %917
        %919 = vadd.xlane.f32.xlu0 %v907
        %v920 = vpop.xlane.xlu0 %919
        %921 = vadd.xlane.f32.xlu0 %v908
        %v922 = vpop.xlane.xlu0 %921
        %v923 = vrcp.pop 128.0
        %v924 = vmul.f32 %v912, %v923
        %v925 = vmul.f32 %v914, %v923
        %v926 = vmul.f32 %v916, %v923
        %v927 = vmul.f32 %v918, %v923
        %v928 = vmul.f32 %v920, %v923
        %v929 = vmul.f32 %v922, %v923
        %v930 = vsub.f32 %v903, %v924
        %v931 = vsub.f32 %v904, %v925
        %v932 = vsub.f32 %v905, %v926
        %v933 = vsub.f32 %v906, %v927
        %v934 = vsub.f32 %v907, %v928
        %v935 = vsub.f32 %v908, %v929
        %v936 = vmul.f32 %v930, %v930
        %v937 = vmul.f32 %v931, %v931
        %v938 = vmul.f32 %v932, %v932
        %v939 = vmul.f32 %v933, %v933
        %v940 = vmul.f32 %v934, %v934
        %v941 = vmul.f32 %v935, %v935
        %942 = vadd.xlane.f32.xlu0 %v936
        %v943 = vpop.xlane.xlu0 %942
        %944 = vadd.xlane.f32.xlu0 %v937
        %v945 = vpop.xlane.xlu0 %944
        %946 = vadd.xlane.f32.xlu0 %v938
        %v947 = vpop.xlane.xlu0 %946
        %948 = vadd.xlane.f32.xlu0 %v939
        %v949 = vpop.xlane.xlu0 %948
        %950 = vadd.xlane.f32.xlu0 %v940
        %v951 = vpop.xlane.xlu0 %950
        %952 = vadd.xlane.f32.xlu0 %v941
        %v953 = vpop.xlane.xlu0 %952
        %v954 = vmul.f32 %v943, %v923
        %v955 = vmul.f32 %v945, %v923
        %v956 = vmul.f32 %v947, %v923
        %v957 = vmul.f32 %v949, %v923
        %v958 = vmul.f32 %v951, %v923
        %v959 = vmul.f32 %v953, %v923
        %v960 = vadd.f32 %v954, 1e-05
        %v961 = vadd.f32 %v955, 1e-05
        %v962 = vadd.f32 %v956, 1e-05
        %v963 = vadd.f32 %v957, 1e-05
        %v964 = vadd.f32 %v958, 1e-05
        %v965 = vadd.f32 %v959, 1e-05
        %v966 = vrsqrt.pop %v960
        %v967 = vrsqrt.pop %v961
        %v968 = vrsqrt.pop %v962
        %v969 = vrsqrt.pop %v963
        %v970 = vrsqrt.pop %v964
        %v971 = vrsqrt.pop %v965
        %v972 = vmul.f32 %v930, %v966
        %v973 = vmul.f32 %v931, %v967
        %v974 = vmul.f32 %v932, %v968
        %v975 = vmul.f32 %v933, %v969
        %v976 = vmul.f32 %v934, %v970
        %v977 = vmul.f32 %v935, %v971
        %v979 = vlaneseq
        %v980 = vshrl.u32 %v979, 7
        %v981 = vsub.s32 0, %v980
        %v982 = vrot.slane %v909, %v981
        %v984 = vmul.f32 %v972, %v982
        %v985 = vmul.f32 %v973, %v982
        %v986 = vmul.f32 %v974, %v982
        %v987 = vmul.f32 %v975, %v982
        %v988 = vmul.f32 %v976, %v982
        %v989 = vmul.f32 %v977, %v982
        %v991 = vlaneseq
        %v992 = vshrl.u32 %v991, 7
        %v993 = vsub.s32 0, %v992
        %v994 = vrot.slane %v910, %v993
        %v996 = vadd.f32 %v984, %v994
        %v997 = vadd.f32 %v985, %v994
        %v998 = vadd.f32 %v986, %v994
        %v999 = vadd.f32 %v987, %v994
        %v1000 = vadd.f32 %v988, %v994
        %v1001 = vadd.f32 %v989, %v994
        %v1002 = vpack.c.bf16 %v997, %v996
        %v1003 = vpack.c.bf16 %v999, %v998
        %v1004 = vpack.c.bf16 %v1001, %v1000
        %v1005 = vld [vmem:[#allocation15] sm:$0xff]
        %v1006 = vld [vmem:[#allocation15 + $0x8] sm:$0xf]
        %v1007 = vld [vmem:[#allocation15 + $0xc] sm:$0xff]
        %v1008 = vld [vmem:[#allocation15 + $0x14] sm:$0xf]
        %v1009 = vld [vmem:[#allocation15 + $0x18] sm:$0xff]
        %v1010 = vld [vmem:[#allocation15 + $0x20] sm:$0xf]
        %v1011 = vld [vmem:[#allocation15 + $0x24] sm:$0xff]
        %v1012 = vld [vmem:[#allocation15 + $0x2c] sm:$0xf]
        %v1013 = vld [vmem:[#allocation15 + $0x30] sm:$0xff]
        %v1014 = vld [vmem:[#allocation15 + $0x38] sm:$0xf]
        %v1015 = vld [vmem:[#allocation15 + $0x3c] sm:$0xff]
        %v1016 = vld [vmem:[#allocation15 + $0x44] sm:$0xf]
        %v1017 = vld [vmem:[#allocation15 + $0x48] sm:$0xff]
        %v1018 = vld [vmem:[#allocation15 + $0x50] sm:$0xf]
        %v1019 = vld [vmem:[#allocation15 + $0x54] sm:$0xff]
        %v1020 = vld [vmem:[#allocation15 + $0x5c] sm:$0xf]
        %v1021 = vld [vmem:[#allocation15 + $0x60] sm:$0xff]
        %v1022 = vld [vmem:[#allocation15 + $0x68] sm:$0xf]
        %v1023 = vld [vmem:[#allocation15 + $0x6c] sm:$0xff]
        %v1024 = vld [vmem:[#allocation15 + $0x74] sm:$0xf]
        %v1025 = vld [vmem:[#allocation15 + $0x78] sm:$0xff]
        %v1026 = vld [vmem:[#allocation15 + $0x80] sm:$0xf]
        %v1027 = vld [vmem:[#allocation15 + $0x84] sm:$0xff]
        %v1028 = vld [vmem:[#allocation15 + $0x8c] sm:$0xf]
        %v1029 = vld [vmem:[#allocation15 + $0x90] sm:$0xff]
        %v1030 = vld [vmem:[#allocation15 + $0x98] sm:$0xf]
        %v1031 = vld [vmem:[#allocation15 + $0x9c] sm:$0xff]
        %v1032 = vld [vmem:[#allocation15 + $0xa4] sm:$0xf]
        %v1033 = vld [vmem:[#allocation15 + $0xa8] sm:$0xff]
        %v1034 = vld [vmem:[#allocation15 + $0xb0] sm:$0xf]
        %v1035 = vld [vmem:[#allocation15 + $0xb4] sm:$0xff]
        %v1036 = vld [vmem:[#allocation15 + $0xbc] sm:$0xf]
        %v1037 = vld [vmem:[#allocation16] sm:$0x7]
        %v1039 = vlaneseq
        %v1040 = vshrl.u32 %v1039, 7
        %v1041 = vsub.s32 0, %v1040
        %v1042 = vrot.slane %v1037, %v1041
        %v1043 = vlaneseq
        %v1044 = vshrl.u32 %v1043, 7
        %v1045 = vsub.s32 1, %v1044
        %v1046 = vrot.slane %v1037, %v1045
        %v1047 = vlaneseq
        %v1048 = vshrl.u32 %v1047, 7
        %v1049 = vsub.s32 2, %v1048
        %v1050 = vrot.slane %v1037, %v1049
        %v1086 = vunpack.c.l.b16 %v1005
        %v1087 = vunpack.c.h.b16 %v1005
        %v1088 = vunpack.c.l.b16 %v1006
        %v1089 = vunpack.c.l.b16 %v1007
        %v1090 = vunpack.c.h.b16 %v1007
        %v1091 = vunpack.c.l.b16 %v1008
        %v1092 = vunpack.c.l.b16 %v1009
        %v1093 = vunpack.c.h.b16 %v1009
        %v1094 = vunpack.c.l.b16 %v1010
        %v1095 = vunpack.c.l.b16 %v1011
        %v1096 = vunpack.c.h.b16 %v1011
        %v1097 = vunpack.c.l.b16 %v1012
        %v1098 = vunpack.c.l.b16 %v1013
        %v1099 = vunpack.c.h.b16 %v1013
        %v1100 = vunpack.c.l.b16 %v1014
        %v1101 = vunpack.c.l.b16 %v1015
        %v1102 = vunpack.c.h.b16 %v1015
        %v1103 = vunpack.c.l.b16 %v1016
        %v1104 = vunpack.c.l.b16 %v1017
        %v1105 = vunpack.c.h.b16 %v1017
        %v1106 = vunpack.c.l.b16 %v1018
        %v1107 = vunpack.c.l.b16 %v1019
        %v1108 = vunpack.c.h.b16 %v1019
        %v1109 = vunpack.c.l.b16 %v1020
        %v1110 = vunpack.c.l.b16 %v1021
        %v1111 = vunpack.c.h.b16 %v1021
        %v1112 = vunpack.c.l.b16 %v1022
        %v1113 = vunpack.c.l.b16 %v1023
        %v1114 = vunpack.c.h.b16 %v1023
        %v1115 = vunpack.c.l.b16 %v1024
        %v1116 = vunpack.c.l.b16 %v1025
        %v1117 = vunpack.c.h.b16 %v1025
        %v1118 = vunpack.c.l.b16 %v1026
        %v1119 = vunpack.c.l.b16 %v1027
        %v1120 = vunpack.c.h.b16 %v1027
        %v1121 = vunpack.c.l.b16 %v1028
        %v1122 = vunpack.c.l.b16 %v1029
        %v1123 = vunpack.c.h.b16 %v1029
        %v1124 = vunpack.c.l.b16 %v1030
        %v1125 = vunpack.c.l.b16 %v1031
        %v1126 = vunpack.c.h.b16 %v1031
        %v1127 = vunpack.c.l.b16 %v1032
        %v1128 = vunpack.c.l.b16 %v1033
        %v1129 = vunpack.c.h.b16 %v1033
        %v1130 = vunpack.c.l.b16 %v1034
        %v1131 = vunpack.c.l.b16 %v1035
        %v1132 = vunpack.c.h.b16 %v1035
        %v1133 = vunpack.c.l.b16 %v1036
        %v1134 = vpack.c.b16 %v1089, %v1086
        %v1135 = vpack.c.b16 %v1090, %v1087
        %v1136 = vpack.c.b16 %v1091, %v1088
        %v1137 = vpack.c.b16 %v1095, %v1092
        %v1138 = vpack.c.b16 %v1096, %v1093
        %v1139 = vpack.c.b16 %v1097, %v1094
        %v1140 = vpack.c.b16 %v1101, %v1098
        %v1141 = vpack.c.b16 %v1102, %v1099
        %v1142 = vpack.c.b16 %v1103, %v1100
        %v1143 = vpack.c.b16 %v1107, %v1104
        %v1144 = vpack.c.b16 %v1108, %v1105
        %v1145 = vpack.c.b16 %v1109, %v1106
        %v1146 = vpack.c.b16 %v1113, %v1110
        %v1147 = vpack.c.b16 %v1114, %v1111
        %v1148 = vpack.c.b16 %v1115, %v1112
        %v1149 = vpack.c.b16 %v1119, %v1116
        %v1150 = vpack.c.b16 %v1120, %v1117
        %v1151 = vpack.c.b16 %v1121, %v1118
        %v1152 = vpack.c.b16 %v1125, %v1122
        %v1153 = vpack.c.b16 %v1126, %v1123
        %v1154 = vpack.c.b16 %v1127, %v1124
        %v1155 = vpack.c.b16 %v1131, %v1128
        %v1156 = vpack.c.b16 %v1132, %v1129
        %v1157 = vpack.c.b16 %v1133, %v1130
        %1182 = vmatprep.subr.bf16.mxu0 %v1135
        %1183 = vmatpush1.bf16.msra.mxu0 %v1134
        %1184 = vmatprep.subr.bf16.mxu0 %v1138
        %1185 = vmatpush1.bf16.msra.mxu0 %v1137
        %1186 = vmatprep.subr.bf16.mxu0 %v1141
        %1187 = vmatpush1.bf16.msra.mxu0 %v1140
        %1188 = vmatprep.subr.bf16.mxu0 %v1144
        %1189 = vmatpush1.bf16.msra.mxu0 %v1143
        %1190 = vmatprep.subr.bf16.mxu0 %v1147
        %1191 = vmatpush1.bf16.msra.mxu0 %v1146
        %1192 = vmatprep.subr.bf16.mxu0 %v1150
        %1193 = vmatpush1.bf16.msra.mxu0 %v1149
        %1194 = vmatprep.subr.bf16.mxu0 %v1153
        %1195 = vmatpush1.bf16.msra.mxu0 %v1152
        %1196 = vmatprep.subr.bf16.mxu0 %v1156
        %1197 = vmatpush1.bf16.msra.mxu0 %v1155
        %1198 = vmatprep.subr.bf16.mxu0 0
        %1199 = vmatpush1.bf16.msra.mxu0 0
        %1200 = vmatprep.subr.bf16.mxu0 0
        %1201 = vmatpush1.bf16.msra.mxu0 0
        %1202 = vmatprep.subr.bf16.mxu0 0
        %1203 = vmatpush1.bf16.msra.mxu0 0
        %1204 = vmatprep.subr.bf16.mxu0 0
        %1205 = vmatpush1.bf16.msra.mxu0 0
        %1206 = vmatprep.subr.bf16.mxu0 0
        %1207 = vmatpush1.bf16.msra.mxu0 0
        %1208 = vmatprep.subr.bf16.mxu0 0
        %1209 = vmatpush1.bf16.msra.mxu0 0
        %1210 = vmatprep.subr.bf16.mxu0 0
        %1211 = vmatpush1.bf16.msra.mxu0 0
        %1212 = vmatprep.subr.bf16.mxu0 0
        %1213 = vmatpush1.bf16.msra.mxu0 0
        %1214 = vmatprep.mubr.bf16.mxu0 0
        %1215 = vmatmul.mubr.bf16.gmra.mrb[0].mxu0 %v1002
        %v1216 = vpop.f32.mrb[0].mxu0
        %v1217 = vadd.f32 %v1042, %v1216
        %v1218 = vpop.f32.mrb[0].mxu0
        %v1219 = vadd.f32 %v1046, %v1218
        %v1220 = vpop.f32.mrb[0].mxu0
        %v1221 = vadd.f32 %v1042, %v1220
        %v1222 = vpop.f32.mrb[0].mxu0
        %v1223 = vadd.f32 %v1046, %v1222
        %1224 = vmatprep.mubr.bf16.mxu0 0
        %1225 = vmatmul.mubr.bf16.gmra.mrb[0].mxu0 %v1003
        %v1226 = vpop.f32.mrb[0].mxu0
        %v1227 = vadd.f32 %v1042, %v1226
        %v1228 = vpop.f32.mrb[0].mxu0
        %v1229 = vadd.f32 %v1046, %v1228
        %v1230 = vpop.f32.mrb[0].mxu0
        %v1231 = vadd.f32 %v1042, %v1230
        %v1232 = vpop.f32.mrb[0].mxu0
        %v1233 = vadd.f32 %v1046, %v1232
        %1234 = vmatprep.mubr.bf16.mxu0 0
        %1235 = vmatmul.mubr.bf16.gmra.mrb[0].mxu0 %v1004
        %v1236 = vpop.f32.mrb[0].mxu0
        %v1237 = vadd.f32 %v1042, %v1236
        %v1238 = vpop.f32.mrb[0].mxu0
        %v1239 = vadd.f32 %v1046, %v1238
        %v1240 = vpop.f32.mrb[0].mxu0
        %v1241 = vadd.f32 %v1042, %v1240
        %v1242 = vpop.f32.mrb[0].mxu0
        %v1243 = vadd.f32 %v1046, %v1242
        %1244 = vdwg.mxu0
        %1245 = vmatprep.subr.bf16.mxu0 0
        %1246 = vmatpush1.bf16.msra.mxu0 %v1136
        %1247 = vmatprep.subr.bf16.mxu0 0
        %1248 = vmatpush1.bf16.msra.mxu0 %v1139
        %1249 = vmatprep.subr.bf16.mxu0 0
        %1250 = vmatpush1.bf16.msra.mxu0 %v1142
        %1251 = vmatprep.subr.bf16.mxu0 0
        %1252 = vmatpush1.bf16.msra.mxu0 %v1145
        %1253 = vmatprep.subr.bf16.mxu0 0
        %1254 = vmatpush1.bf16.msra.mxu0 %v1148
        %1255 = vmatprep.subr.bf16.mxu0 0
        %1256 = vmatpush1.bf16.msra.mxu0 %v1151
        %1257 = vmatprep.subr.bf16.mxu0 0
        %1258 = vmatpush1.bf16.msra.mxu0 %v1154
        %1259 = vmatprep.subr.bf16.mxu0 0
        %1260 = vmatpush1.bf16.msra.mxu0 %v1157
        %1261 = vmatprep.subr.bf16.mxu0 0
        %1262 = vmatpush1.bf16.msra.mxu0 0
        %1263 = vmatprep.subr.bf16.mxu0 0
        %1264 = vmatpush1.bf16.msra.mxu0 0
        %1265 = vmatprep.subr.bf16.mxu0 0
        %1266 = vmatpush1.bf16.msra.mxu0 0
        %1267 = vmatprep.subr.bf16.mxu0 0
        %1268 = vmatpush1.bf16.msra.mxu0 0
        %1269 = vmatprep.subr.bf16.mxu0 0
        %1270 = vmatpush1.bf16.msra.mxu0 0
        %1271 = vmatprep.subr.bf16.mxu0 0
        %1272 = vmatpush1.bf16.msra.mxu0 0
        %1273 = vmatprep.subr.bf16.mxu0 0
        %1274 = vmatpush1.bf16.msra.mxu0 0
        %1275 = vmatprep.subr.bf16.mxu0 0
        %1276 = vmatpush1.bf16.msra.mxu0 0
        %1277 = vmatprep.mubr.bf16.mxu0 0
        %1278 = vmatmul.mubr.bf16.gmra.mrb[0].mxu0 %v1002
        %v1279 = vpop.f32.mrb[0].mxu0
        %v1280 = vadd.f32 %v1050, %v1279
        %v1281 = vpop.f32.mrb[0].mxu0
        %v1282 = vpop.f32.mrb[0].mxu0
        %v1283 = vadd.f32 %v1050, %v1282
        %v1284 = vpop.f32.mrb[0].mxu0
        %1285 = vmatprep.mubr.bf16.mxu0 0
        %1286 = vmatmul.mubr.bf16.gmra.mrb[0].mxu0 %v1003
        %v1287 = vpop.f32.mrb[0].mxu0
        %v1288 = vadd.f32 %v1050, %v1287
        %v1289 = vpop.f32.mrb[0].mxu0
        %v1290 = vpop.f32.mrb[0].mxu0
        %v1291 = vadd.f32 %v1050, %v1290
        %v1292 = vpop.f32.mrb[0].mxu0
        %1293 = vmatprep.mubr.bf16.mxu0 0
        %1294 = vmatmul.mubr.bf16.gmra.mrb[0].mxu0 %v1004
        %v1295 = vpop.f32.mrb[0].mxu0
        %v1296 = vadd.f32 %v1050, %v1295
        %v1297 = vpop.f32.mrb[0].mxu0
        %v1298 = vpop.f32.mrb[0].mxu0
        %v1299 = vadd.f32 %v1050, %v1298
        %v1300 = vpop.f32.mrb[0].mxu0
        %1301 = vdwg.mxu0
        %v1302 = vmul.f32 %v1217, 0.17677669
        %v1303 = vmul.f32 %v1221, 0.17677669
        %v1304 = vmul.f32 %v1227, 0.17677669
        %v1305 = vmul.f32 %v1231, 0.17677669
        %v1306 = vmul.f32 %v1237, 0.17677669
        %v1307 = vmul.f32 %v1241, 0.17677669
        %v1308 = vpack.c.bf16 %v1303, %v1302
        %v1309 = vpack.c.bf16 %v1305, %v1304
        %v1310 = vpack.c.bf16 %v1307, %v1306
        %v1311 = vpack.c.bf16 %v1223, %v1219
        %v1312 = vpack.c.bf16 %v1233, %v1229
        %v1313 = vpack.c.bf16 %v1243, %v1239
        %v1314 = vpack.c.bf16 %v1283, %v1280
        %v1315 = vpack.c.bf16 %v1291, %v1288
        %v1316 = vpack.c.bf16 %v1299, %v1296
        %vm1317 = vcmask 261120
        %v1319 = vsel %vm1317, %v1308, 0
        %v1322 = vsel %vm1317, %v1309, 0
        %v1325 = vsel %vm1317, %v1310, 0
        %v1328 = vsel %vm1317, %v1311, 0
        %v1331 = vsel %vm1317, %v1312, 0
        %v1334 = vsel %vm1317, %v1313, 0
        %1336 = vmatprep.subr.bf16.mxu0 0
        %1337 = vmatpush1.bf16.xpose.msra.mxu0 %v1328
        %1338 = vmatprep.subr.bf16.mxu0 0
        %1339 = vmatpush1.bf16.xpose.msra.mxu0 %v1331
        %1340 = vmatprep.subr.bf16.mxu0 0
        %1341 = vmatpush1.bf16.xpose.msra.mxu0 %v1334
        %1342 = vmatprep.subr.bf16.mxu0 0
        %1343 = vmatpush1.bf16.xpose.msra.mxu0 0
        %1344 = vmatprep.subr.bf16.mxu0 0
        %1345 = vmatpush1.bf16.xpose.msra.mxu0 0
        %1346 = vmatprep.subr.bf16.mxu0 0
        %1347 = vmatpush1.bf16.xpose.msra.mxu0 0
        %1348 = vmatprep.subr.bf16.mxu0 0
        %1349 = vmatpush1.bf16.xpose.msra.mxu0 0
        %1350 = vmatprep.subr.bf16.mxu0 0
        %1351 = vmatpush1.bf16.xpose.msra.mxu0 0
        %1352 = vmatprep.subr.bf16.mxu0 0
        %1353 = vmatpush1.bf16.xpose.msra.mxu0 0
        %1354 = vmatprep.subr.bf16.mxu0 0
        %1355 = vmatpush1.bf16.xpose.msra.mxu0 0
        %1356 = vmatprep.subr.bf16.mxu0 0
        %1357 = vmatpush1.bf16.xpose.msra.mxu0 0
        %1358 = vmatprep.subr.bf16.mxu0 0
        %1359 = vmatpush1.bf16.xpose.msra.mxu0 0
        %1360 = vmatprep.subr.bf16.mxu0 0
        %1361 = vmatpush1.bf16.xpose.msra.mxu0 0
        %1362 = vmatprep.subr.bf16.mxu0 0
        %1363 = vmatpush1.bf16.xpose.msra.mxu0 0
        %1364 = vmatprep.subr.bf16.mxu0 0
        %1365 = vmatpush1.bf16.xpose.msra.mxu0 0
        %1366 = vmatprep.subr.bf16.mxu0 0
        %1367 = vmatpush1.bf16.xpose.msra.mxu0 0
        %1368 = vmatprep.mubr.bf16.mxu0 0
        %1369 = vmatmul.mubr.bf16.gmra.mrb[0].mxu0 %v1319
        %v1370 = vpop.f32.mrb[0].mxu0
        %v1371 = vadd.f32 0.0, %v1370
        %v1372 = vpop.f32.mrb[0].mxu0
        %v1373 = vpop.f32.mrb[0].mxu0
        %v1374 = vadd.f32 0.0, %v1373
        %v1375 = vpop.f32.mrb[0].mxu0
        %1376 = vmatprep.mubr.bf16.mxu0 0
        %1377 = vmatmul.mubr.bf16.gmra.mrb[0].mxu0 %v1322
        %v1378 = vpop.f32.mrb[0].mxu0
        %v1379 = vadd.f32 0.0, %v1378
        %v1380 = vpop.f32.mrb[0].mxu0
        %v1381 = vpop.f32.mrb[0].mxu0
        %v1382 = vadd.f32 0.0, %v1381
        %v1383 = vpop.f32.mrb[0].mxu0
        %1384 = vmatprep.mubr.bf16.mxu0 0
        %1385 = vmatmul.mubr.bf16.gmra.mrb[0].mxu0 %v1325
        %v1386 = vpop.f32.mrb[0].mxu0
        %v1387 = vadd.f32 0.0, %v1386
        %v1388 = vpop.f32.mrb[0].mxu0
        %v1389 = vpop.f32.mrb[0].mxu0
        %v1390 = vadd.f32 0.0, %v1389
        %v1391 = vpop.f32.mrb[0].mxu0
        %1392 = vdwg.mxu0
        %vm1393 = vcmask 392192
        %v1394 = vsel %vm1393, %v1371, -inf
        %1395 = vmax.xlane.f32.xlu0 %v1394
        %v1396 = vpop.xlane.xlu0 %1395
        %v1397 = vsel %vm1393, %v1374, -inf
        %1398 = vmax.xlane.f32.xlu0 %v1397
        %v1399 = vpop.xlane.xlu0 %1398
        %v1400 = vsel %vm1393, %v1379, -inf
        %1401 = vmax.xlane.f32.xlu0 %v1400
        %v1402 = vpop.xlane.xlu0 %1401
        %v1403 = vsel %vm1393, %v1382, -inf
        %1404 = vmax.xlane.f32.xlu0 %v1403
        %v1405 = vpop.xlane.xlu0 %1404
        %v1406 = vsel %vm1393, %v1387, -inf
        %1407 = vmax.xlane.f32.xlu0 %v1406
        %v1408 = vpop.xlane.xlu0 %1407
        %v1409 = vsel %vm1393, %v1390, -inf
        %1410 = vmax.xlane.f32.xlu0 %v1409
        %v1411 = vpop.xlane.xlu0 %1410
        %v1412 = vsub.f32 %v1371, %v1396
        %v1413 = vsub.f32 %v1374, %v1399
        %v1414 = vsub.f32 %v1379, %v1402
        %v1415 = vsub.f32 %v1382, %v1405
        %v1416 = vsub.f32 %v1387, %v1408
        %v1417 = vsub.f32 %v1390, %v1411
        %v1418 = vmul.f32 %v1412, 1.442695
        %v1419 = vpow.pop %v1418
        %v1420 = vmul.f32 %v1413, 1.442695
        %v1421 = vpow.pop %v1420
        %v1422 = vmul.f32 %v1414, 1.442695
        %v1423 = vpow.pop %v1422
        %v1424 = vmul.f32 %v1415, 1.442695
        %v1425 = vpow.pop %v1424
        %v1426 = vmul.f32 %v1416, 1.442695
        %v1427 = vpow.pop %v1426
        %v1428 = vmul.f32 %v1417, 1.442695
        %v1429 = vpow.pop %v1428
        %v1430 = vsel %vm1393, %v1419, 0.0
        %1431 = vadd.xlane.f32.xlu0 %v1430
        %v1432 = vpop.xlane.xlu0 %1431
        %v1433 = vsel %vm1393, %v1421, 0.0
        %1434 = vadd.xlane.f32.xlu0 %v1433
        %v1435 = vpop.xlane.xlu0 %1434
        %v1436 = vsel %vm1393, %v1423, 0.0
        %1437 = vadd.xlane.f32.xlu0 %v1436
        %v1438 = vpop.xlane.xlu0 %1437
        %v1439 = vsel %vm1393, %v1425, 0.0
        %1440 = vadd.xlane.f32.xlu0 %v1439
        %v1441 = vpop.xlane.xlu0 %1440
        %v1442 = vsel %vm1393, %v1427, 0.0
        %1443 = vadd.xlane.f32.xlu0 %v1442
        %v1444 = vpop.xlane.xlu0 %1443
        %v1445 = vsel %vm1393, %v1429, 0.0
        %1446 = vadd.xlane.f32.xlu0 %v1445
        %v1447 = vpop.xlane.xlu0 %1446
        %v1448 = vrcp.pop %v1432
        %v1449 = vrcp.pop %v1435
        %v1450 = vrcp.pop %v1438
        %v1451 = vrcp.pop %v1441
        %v1452 = vrcp.pop %v1444
        %v1453 = vrcp.pop %v1447
        %v1454 = vmul.f32 %v1419, %v1448
        %v1455 = vmul.f32 %v1421, %v1449
        %v1456 = vmul.f32 %v1423, %v1450
        %v1457 = vmul.f32 %v1425, %v1451
        %v1458 = vmul.f32 %v1427, %v1452
        %v1459 = vmul.f32 %v1429, %v1453
        %v1460 = vpack.c.bf16 %v1455, %v1454
        %v1461 = vpack.c.bf16 %v1457, %v1456
        %v1462 = vpack.c.bf16 %v1459, %v1458
        %v1464 = vsel %vm1393, %v1460, 0
        %v1467 = vsel %vm1393, %v1461, 0
        %v1470 = vsel %vm1393, %v1462, 0
        %1472 = vmatprep.subr.bf16.mxu0 0
        %1473 = vmatpush1.bf16.msra.mxu0 %v1314
        %1474 = vmatprep.subr.bf16.mxu0 0
        %1475 = vmatpush1.bf16.msra.mxu0 %v1315
        %1476 = vmatprep.subr.bf16.mxu0 0
        %1477 = vmatpush1.bf16.msra.mxu0 %v1316
        %1478 = vmatprep.subr.bf16.mxu0 0
        %1479 = vmatpush1.bf16.msra.mxu0 0
        %1480 = vmatprep.subr.bf16.mxu0 0
        %1481 = vmatpush1.bf16.msra.mxu0 0
        %1482 = vmatprep.subr.bf16.mxu0 0
        %1483 = vmatpush1.bf16.msra.mxu0 0
        %1484 = vmatprep.subr.bf16.mxu0 0
        %1485 = vmatpush1.bf16.msra.mxu0 0
        %1486 = vmatprep.subr.bf16.mxu0 0
        %1487 = vmatpush1.bf16.msra.mxu0 0
        %1488 = vmatprep.subr.bf16.mxu0 0
        %1489 = vmatpush1.bf16.msra.mxu0 0
        %1490 = vmatprep.subr.bf16.mxu0 0
        %1491 = vmatpush1.bf16.msra.mxu0 0
        %1492 = vmatprep.subr.bf16.mxu0 0
        %1493 = vmatpush1.bf16.msra.mxu0 0
        %1494 = vmatprep.subr.bf16.mxu0 0
        %1495 = vmatpush1.bf16.msra.mxu0 0
        %1496 = vmatprep.subr.bf16.mxu0 0
        %1497 = vmatpush1.bf16.msra.mxu0 0
        %1498 = vmatprep.subr.bf16.mxu0 0
        %1499 = vmatpush1.bf16.msra.mxu0 0
        %1500 = vmatprep.subr.bf16.mxu0 0
        %1501 = vmatpush1.bf16.msra.mxu0 0
        %1502 = vmatprep.subr.bf16.mxu0 0
        %1503 = vmatpush1.bf16.msra.mxu0 0
        %1504 = vmatprep.mubr.bf16.mxu0 0
        %1505 = vmatmul.mubr.bf16.gmra.mrb[0].mxu0 %v1464
        %v1506 = vpop.f32.mrb[0].mxu0
        %v1507 = vadd.f32 0.0, %v1506
        %v1508 = vpop.f32.mrb[0].mxu0
        %v1509 = vpop.f32.mrb[0].mxu0
        %v1510 = vadd.f32 0.0, %v1509
        %v1511 = vpop.f32.mrb[0].mxu0
        %1512 = vmatprep.mubr.bf16.mxu0 0
        %1513 = vmatmul.mubr.bf16.gmra.mrb[0].mxu0 %v1467
        %v1514 = vpop.f32.mrb[0].mxu0
        %v1515 = vadd.f32 0.0, %v1514
        %v1516 = vpop.f32.mrb[0].mxu0
        %v1517 = vpop.f32.mrb[0].mxu0
        %v1518 = vadd.f32 0.0, %v1517
        %v1519 = vpop.f32.mrb[0].mxu0
        %1520 = vmatprep.mubr.bf16.mxu0 0
        %1521 = vmatmul.mubr.bf16.gmra.mrb[0].mxu0 %v1470
        %v1522 = vpop.f32.mrb[0].mxu0
        %v1523 = vadd.f32 0.0, %v1522
        %v1524 = vpop.f32.mrb[0].mxu0
        %v1525 = vpop.f32.mrb[0].mxu0
        %v1526 = vadd.f32 0.0, %v1525
        %v1527 = vpop.f32.mrb[0].mxu0
        %1528 = vdwg.mxu0
        %1532 = vrot.lane.b32.xlu0 %v1308, 96
        %v1533 = vpop.permute.xlu0 %1532
        %1534 = vrot.lane.b32.xlu0 %v1309, 96
        %v1535 = vpop.permute.xlu0 %1534
        %1536 = vrot.lane.b32.xlu0 %v1310, 96
        %v1537 = vpop.permute.xlu0 %1536
        %1541 = vrot.lane.b32.xlu0 %v1311, 96
        %v1542 = vpop.permute.xlu0 %1541
        %1543 = vrot.lane.b32.xlu0 %v1312, 96
        %v1544 = vpop.permute.xlu0 %1543
        %1545 = vrot.lane.b32.xlu0 %v1313, 96
        %v1546 = vpop.permute.xlu0 %1545
        %v1548 = vsel %vm1317, %v1533, 0
        %v1551 = vsel %vm1317, %v1535, 0
        %v1554 = vsel %vm1317, %v1537, 0
        %v1557 = vsel %vm1317, %v1542, 0
        %v1560 = vsel %vm1317, %v1544, 0
        %v1563 = vsel %vm1317, %v1546, 0
        %1565 = vmatprep.subr.bf16.mxu0 0
        %1566 = vmatpush1.bf16.xpose.msra.mxu0 %v1557
        %1567 = vmatprep.subr.bf16.mxu0 0
        %1568 = vmatpush1.bf16.xpose.msra.mxu0 %v1560
        %1569 = vmatprep.subr.bf16.mxu0 0
        %1570 = vmatpush1.bf16.xpose.msra.mxu0 %v1563
        %1571 = vmatprep.subr.bf16.mxu0 0
        %1572 = vmatpush1.bf16.xpose.msra.mxu0 0
        %1573 = vmatprep.subr.bf16.mxu0 0
        %1574 = vmatpush1.bf16.xpose.msra.mxu0 0
        %1575 = vmatprep.subr.bf16.mxu0 0
        %1576 = vmatpush1.bf16.xpose.msra.mxu0 0
        %1577 = vmatprep.subr.bf16.mxu0 0
        %1578 = vmatpush1.bf16.xpose.msra.mxu0 0
        %1579 = vmatprep.subr.bf16.mxu0 0
        %1580 = vmatpush1.bf16.xpose.msra.mxu0 0
        %1581 = vmatprep.subr.bf16.mxu0 0
        %1582 = vmatpush1.bf16.xpose.msra.mxu0 0
        %1583 = vmatprep.subr.bf16.mxu0 0
        %1584 = vmatpush1.bf16.xpose.msra.mxu0 0
        %1585 = vmatprep.subr.bf16.mxu0 0
        %1586 = vmatpush1.bf16.xpose.msra.mxu0 0
        %1587 = vmatprep.subr.bf16.mxu0 0
        %1588 = vmatpush1.bf16.xpose.msra.mxu0 0
        %1589 = vmatprep.subr.bf16.mxu0 0
        %1590 = vmatpush1.bf16.xpose.msra.mxu0 0
        %1591 = vmatprep.subr.bf16.mxu0 0
        %1592 = vmatpush1.bf16.xpose.msra.mxu0 0
        %1593 = vmatprep.subr.bf16.mxu0 0
        %1594 = vmatpush1.bf16.xpose.msra.mxu0 0
        %1595 = vmatprep.subr.bf16.mxu0 0
        %1596 = vmatpush1.bf16.xpose.msra.mxu0 0
        %1597 = vmatprep.mubr.bf16.mxu0 0
        %1598 = vmatmul.mubr.bf16.gmra.mrb[0].mxu0 %v1548
        %v1599 = vpop.f32.mrb[0].mxu0
        %v1600 = vadd.f32 0.0, %v1599
        %v1601 = vpop.f32.mrb[0].mxu0
        %v1602 = vpop.f32.mrb[0].mxu0
        %v1603 = vadd.f32 0.0, %v1602
        %v1604 = vpop.f32.mrb[0].mxu0
        %1605 = vmatprep.mubr.bf16.mxu0 0
        %1606 = vmatmul.mubr.bf16.gmra.mrb[0].mxu0 %v1551
        %v1607 = vpop.f32.mrb[0].mxu0
        %v1608 = vadd.f32 0.0, %v1607
        %v1609 = vpop.f32.mrb[0].mxu0
        %v1610 = vpop.f32.mrb[0].mxu0
        %v1611 = vadd.f32 0.0, %v1610
        %v1612 = vpop.f32.mrb[0].mxu0
        %1613 = vmatprep.mubr.bf16.mxu0 0
        %1614 = vmatmul.mubr.bf16.gmra.mrb[0].mxu0 %v1554
        %v1615 = vpop.f32.mrb[0].mxu0
        %v1616 = vadd.f32 0.0, %v1615
        %v1617 = vpop.f32.mrb[0].mxu0
        %v1618 = vpop.f32.mrb[0].mxu0
        %v1619 = vadd.f32 0.0, %v1618
        %v1620 = vpop.f32.mrb[0].mxu0
        %1621 = vdwg.mxu0
        %v1622 = vsel %vm1393, %v1600, -inf
        %1623 = vmax.xlane.f32.xlu0 %v1622
        %v1624 = vpop.xlane.xlu0 %1623
        %v1625 = vsel %vm1393, %v1603, -inf
        %1626 = vmax.xlane.f32.xlu0 %v1625
        %v1627 = vpop.xlane.xlu0 %1626
        %v1628 = vsel %vm1393, %v1608, -inf
        %1629 = vmax.xlane.f32.xlu0 %v1628
        %v1630 = vpop.xlane.xlu0 %1629
        %v1631 = vsel %vm1393, %v1611, -inf
        %1632 = vmax.xlane.f32.xlu0 %v1631
        %v1633 = vpop.xlane.xlu0 %1632
        %v1634 = vsel %vm1393, %v1616, -inf
        %1635 = vmax.xlane.f32.xlu0 %v1634
        %v1636 = vpop.xlane.xlu0 %1635
        %v1637 = vsel %vm1393, %v1619, -inf
        %1638 = vmax.xlane.f32.xlu0 %v1637
        %v1639 = vpop.xlane.xlu0 %1638
        %v1640 = vsub.f32 %v1600, %v1624
        %v1641 = vsub.f32 %v1603, %v1627
        %v1642 = vsub.f32 %v1608, %v1630
        %v1643 = vsub.f32 %v1611, %v1633
        %v1644 = vsub.f32 %v1616, %v1636
        %v1645 = vsub.f32 %v1619, %v1639
        %v1646 = vmul.f32 %v1640, 1.442695
        %v1647 = vpow.pop %v1646
        %v1648 = vmul.f32 %v1641, 1.442695
        %v1649 = vpow.pop %v1648
        %v1650 = vmul.f32 %v1642, 1.442695
        %v1651 = vpow.pop %v1650
        %v1652 = vmul.f32 %v1643, 1.442695
        %v1653 = vpow.pop %v1652
        %v1654 = vmul.f32 %v1644, 1.442695
        %v1655 = vpow.pop %v1654
        %v1656 = vmul.f32 %v1645, 1.442695
        %v1657 = vpow.pop %v1656
        %v1658 = vsel %vm1393, %v1647, 0.0
        %1659 = vadd.xlane.f32.xlu0 %v1658
        %v1660 = vpop.xlane.xlu0 %1659
        %v1661 = vsel %vm1393, %v1649, 0.0
        %1662 = vadd.xlane.f32.xlu0 %v1661
        %v1663 = vpop.xlane.xlu0 %1662
        %v1664 = vsel %vm1393, %v1651, 0.0
        %1665 = vadd.xlane.f32.xlu0 %v1664
        %v1666 = vpop.xlane.xlu0 %1665
        %v1667 = vsel %vm1393, %v1653, 0.0
        %1668 = vadd.xlane.f32.xlu0 %v1667
        %v1669 = vpop.xlane.xlu0 %1668
        %v1670 = vsel %vm1393, %v1655, 0.0
        %1671 = vadd.xlane.f32.xlu0 %v1670
        %v1672 = vpop.xlane.xlu0 %1671
        %v1673 = vsel %vm1393, %v1657, 0.0
        %1674 = vadd.xlane.f32.xlu0 %v1673
        %v1675 = vpop.xlane.xlu0 %1674
        %v1676 = vrcp.pop %v1660
        %v1677 = vrcp.pop %v1663
        %v1678 = vrcp.pop %v1666
        %v1679 = vrcp.pop %v1669
        %v1680 = vrcp.pop %v1672
        %v1681 = vrcp.pop %v1675
        %v1682 = vmul.f32 %v1647, %v1676
        %v1683 = vmul.f32 %v1649, %v1677
        %v1684 = vmul.f32 %v1651, %v1678
        %v1685 = vmul.f32 %v1653, %v1679
        %v1686 = vmul.f32 %v1655, %v1680
        %v1687 = vmul.f32 %v1657, %v1681
        %v1688 = vpack.c.bf16 %v1683, %v1682
        %v1689 = vpack.c.bf16 %v1685, %v1684
        %v1690 = vpack.c.bf16 %v1687, %v1686
        %1694 = vrot.lane.b32.xlu0 %v1314, 96
        %v1695 = vpop.permute.xlu0 %1694
        %1696 = vrot.lane.b32.xlu0 %v1315, 96
        %v1697 = vpop.permute.xlu0 %1696
        %1698 = vrot.lane.b32.xlu0 %v1316, 96
        %v1699 = vpop.permute.xlu0 %1698
        %v1704 = vsel %vm1393, %v1688, 0
        %v1707 = vsel %vm1393, %v1689, 0
        %v1710 = vsel %vm1393, %v1690, 0
        %1712 = vmatprep.subr.bf16.mxu0 0
        %1713 = vmatpush1.bf16.msra.mxu0 %v1695
        %1714 = vmatprep.subr.bf16.mxu0 0
        %1715 = vmatpush1.bf16.msra.mxu0 %v1697
        %1716 = vmatprep.subr.bf16.mxu0 0
        %1717 = vmatpush1.bf16.msra.mxu0 %v1699
        %1718 = vmatprep.subr.bf16.mxu0 0
        %1719 = vmatpush1.bf16.msra.mxu0 0
        %1720 = vmatprep.subr.bf16.mxu0 0
        %1721 = vmatpush1.bf16.msra.mxu0 0
        %1722 = vmatprep.subr.bf16.mxu0 0
        %1723 = vmatpush1.bf16.msra.mxu0 0
        %1724 = vmatprep.subr.bf16.mxu0 0
        %1725 = vmatpush1.bf16.msra.mxu0 0
        %1726 = vmatprep.subr.bf16.mxu0 0
        %1727 = vmatpush1.bf16.msra.mxu0 0
        %1728 = vmatprep.subr.bf16.mxu0 0
        %1729 = vmatpush1.bf16.msra.mxu0 0
        %1730 = vmatprep.subr.bf16.mxu0 0
        %1731 = vmatpush1.bf16.msra.mxu0 0
        %1732 = vmatprep.subr.bf16.mxu0 0
        %1733 = vmatpush1.bf16.msra.mxu0 0
        %1734 = vmatprep.subr.bf16.mxu0 0
        %1735 = vmatpush1.bf16.msra.mxu0 0
        %1736 = vmatprep.subr.bf16.mxu0 0
        %1737 = vmatpush1.bf16.msra.mxu0 0
        %1738 = vmatprep.subr.bf16.mxu0 0
        %1739 = vmatpush1.bf16.msra.mxu0 0
        %1740 = vmatprep.subr.bf16.mxu0 0
        %1741 = vmatpush1.bf16.msra.mxu0 0
        %1742 = vmatprep.subr.bf16.mxu0 0
        %1743 = vmatpush1.bf16.msra.mxu0 0
        %1744 = vmatprep.mubr.bf16.mxu0 0
        %1745 = vmatmul.mubr.bf16.gmra.mrb[0].mxu0 %v1704
        %v1746 = vpop.f32.mrb[0].mxu0
        %v1747 = vadd.f32 0.0, %v1746
        %v1748 = vpop.f32.mrb[0].mxu0
        %v1749 = vpop.f32.mrb[0].mxu0
        %v1750 = vadd.f32 0.0, %v1749
        %v1751 = vpop.f32.mrb[0].mxu0
        %1752 = vmatprep.mubr.bf16.mxu0 0
        %1753 = vmatmul.mubr.bf16.gmra.mrb[0].mxu0 %v1707
        %v1754 = vpop.f32.mrb[0].mxu0
        %v1755 = vadd.f32 0.0, %v1754
        %v1756 = vpop.f32.mrb[0].mxu0
        %v1757 = vpop.f32.mrb[0].mxu0
        %v1758 = vadd.f32 0.0, %v1757
        %v1759 = vpop.f32.mrb[0].mxu0
        %1760 = vmatprep.mubr.bf16.mxu0 0
        %1761 = vmatmul.mubr.bf16.gmra.mrb[0].mxu0 %v1710
        %v1762 = vpop.f32.mrb[0].mxu0
        %v1763 = vadd.f32 0.0, %v1762
        %v1764 = vpop.f32.mrb[0].mxu0
        %v1765 = vpop.f32.mrb[0].mxu0
        %v1766 = vadd.f32 0.0, %v1765
        %v1767 = vpop.f32.mrb[0].mxu0
        %1768 = vdwg.mxu0
        %1769 = vrot.lane.b32.xlu0 %v1308, 64
        %v1770 = vpop.permute.xlu0 %1769
        %1771 = vrot.lane.b32.xlu0 %v1309, 64
        %v1772 = vpop.permute.xlu0 %1771
        %1773 = vrot.lane.b32.xlu0 %v1310, 64
        %v1774 = vpop.permute.xlu0 %1773
        %1775 = vrot.lane.b32.xlu0 %v1311, 64
        %v1776 = vpop.permute.xlu0 %1775
        %1777 = vrot.lane.b32.xlu0 %v1312, 64
        %v1778 = vpop.permute.xlu0 %1777
        %1779 = vrot.lane.b32.xlu0 %v1313, 64
        %v1780 = vpop.permute.xlu0 %1779
        %v1782 = vsel %vm1317, %v1770, 0
        %v1785 = vsel %vm1317, %v1772, 0
        %v1788 = vsel %vm1317, %v1774, 0
        %v1791 = vsel %vm1317, %v1776, 0
        %v1794 = vsel %vm1317, %v1778, 0
        %v1797 = vsel %vm1317, %v1780, 0
        %1799 = vmatprep.subr.bf16.mxu0 0
        %1800 = vmatpush1.bf16.xpose.msra.mxu0 %v1791
        %1801 = vmatprep.subr.bf16.mxu0 0
        %1802 = vmatpush1.bf16.xpose.msra.mxu0 %v1794
        %1803 = vmatprep.subr.bf16.mxu0 0
        %1804 = vmatpush1.bf16.xpose.msra.mxu0 %v1797
        %1805 = vmatprep.subr.bf16.mxu0 0
        %1806 = vmatpush1.bf16.xpose.msra.mxu0 0
        %1807 = vmatprep.subr.bf16.mxu0 0
        %1808 = vmatpush1.bf16.xpose.msra.mxu0 0
        %1809 = vmatprep.subr.bf16.mxu0 0
        %1810 = vmatpush1.bf16.xpose.msra.mxu0 0
        %1811 = vmatprep.subr.bf16.mxu0 0
        %1812 = vmatpush1.bf16.xpose.msra.mxu0 0
        %1813 = vmatprep.subr.bf16.mxu0 0
        %1814 = vmatpush1.bf16.xpose.msra.mxu0 0
        %1815 = vmatprep.subr.bf16.mxu0 0
        %1816 = vmatpush1.bf16.xpose.msra.mxu0 0
        %1817 = vmatprep.subr.bf16.mxu0 0
        %1818 = vmatpush1.bf16.xpose.msra.mxu0 0
        %1819 = vmatprep.subr.bf16.mxu0 0
        %1820 = vmatpush1.bf16.xpose.msra.mxu0 0
        %1821 = vmatprep.subr.bf16.mxu0 0
        %1822 = vmatpush1.bf16.xpose.msra.mxu0 0
        %1823 = vmatprep.subr.bf16.mxu0 0
        %1824 = vmatpush1.bf16.xpose.msra.mxu0 0
        %1825 = vmatprep.subr.bf16.mxu0 0
        %1826 = vmatpush1.bf16.xpose.msra.mxu0 0
        %1827 = vmatprep.subr.bf16.mxu0 0
        %1828 = vmatpush1.bf16.xpose.msra.mxu0 0
        %1829 = vmatprep.subr.bf16.mxu0 0
        %1830 = vmatpush1.bf16.xpose.msra.mxu0 0
        %1831 = vmatprep.mubr.bf16.mxu0 0
        %1832 = vmatmul.mubr.bf16.gmra.mrb[0].mxu0 %v1782
        %v1833 = vpop.f32.mrb[0].mxu0
        %v1834 = vadd.f32 0.0, %v1833
        %v1835 = vpop.f32.mrb[0].mxu0
        %v1836 = vpop.f32.mrb[0].mxu0
        %v1837 = vadd.f32 0.0, %v1836
        %v1838 = vpop.f32.mrb[0].mxu0
        %1839 = vmatprep.mubr.bf16.mxu0 0
        %1840 = vmatmul.mubr.bf16.gmra.mrb[0].mxu0 %v1785
        %v1841 = vpop.f32.mrb[0].mxu0
        %v1842 = vadd.f32 0.0, %v1841
        %v1843 = vpop.f32.mrb[0].mxu0
        %v1844 = vpop.f32.mrb[0].mxu0
        %v1845 = vadd.f32 0.0, %v1844
        %v1846 = vpop.f32.mrb[0].mxu0
        %1847 = vmatprep.mubr.bf16.mxu0 0
        %1848 = vmatmul.mubr.bf16.gmra.mrb[0].mxu0 %v1788
        %v1849 = vpop.f32.mrb[0].mxu0
        %v1850 = vadd.f32 0.0, %v1849
        %v1851 = vpop.f32.mrb[0].mxu0
        %v1852 = vpop.f32.mrb[0].mxu0
        %v1853 = vadd.f32 0.0, %v1852
        %v1854 = vpop.f32.mrb[0].mxu0
        %1855 = vdwg.mxu0
        %v1856 = vsel %vm1393, %v1834, -inf
        %1857 = vmax.xlane.f32.xlu0 %v1856
        %v1858 = vpop.xlane.xlu0 %1857
        %v1859 = vsel %vm1393, %v1837, -inf
        %1860 = vmax.xlane.f32.xlu0 %v1859
        %v1861 = vpop.xlane.xlu0 %1860
        %v1862 = vsel %vm1393, %v1842, -inf
        %1863 = vmax.xlane.f32.xlu0 %v1862
        %v1864 = vpop.xlane.xlu0 %1863
        %v1865 = vsel %vm1393, %v1845, -inf
        %1866 = vmax.xlane.f32.xlu0 %v1865
        %v1867 = vpop.xlane.xlu0 %1866
        %v1868 = vsel %vm1393, %v1850, -inf
        %1869 = vmax.xlane.f32.xlu0 %v1868
        %v1870 = vpop.xlane.xlu0 %1869
        %v1871 = vsel %vm1393, %v1853, -inf
        %1872 = vmax.xlane.f32.xlu0 %v1871
        %v1873 = vpop.xlane.xlu0 %1872
        %v1874 = vsub.f32 %v1834, %v1858
        %v1875 = vsub.f32 %v1837, %v1861
        %v1876 = vsub.f32 %v1842, %v1864
        %v1877 = vsub.f32 %v1845, %v1867
        %v1878 = vsub.f32 %v1850, %v1870
        %v1879 = vsub.f32 %v1853, %v1873
        %v1880 = vmul.f32 %v1874, 1.442695
        %v1881 = vpow.pop %v1880
        %v1882 = vmul.f32 %v1875, 1.442695
        %v1883 = vpow.pop %v1882
        %v1884 = vmul.f32 %v1876, 1.442695
        %v1885 = vpow.pop %v1884
        %v1886 = vmul.f32 %v1877, 1.442695
        %v1887 = vpow.pop %v1886
        %v1888 = vmul.f32 %v1878, 1.442695
        %v1889 = vpow.pop %v1888
        %v1890 = vmul.f32 %v1879, 1.442695
        %v1891 = vpow.pop %v1890
        %v1892 = vsel %vm1393, %v1881, 0.0
        %1893 = vadd.xlane.f32.xlu0 %v1892
        %v1894 = vpop.xlane.xlu0 %1893
        %v1895 = vsel %vm1393, %v1883, 0.0
        %1896 = vadd.xlane.f32.xlu0 %v1895
        %v1897 = vpop.xlane.xlu0 %1896
        %v1898 = vsel %vm1393, %v1885, 0.0
        %1899 = vadd.xlane.f32.xlu0 %v1898
        %v1900 = vpop.xlane.xlu0 %1899
        %v1901 = vsel %vm1393, %v1887, 0.0
        %1902 = vadd.xlane.f32.xlu0 %v1901
        %v1903 = vpop.xlane.xlu0 %1902
        %v1904 = vsel %vm1393, %v1889, 0.0
        %1905 = vadd.xlane.f32.xlu0 %v1904
        %v1906 = vpop.xlane.xlu0 %1905
        %v1907 = vsel %vm1393, %v1891, 0.0
        %1908 = vadd.xlane.f32.xlu0 %v1907
        %v1909 = vpop.xlane.xlu0 %1908
        %v1910 = vrcp.pop %v1894
        %v1911 = vrcp.pop %v1897
        %v1912 = vrcp.pop %v1900
        %v1913 = vrcp.pop %v1903
        %v1914 = vrcp.pop %v1906
        %v1915 = vrcp.pop %v1909
        %v1916 = vmul.f32 %v1881, %v1910
        %v1917 = vmul.f32 %v1883, %v1911
        %v1918 = vmul.f32 %v1885, %v1912
        %v1919 = vmul.f32 %v1887, %v1913
        %v1920 = vmul.f32 %v1889, %v1914
        %v1921 = vmul.f32 %v1891, %v1915
        %v1922 = vpack.c.bf16 %v1917, %v1916
        %v1923 = vpack.c.bf16 %v1919, %v1918
        %v1924 = vpack.c.bf16 %v1921, %v1920
        %1925 = vrot.lane.b32.xlu0 %v1314, 64
        %v1926 = vpop.permute.xlu0 %1925
        %1927 = vrot.lane.b32.xlu0 %v1315, 64
        %v1928 = vpop.permute.xlu0 %1927
        %1929 = vrot.lane.b32.xlu0 %v1316, 64
        %v1930 = vpop.permute.xlu0 %1929
        %v1935 = vsel %vm1393, %v1922, 0
        %v1938 = vsel %vm1393, %v1923, 0
        %v1941 = vsel %vm1393, %v1924, 0
        %1943 = vmatprep.subr.bf16.mxu0 0
        %1944 = vmatpush1.bf16.msra.mxu0 %v1926
        %1945 = vmatprep.subr.bf16.mxu0 0
        %1946 = vmatpush1.bf16.msra.mxu0 %v1928
        %1947 = vmatprep.subr.bf16.mxu0 0
        %1948 = vmatpush1.bf16.msra.mxu0 %v1930
        %1949 = vmatprep.subr.bf16.mxu0 0
        %1950 = vmatpush1.bf16.msra.mxu0 0
        %1951 = vmatprep.subr.bf16.mxu0 0
        %1952 = vmatpush1.bf16.msra.mxu0 0
        %1953 = vmatprep.subr.bf16.mxu0 0
        %1954 = vmatpush1.bf16.msra.mxu0 0
        %1955 = vmatprep.subr.bf16.mxu0 0
        %1956 = vmatpush1.bf16.msra.mxu0 0
        %1957 = vmatprep.subr.bf16.mxu0 0
        %1958 = vmatpush1.bf16.msra.mxu0 0
        %1959 = vmatprep.subr.bf16.mxu0 0
        %1960 = vmatpush1.bf16.msra.mxu0 0
        %1961 = vmatprep.subr.bf16.mxu0 0
        %1962 = vmatpush1.bf16.msra.mxu0 0
        %1963 = vmatprep.subr.bf16.mxu0 0
        %1964 = vmatpush1.bf16.msra.mxu0 0
        %1965 = vmatprep.subr.bf16.mxu0 0
        %1966 = vmatpush1.bf16.msra.mxu0 0
        %1967 = vmatprep.subr.bf16.mxu0 0
        %1968 = vmatpush1.bf16.msra.mxu0 0
        %1969 = vmatprep.subr.bf16.mxu0 0
        %1970 = vmatpush1.bf16.msra.mxu0 0
        %1971 = vmatprep.subr.bf16.mxu0 0
        %1972 = vmatpush1.bf16.msra.mxu0 0
        %1973 = vmatprep.subr.bf16.mxu0 0
        %1974 = vmatpush1.bf16.msra.mxu0 0
        %1975 = vmatprep.mubr.bf16.mxu0 0
        %1976 = vmatmul.mubr.bf16.gmra.mrb[0].mxu0 %v1935
        %v1977 = vpop.f32.mrb[0].mxu0
        %v1978 = vadd.f32 0.0, %v1977
        %v1979 = vpop.f32.mrb[0].mxu0
        %v1980 = vpop.f32.mrb[0].mxu0
        %v1981 = vadd.f32 0.0, %v1980
        %v1982 = vpop.f32.mrb[0].mxu0
        %1983 = vmatprep.mubr.bf16.mxu0 0
        %1984 = vmatmul.mubr.bf16.gmra.mrb[0].mxu0 %v1938
        %v1985 = vpop.f32.mrb[0].mxu0
        %v1986 = vadd.f32 0.0, %v1985
        %v1987 = vpop.f32.mrb[0].mxu0
        %v1988 = vpop.f32.mrb[0].mxu0
        %v1989 = vadd.f32 0.0, %v1988
        %v1990 = vpop.f32.mrb[0].mxu0
        %1991 = vmatprep.mubr.bf16.mxu0 0
        %1992 = vmatmul.mubr.bf16.gmra.mrb[0].mxu0 %v1941
        %v1993 = vpop.f32.mrb[0].mxu0
        %v1994 = vadd.f32 0.0, %v1993
        %v1995 = vpop.f32.mrb[0].mxu0
        %v1996 = vpop.f32.mrb[0].mxu0
        %v1997 = vadd.f32 0.0, %v1996
        %v1998 = vpop.f32.mrb[0].mxu0
        %1999 = vdwg.mxu0
        %2000 = vrot.lane.b32.xlu0 %v1308, 32
        %v2001 = vpop.permute.xlu0 %2000
        %2002 = vrot.lane.b32.xlu0 %v1309, 32
        %v2003 = vpop.permute.xlu0 %2002
        %2004 = vrot.lane.b32.xlu0 %v1310, 32
        %v2005 = vpop.permute.xlu0 %2004
        %2006 = vrot.lane.b32.xlu0 %v1311, 32
        %v2007 = vpop.permute.xlu0 %2006
        %2008 = vrot.lane.b32.xlu0 %v1312, 32
        %v2009 = vpop.permute.xlu0 %2008
        %2010 = vrot.lane.b32.xlu0 %v1313, 32
        %v2011 = vpop.permute.xlu0 %2010
        %v2013 = vsel %vm1317, %v2001, 0
        %v2016 = vsel %vm1317, %v2003, 0
        %v2019 = vsel %vm1317, %v2005, 0
        %v2022 = vsel %vm1317, %v2007, 0
        %v2025 = vsel %vm1317, %v2009, 0
        %v2028 = vsel %vm1317, %v2011, 0
        %2030 = vmatprep.subr.bf16.mxu0 0
        %2031 = vmatpush1.bf16.xpose.msra.mxu0 %v2022
        %2032 = vmatprep.subr.bf16.mxu0 0
        %2033 = vmatpush1.bf16.xpose.msra.mxu0 %v2025
        %2034 = vmatprep.subr.bf16.mxu0 0
        %2035 = vmatpush1.bf16.xpose.msra.mxu0 %v2028
        %2036 = vmatprep.subr.bf16.mxu0 0
        %2037 = vmatpush1.bf16.xpose.msra.mxu0 0
        %2038 = vmatprep.subr.bf16.mxu0 0
        %2039 = vmatpush1.bf16.xpose.msra.mxu0 0
        %2040 = vmatprep.subr.bf16.mxu0 0
        %2041 = vmatpush1.bf16.xpose.msra.mxu0 0
        %2042 = vmatprep.subr.bf16.mxu0 0
        %2043 = vmatpush1.bf16.xpose.msra.mxu0 0
        %2044 = vmatprep.subr.bf16.mxu0 0
        %2045 = vmatpush1.bf16.xpose.msra.mxu0 0
        %2046 = vmatprep.subr.bf16.mxu0 0
        %2047 = vmatpush1.bf16.xpose.msra.mxu0 0
        %2048 = vmatprep.subr.bf16.mxu0 0
        %2049 = vmatpush1.bf16.xpose.msra.mxu0 0
        %2050 = vmatprep.subr.bf16.mxu0 0
        %2051 = vmatpush1.bf16.xpose.msra.mxu0 0
        %2052 = vmatprep.subr.bf16.mxu0 0
        %2053 = vmatpush1.bf16.xpose.msra.mxu0 0
        %2054 = vmatprep.subr.bf16.mxu0 0
        %2055 = vmatpush1.bf16.xpose.msra.mxu0 0
        %2056 = vmatprep.subr.bf16.mxu0 0
        %2057 = vmatpush1.bf16.xpose.msra.mxu0 0
        %2058 = vmatprep.subr.bf16.mxu0 0
        %2059 = vmatpush1.bf16.xpose.msra.mxu0 0
        %2060 = vmatprep.subr.bf16.mxu0 0
        %2061 = vmatpush1.bf16.xpose.msra.mxu0 0
        %2062 = vmatprep.mubr.bf16.mxu0 0
        %2063 = vmatmul.mubr.bf16.gmra.mrb[0].mxu0 %v2013
        %v2064 = vpop.f32.mrb[0].mxu0
        %v2065 = vadd.f32 0.0, %v2064
        %v2066 = vpop.f32.mrb[0].mxu0
        %v2067 = vpop.f32.mrb[0].mxu0
        %v2068 = vadd.f32 0.0, %v2067
        %v2069 = vpop.f32.mrb[0].mxu0
        %2070 = vmatprep.mubr.bf16.mxu0 0
        %2071 = vmatmul.mubr.bf16.gmra.mrb[0].mxu0 %v2016
        %v2072 = vpop.f32.mrb[0].mxu0
        %v2073 = vadd.f32 0.0, %v2072
        %v2074 = vpop.f32.mrb[0].mxu0
        %v2075 = vpop.f32.mrb[0].mxu0
        %v2076 = vadd.f32 0.0, %v2075
        %v2077 = vpop.f32.mrb[0].mxu0
        %2078 = vmatprep.mubr.bf16.mxu0 0
        %2079 = vmatmul.mubr.bf16.gmra.mrb[0].mxu0 %v2019
        %v2080 = vpop.f32.mrb[0].mxu0
        %v2081 = vadd.f32 0.0, %v2080
        %v2082 = vpop.f32.mrb[0].mxu0
        %v2083 = vpop.f32.mrb[0].mxu0
        %v2084 = vadd.f32 0.0, %v2083
        %v2085 = vpop.f32.mrb[0].mxu0
        %2086 = vdwg.mxu0
        %v2087 = vsel %vm1393, %v2065, -inf
        %2088 = vmax.xlane.f32.xlu0 %v2087
        %v2089 = vpop.xlane.xlu0 %2088
        %v2090 = vsel %vm1393, %v2068, -inf
        %2091 = vmax.xlane.f32.xlu0 %v2090
        %v2092 = vpop.xlane.xlu0 %2091
        %v2093 = vsel %vm1393, %v2073, -inf
        %2094 = vmax.xlane.f32.xlu0 %v2093
        %v2095 = vpop.xlane.xlu0 %2094
        %v2096 = vsel %vm1393, %v2076, -inf
        %2097 = vmax.xlane.f32.xlu0 %v2096
        %v2098 = vpop.xlane.xlu0 %2097
        %v2099 = vsel %vm1393, %v2081, -inf
        %2100 = vmax.xlane.f32.xlu0 %v2099
        %v2101 = vpop.xlane.xlu0 %2100
        %v2102 = vsel %vm1393, %v2084, -inf
        %2103 = vmax.xlane.f32.xlu0 %v2102
        %v2104 = vpop.xlane.xlu0 %2103
        %v2105 = vsub.f32 %v2065, %v2089
        %v2106 = vsub.f32 %v2068, %v2092
        %v2107 = vsub.f32 %v2073, %v2095
        %v2108 = vsub.f32 %v2076, %v2098
        %v2109 = vsub.f32 %v2081, %v2101
        %v2110 = vsub.f32 %v2084, %v2104
        %v2111 = vmul.f32 %v2105, 1.442695
        %v2112 = vpow.pop %v2111
        %v2113 = vmul.f32 %v2106, 1.442695
        %v2114 = vpow.pop %v2113
        %v2115 = vmul.f32 %v2107, 1.442695
        %v2116 = vpow.pop %v2115
        %v2117 = vmul.f32 %v2108, 1.442695
        %v2118 = vpow.pop %v2117
        %v2119 = vmul.f32 %v2109, 1.442695
        %v2120 = vpow.pop %v2119
        %v2121 = vmul.f32 %v2110, 1.442695
        %v2122 = vpow.pop %v2121
        %v2123 = vsel %vm1393, %v2112, 0.0
        %2124 = vadd.xlane.f32.xlu0 %v2123
        %v2125 = vpop.xlane.xlu0 %2124
        %v2126 = vsel %vm1393, %v2114, 0.0
        %2127 = vadd.xlane.f32.xlu0 %v2126
        %v2128 = vpop.xlane.xlu0 %2127
        %v2129 = vsel %vm1393, %v2116, 0.0
        %2130 = vadd.xlane.f32.xlu0 %v2129
        %v2131 = vpop.xlane.xlu0 %2130
        %v2132 = vsel %vm1393, %v2118, 0.0
        %2133 = vadd.xlane.f32.xlu0 %v2132
        %v2134 = vpop.xlane.xlu0 %2133
        %v2135 = vsel %vm1393, %v2120, 0.0
        %2136 = vadd.xlane.f32.xlu0 %v2135
        %v2137 = vpop.xlane.xlu0 %2136
        %v2138 = vsel %vm1393, %v2122, 0.0
        %2139 = vadd.xlane.f32.xlu0 %v2138
        %v2140 = vpop.xlane.xlu0 %2139
        %v2141 = vrcp.pop %v2125
        %v2142 = vrcp.pop %v2128
        %v2143 = vrcp.pop %v2131
        %v2144 = vrcp.pop %v2134
        %v2145 = vrcp.pop %v2137
        %v2146 = vrcp.pop %v2140
        %v2147 = vmul.f32 %v2112, %v2141
        %v2148 = vmul.f32 %v2114, %v2142
        %v2149 = vmul.f32 %v2116, %v2143
        %v2150 = vmul.f32 %v2118, %v2144
        %v2151 = vmul.f32 %v2120, %v2145
        %v2152 = vmul.f32 %v2122, %v2146
        %v2153 = vpack.c.bf16 %v2148, %v2147
        %v2154 = vpack.c.bf16 %v2150, %v2149
        %v2155 = vpack.c.bf16 %v2152, %v2151
        %2156 = vrot.lane.b32.xlu0 %v1314, 32
        %v2157 = vpop.permute.xlu0 %2156
        %2158 = vrot.lane.b32.xlu0 %v1315, 32
        %v2159 = vpop.permute.xlu0 %2158
        %2160 = vrot.lane.b32.xlu0 %v1316, 32
        %v2161 = vpop.permute.xlu0 %2160
        %v2166 = vsel %vm1393, %v2153, 0
        %v2169 = vsel %vm1393, %v2154, 0
        %v2172 = vsel %vm1393, %v2155, 0
        %2174 = vmatprep.subr.bf16.mxu0 0
        %2175 = vmatpush1.bf16.msra.mxu0 %v2157
        %2176 = vmatprep.subr.bf16.mxu0 0
        %2177 = vmatpush1.bf16.msra.mxu0 %v2159
        %2178 = vmatprep.subr.bf16.mxu0 0
        %2179 = vmatpush1.bf16.msra.mxu0 %v2161
        %2180 = vmatprep.subr.bf16.mxu0 0
        %2181 = vmatpush1.bf16.msra.mxu0 0
        %2182 = vmatprep.subr.bf16.mxu0 0
        %2183 = vmatpush1.bf16.msra.mxu0 0
        %2184 = vmatprep.subr.bf16.mxu0 0
        %2185 = vmatpush1.bf16.msra.mxu0 0
        %2186 = vmatprep.subr.bf16.mxu0 0
        %2187 = vmatpush1.bf16.msra.mxu0 0
        %2188 = vmatprep.subr.bf16.mxu0 0
        %2189 = vmatpush1.bf16.msra.mxu0 0
        %2190 = vmatprep.subr.bf16.mxu0 0
        %2191 = vmatpush1.bf16.msra.mxu0 0
        %2192 = vmatprep.subr.bf16.mxu0 0
        %2193 = vmatpush1.bf16.msra.mxu0 0
        %2194 = vmatprep.subr.bf16.mxu0 0
        %2195 = vmatpush1.bf16.msra.mxu0 0
        %2196 = vmatprep.subr.bf16.mxu0 0
        %2197 = vmatpush1.bf16.msra.mxu0 0
        %2198 = vmatprep.subr.bf16.mxu0 0
        %2199 = vmatpush1.bf16.msra.mxu0 0
        %2200 = vmatprep.subr.bf16.mxu0 0
        %2201 = vmatpush1.bf16.msra.mxu0 0
        %2202 = vmatprep.subr.bf16.mxu0 0
        %2203 = vmatpush1.bf16.msra.mxu0 0
        %2204 = vmatprep.subr.bf16.mxu0 0
        %2205 = vmatpush1.bf16.msra.mxu0 0
        %2206 = vmatprep.mubr.bf16.mxu0 0
        %2207 = vmatmul.mubr.bf16.gmra.mrb[0].mxu0 %v2166
        %v2208 = vpop.f32.mrb[0].mxu0
        %v2209 = vadd.f32 0.0, %v2208
        %v2210 = vpop.f32.mrb[0].mxu0
        %v2211 = vpop.f32.mrb[0].mxu0
        %v2212 = vadd.f32 0.0, %v2211
        %v2213 = vpop.f32.mrb[0].mxu0
        %2214 = vmatprep.mubr.bf16.mxu0 0
        %2215 = vmatmul.mubr.bf16.gmra.mrb[0].mxu0 %v2169
        %v2216 = vpop.f32.mrb[0].mxu0
        %v2217 = vadd.f32 0.0, %v2216
        %v2218 = vpop.f32.mrb[0].mxu0
        %v2219 = vpop.f32.mrb[0].mxu0
        %v2220 = vadd.f32 0.0, %v2219
        %v2221 = vpop.f32.mrb[0].mxu0
        %2222 = vmatprep.mubr.bf16.mxu0 0
        %2223 = vmatmul.mubr.bf16.gmra.mrb[0].mxu0 %v2172
        %v2224 = vpop.f32.mrb[0].mxu0
        %v2225 = vadd.f32 0.0, %v2224
        %v2226 = vpop.f32.mrb[0].mxu0
        %v2227 = vpop.f32.mrb[0].mxu0
        %v2228 = vadd.f32 0.0, %v2227
        %v2229 = vpop.f32.mrb[0].mxu0
        %2230 = vdwg.mxu0
        %2237 = vrot.lane.b32.xlu0 %v1747, 32
        %v2238 = vpop.permute.xlu0 %2237
        %2239 = vrot.lane.b32.xlu0 %v1750, 32
        %v2240 = vpop.permute.xlu0 %2239
        %2241 = vrot.lane.b32.xlu0 %v1755, 32
        %v2242 = vpop.permute.xlu0 %2241
        %2243 = vrot.lane.b32.xlu0 %v1758, 32
        %v2244 = vpop.permute.xlu0 %2243
        %2245 = vrot.lane.b32.xlu0 %v1763, 32
        %v2246 = vpop.permute.xlu0 %2245
        %2247 = vrot.lane.b32.xlu0 %v1766, 32
        %v2248 = vpop.permute.xlu0 %2247
        %2261 = vrot.lane.b32.xlu0 %v1978, 64
        %v2262 = vpop.permute.xlu0 %2261
        %2263 = vrot.lane.b32.xlu0 %v1981, 64
        %v2264 = vpop.permute.xlu0 %2263
        %2265 = vrot.lane.b32.xlu0 %v1986, 64
        %v2266 = vpop.permute.xlu0 %2265
        %2267 = vrot.lane.b32.xlu0 %v1989, 64
        %v2268 = vpop.permute.xlu0 %2267
        %2269 = vrot.lane.b32.xlu0 %v1994, 64
        %v2270 = vpop.permute.xlu0 %2269
        %2271 = vrot.lane.b32.xlu0 %v1997, 64
        %v2272 = vpop.permute.xlu0 %2271
        %2285 = vrot.lane.b32.xlu0 %v2209, 96
        %v2286 = vpop.permute.xlu0 %2285
        %2287 = vrot.lane.b32.xlu0 %v2212, 96
        %v2288 = vpop.permute.xlu0 %2287
        %2289 = vrot.lane.b32.xlu0 %v2217, 96
        %v2290 = vpop.permute.xlu0 %2289
        %2291 = vrot.lane.b32.xlu0 %v2220, 96
        %v2292 = vpop.permute.xlu0 %2291
        %2293 = vrot.lane.b32.xlu0 %v2225, 96
        %v2294 = vpop.permute.xlu0 %2293
        %2295 = vrot.lane.b32.xlu0 %v2228, 96
        %v2296 = vpop.permute.xlu0 %2295
        %v2303 = vsel %vm1317, %v1507, %v2238
        %v2304 = vsel %vm1317, %v1510, %v2240
        %v2305 = vsel %vm1317, %v1515, %v2242
        %v2306 = vsel %vm1317, %v1518, %v2244
        %v2307 = vsel %vm1317, %v1523, %v2246
        %v2308 = vsel %vm1317, %v1526, %v2248
        %vm2309 = vcmask 523264
        %v2310 = vsel %vm2309, %v2303, %v2262
        %v2311 = vsel %vm2309, %v2304, %v2264
        %v2312 = vsel %vm2309, %v2305, %v2266
        %v2313 = vsel %vm2309, %v2306, %v2268
        %v2314 = vsel %vm2309, %v2307, %v2270
        %v2315 = vsel %vm2309, %v2308, %v2272
        %vm2316 = vcmask 785408
        %v2317 = vsel %vm2316, %v2310, %v2286
        %v2318 = vsel %vm2316, %v2311, %v2288
        %v2319 = vsel %vm2316, %v2312, %v2290
        %v2320 = vsel %vm2316, %v2313, %v2292
        %v2321 = vsel %vm2316, %v2314, %v2294
        %v2322 = vsel %vm2316, %v2315, %v2296
        %v2323 = vpack.c.bf16 %v2318, %v2317
        %v2324 = vpack.c.bf16 %v2320, %v2319
        %v2325 = vpack.c.bf16 %v2322, %v2321
        %v2326 = vld [vmem:[#allocation18] sm:$0xf]
        %v2327 = vld [vmem:[#allocation18 + $0x4] sm:$0xf]
        %v2328 = vld [vmem:[#allocation18 + $0x8] sm:$0xf]
        %v2329 = vld [vmem:[#allocation18 + $0xc] sm:$0xf]
        %v2330 = vld [vmem:[#allocation18 + $0x10] sm:$0xf]
        %v2331 = vld [vmem:[#allocation18 + $0x14] sm:$0xf]
        %v2332 = vld [vmem:[#allocation18 + $0x18] sm:$0xf]
        %v2333 = vld [vmem:[#allocation18 + $0x1c] sm:$0xf]
        %v2334 = vld [vmem:[#allocation18 + $0x20] sm:$0xf]
        %v2335 = vld [vmem:[#allocation18 + $0x24] sm:$0xf]
        %v2336 = vld [vmem:[#allocation18 + $0x28] sm:$0xf]
        %v2337 = vld [vmem:[#allocation18 + $0x2c] sm:$0xf]
        %v2338 = vld [vmem:[#allocation18 + $0x30] sm:$0xf]
        %v2339 = vld [vmem:[#allocation18 + $0x34] sm:$0xf]
        %v2340 = vld [vmem:[#allocation18 + $0x38] sm:$0xf]
        %v2341 = vld [vmem:[#allocation18 + $0x3c] sm:$0xf]
        %v2358 = vunpack.c.l.b16 %v2326
        %v2359 = vunpack.c.l.b16 %v2327
        %v2360 = vunpack.c.l.b16 %v2328
        %v2361 = vunpack.c.l.b16 %v2329
        %v2362 = vunpack.c.l.b16 %v2330
        %v2363 = vunpack.c.l.b16 %v2331
        %v2364 = vunpack.c.l.b16 %v2332
        %v2365 = vunpack.c.l.b16 %v2333
        %v2366 = vunpack.c.l.b16 %v2334
        %v2367 = vunpack.c.l.b16 %v2335
        %v2368 = vunpack.c.l.b16 %v2336
        %v2369 = vunpack.c.l.b16 %v2337
        %v2370 = vunpack.c.l.b16 %v2338
        %v2371 = vunpack.c.l.b16 %v2339
        %v2372 = vunpack.c.l.b16 %v2340
        %v2373 = vunpack.c.l.b16 %v2341
        %v2374 = vpack.c.b16 %v2359, %v2358
        %v2375 = vpack.c.b16 %v2361, %v2360
        %v2376 = vpack.c.b16 %v2363, %v2362
        %v2377 = vpack.c.b16 %v2365, %v2364
        %v2378 = vpack.c.b16 %v2367, %v2366
        %v2379 = vpack.c.b16 %v2369, %v2368
        %v2380 = vpack.c.b16 %v2371, %v2370
        %v2381 = vpack.c.b16 %v2373, %v2372
        %2390 = vmatprep.subr.bf16.mxu0 0
        %2391 = vmatpush1.bf16.msra.mxu0 %v2374
        %2392 = vmatprep.subr.bf16.mxu0 0
        %2393 = vmatpush1.bf16.msra.mxu0 %v2375
        %2394 = vmatprep.subr.bf16.mxu0 0
        %2395 = vmatpush1.bf16.msra.mxu0 %v2376
        %2396 = vmatprep.subr.bf16.mxu0 0
        %2397 = vmatpush1.bf16.msra.mxu0 %v2377
        %2398 = vmatprep.subr.bf16.mxu0 0
        %2399 = vmatpush1.bf16.msra.mxu0 %v2378
        %2400 = vmatprep.subr.bf16.mxu0 0
        %2401 = vmatpush1.bf16.msra.mxu0 %v2379
        %2402 = vmatprep.subr.bf16.mxu0 0
        %2403 = vmatpush1.bf16.msra.mxu0 %v2380
        %2404 = vmatprep.subr.bf16.mxu0 0
        %2405 = vmatpush1.bf16.msra.mxu0 %v2381
        %2406 = vmatprep.subr.bf16.mxu0 0
        %2407 = vmatpush1.bf16.msra.mxu0 0
        %2408 = vmatprep.subr.bf16.mxu0 0
        %2409 = vmatpush1.bf16.msra.mxu0 0
        %2410 = vmatprep.subr.bf16.mxu0 0
        %2411 = vmatpush1.bf16.msra.mxu0 0
        %2412 = vmatprep.subr.bf16.mxu0 0
        %2413 = vmatpush1.bf16.msra.mxu0 0
        %2414 = vmatprep.subr.bf16.mxu0 0
        %2415 = vmatpush1.bf16.msra.mxu0 0
        %2416 = vmatprep.subr.bf16.mxu0 0
        %2417 = vmatpush1.bf16.msra.mxu0 0
        %2418 = vmatprep.subr.bf16.mxu0 0
        %2419 = vmatpush1.bf16.msra.mxu0 0
        %2420 = vmatprep.subr.bf16.mxu0 0
        %2421 = vmatpush1.bf16.msra.mxu0 0
        %2422 = vmatprep.mubr.bf16.mxu0 0
        %2423 = vmatmul.mubr.bf16.gmra.mrb[0].mxu0 %v2323
        %v2424 = vpop.f32.mrb[0].mxu0
        %v2425 = vadd.f32 0.0, %v2424
        %v2426 = vpop.f32.mrb[0].mxu0
        %v2427 = vpop.f32.mrb[0].mxu0
        %v2428 = vadd.f32 0.0, %v2427
        %v2429 = vpop.f32.mrb[0].mxu0
        %2430 = vmatprep.mubr.bf16.mxu0 0
        %2431 = vmatmul.mubr.bf16.gmra.mrb[0].mxu0 %v2324
        %v2432 = vpop.f32.mrb[0].mxu0
        %v2433 = vadd.f32 0.0, %v2432
        %v2434 = vpop.f32.mrb[0].mxu0
        %v2435 = vpop.f32.mrb[0].mxu0
        %v2436 = vadd.f32 0.0, %v2435
        %v2437 = vpop.f32.mrb[0].mxu0
        %2438 = vmatprep.mubr.bf16.mxu0 0
        %2439 = vmatmul.mubr.bf16.gmra.mrb[0].mxu0 %v2325
        %v2440 = vpop.f32.mrb[0].mxu0
        %v2441 = vadd.f32 0.0, %v2440
        %v2442 = vpop.f32.mrb[0].mxu0
        %v2443 = vpop.f32.mrb[0].mxu0
        %v2444 = vadd.f32 0.0, %v2443
        %v2445 = vpop.f32.mrb[0].mxu0
        %2446 = vdwg.mxu0
        %v2447 = vadd.f32 %v903, %v2425
        %v2448 = vadd.f32 %v904, %v2428
        %v2449 = vadd.f32 %v905, %v2433
        %v2450 = vadd.f32 %v906, %v2436
        %v2451 = vadd.f32 %v907, %v2441
        %v2452 = vadd.f32 %v908, %v2444
        %v2453 = vld [vmem:[#allocation19] sm:$0x1]
        %v2455 = vlaneseq
        %v2456 = vshrl.u32 %v2455, 7
        %v2457 = vsub.s32 0, %v2456
        %v2458 = vrot.slane %v2453, %v2457
        %v2460 = vadd.f32 %v2447, %v2458
        %v2461 = vadd.f32 %v2448, %v2458
        %v2462 = vadd.f32 %v2449, %v2458
        %v2463 = vadd.f32 %v2450, %v2458
        %v2464 = vadd.f32 %v2451, %v2458
        %v2465 = vadd.f32 %v2452, %v2458
        %v2466 = vld [vmem:[#allocation21] sm:$0x1]
        %v2467 = vld [vmem:[#allocation22] sm:$0x1]
        %2468 = vadd.xlane.f32.xlu0 %v2460
        %v2469 = vpop.xlane.xlu0 %2468
        %2470 = vadd.xlane.f32.xlu0 %v2461
        %v2471 = vpop.xlane.xlu0 %2470
        %2472 = vadd.xlane.f32.xlu0 %v2462
        %v2473 = vpop.xlane.xlu0 %2472
        %2474 = vadd.xlane.f32.xlu0 %v2463
        %v2475 = vpop.xlane.xlu0 %2474
        %2476 = vadd.xlane.f32.xlu0 %v2464
        %v2477 = vpop.xlane.xlu0 %2476
        %2478 = vadd.xlane.f32.xlu0 %v2465
        %v2479 = vpop.xlane.xlu0 %2478
        %v2480 = vmul.f32 %v2469, %v923
        %v2481 = vmul.f32 %v2471, %v923
        %v2482 = vmul.f32 %v2473, %v923
        %v2483 = vmul.f32 %v2475, %v923
        %v2484 = vmul.f32 %v2477, %v923
        %v2485 = vmul.f32 %v2479, %v923
        %v2486 = vsub.f32 %v2460, %v2480
        %v2487 = vsub.f32 %v2461, %v2481
        %v2488 = vsub.f32 %v2462, %v2482
        %v2489 = vsub.f32 %v2463, %v2483
        %v2490 = vsub.f32 %v2464, %v2484
        %v2491 = vsub.f32 %v2465, %v2485
        %v2492 = vmul.f32 %v2486, %v2486
        %v2493 = vmul.f32 %v2487, %v2487
        %v2494 = vmul.f32 %v2488, %v2488
        %v2495 = vmul.f32 %v2489, %v2489
        %v2496 = vmul.f32 %v2490, %v2490
        %v2497 = vmul.f32 %v2491, %v2491
        %2498 = vadd.xlane.f32.xlu0 %v2492
        %v2499 = vpop.xlane.xlu0 %2498
        %2500 = vadd.xlane.f32.xlu0 %v2493
        %v2501 = vpop.xlane.xlu0 %2500
        %2502 = vadd.xlane.f32.xlu0 %v2494
        %v2503 = vpop.xlane.xlu0 %2502
        %2504 = vadd.xlane.f32.xlu0 %v2495
        %v2505 = vpop.xlane.xlu0 %2504
        %2506 = vadd.xlane.f32.xlu0 %v2496
        %v2507 = vpop.xlane.xlu0 %2506
        %2508 = vadd.xlane.f32.xlu0 %v2497
        %v2509 = vpop.xlane.xlu0 %2508
        %v2510 = vmul.f32 %v2499, %v923
        %v2511 = vmul.f32 %v2501, %v923
        %v2512 = vmul.f32 %v2503, %v923
        %v2513 = vmul.f32 %v2505, %v923
        %v2514 = vmul.f32 %v2507, %v923
        %v2515 = vmul.f32 %v2509, %v923
        %v2516 = vadd.f32 %v2510, 1e-05
        %v2517 = vadd.f32 %v2511, 1e-05
        %v2518 = vadd.f32 %v2512, 1e-05
        %v2519 = vadd.f32 %v2513, 1e-05
        %v2520 = vadd.f32 %v2514, 1e-05
        %v2521 = vadd.f32 %v2515, 1e-05
        %v2522 = vrsqrt.pop %v2516
        %v2523 = vrsqrt.pop %v2517
        %v2524 = vrsqrt.pop %v2518
        %v2525 = vrsqrt.pop %v2519
        %v2526 = vrsqrt.pop %v2520
        %v2527 = vrsqrt.pop %v2521
        %v2528 = vmul.f32 %v2486, %v2522
        %v2529 = vmul.f32 %v2487, %v2523
        %v2530 = vmul.f32 %v2488, %v2524
        %v2531 = vmul.f32 %v2489, %v2525
        %v2532 = vmul.f32 %v2490, %v2526
        %v2533 = vmul.f32 %v2491, %v2527
        %v2535 = vlaneseq
        %v2536 = vshrl.u32 %v2535, 7
        %v2537 = vsub.s32 0, %v2536
        %v2538 = vrot.slane %v2466, %v2537
        %v2540 = vmul.f32 %v2528, %v2538
        %v2541 = vmul.f32 %v2529, %v2538
        %v2542 = vmul.f32 %v2530, %v2538
        %v2543 = vmul.f32 %v2531, %v2538
        %v2544 = vmul.f32 %v2532, %v2538
        %v2545 = vmul.f32 %v2533, %v2538
        %v2547 = vlaneseq
        %v2548 = vshrl.u32 %v2547, 7
        %v2549 = vsub.s32 0, %v2548
        %v2550 = vrot.slane %v2467, %v2549
        %v2552 = vadd.f32 %v2540, %v2550
        %v2553 = vadd.f32 %v2541, %v2550
        %v2554 = vadd.f32 %v2542, %v2550
        %v2555 = vadd.f32 %v2543, %v2550
        %v2556 = vadd.f32 %v2544, %v2550
        %v2557 = vadd.f32 %v2545, %v2550
        %v2558 = vpack.c.bf16 %v2553, %v2552
        %v2559 = vpack.c.bf16 %v2555, %v2554
        %v2560 = vpack.c.bf16 %v2557, %v2556
        %v2561 = vld [vmem:[#allocation24] sm:$0xff]
        %v2562 = vld [vmem:[#allocation24 + $0x8] sm:$0xff]
        %v2563 = vld [vmem:[#allocation24 + $0x10] sm:$0xff]
        %v2564 = vld [vmem:[#allocation24 + $0x18] sm:$0xff]
        %v2565 = vld [vmem:[#allocation24 + $0x20] sm:$0xff]
        %v2566 = vld [vmem:[#allocation24 + $0x28] sm:$0xff]
        %v2567 = vld [vmem:[#allocation24 + $0x30] sm:$0xff]
        %v2568 = vld [vmem:[#allocation24 + $0x38] sm:$0xff]
        %v2569 = vld [vmem:[#allocation24 + $0x40] sm:$0xff]
        %v2570 = vld [vmem:[#allocation24 + $0x48] sm:$0xff]
        %v2571 = vld [vmem:[#allocation24 + $0x50] sm:$0xff]
        %v2572 = vld [vmem:[#allocation24 + $0x58] sm:$0xff]
        %v2573 = vld [vmem:[#allocation24 + $0x60] sm:$0xff]
        %v2574 = vld [vmem:[#allocation24 + $0x68] sm:$0xff]
        %v2575 = vld [vmem:[#allocation24 + $0x70] sm:$0xff]
        %v2576 = vld [vmem:[#allocation24 + $0x78] sm:$0xff]
        %v2577 = vld [vmem:[#allocation24 + $0x80] sm:$0xff]
        %v2578 = vld [vmem:[#allocation24 + $0x88] sm:$0xff]
        %v2579 = vld [vmem:[#allocation24 + $0x90] sm:$0xff]
        %v2580 = vld [vmem:[#allocation24 + $0x98] sm:$0xff]
        %v2581 = vld [vmem:[#allocation24 + $0xa0] sm:$0xff]
        %v2582 = vld [vmem:[#allocation24 + $0xa8] sm:$0xff]
        %v2583 = vld [vmem:[#allocation24 + $0xb0] sm:$0xff]
        %v2584 = vld [vmem:[#allocation24 + $0xb8] sm:$0xff]
        %v2585 = vld [vmem:[#allocation24 + $0xc0] sm:$0xff]
        %v2586 = vld [vmem:[#allocation24 + $0xc8] sm:$0xff]
        %v2587 = vld [vmem:[#allocation24 + $0xd0] sm:$0xff]
        %v2588 = vld [vmem:[#allocation24 + $0xd8] sm:$0xff]
        %v2589 = vld [vmem:[#allocation24 + $0xe0] sm:$0xff]
        %v2590 = vld [vmem:[#allocation24 + $0xe8] sm:$0xff]
        %v2591 = vld [vmem:[#allocation24 + $0xf0] sm:$0xff]
        %v2592 = vld [vmem:[#allocation24 + $0xf8] sm:$0xff]
        %v2593 = vld [vmem:[#allocation25] sm:$0xf]
        %v2595 = vlaneseq
        %v2596 = vshrl.u32 %v2595, 7
        %v2597 = vsub.s32 0, %v2596
        %v2598 = vrot.slane %v2593, %v2597
        %v2599 = vlaneseq
        %v2600 = vshrl.u32 %v2599, 7
        %v2601 = vsub.s32 1, %v2600
        %v2602 = vrot.slane %v2593, %v2601
        %v2603 = vlaneseq
        %v2604 = vshrl.u32 %v2603, 7
        %v2605 = vsub.s32 2, %v2604
        %v2606 = vrot.slane %v2593, %v2605
        %v2607 = vlaneseq
        %v2608 = vshrl.u32 %v2607, 7
        %v2609 = vsub.s32 3, %v2608
        %v2610 = vrot.slane %v2593, %v2609
        %v2647 = vunpack.c.l.b16 %v2561
        %v2648 = vunpack.c.h.b16 %v2561
        %v2649 = vunpack.c.l.b16 %v2562
        %v2650 = vunpack.c.h.b16 %v2562
        %v2651 = vunpack.c.l.b16 %v2563
        %v2652 = vunpack.c.h.b16 %v2563
        %v2653 = vunpack.c.l.b16 %v2564
        %v2654 = vunpack.c.h.b16 %v2564
        %v2655 = vunpack.c.l.b16 %v2565
        %v2656 = vunpack.c.h.b16 %v2565
        %v2657 = vunpack.c.l.b16 %v2566
        %v2658 = vunpack.c.h.b16 %v2566
        %v2659 = vunpack.c.l.b16 %v2567
        %v2660 = vunpack.c.h.b16 %v2567
        %v2661 = vunpack.c.l.b16 %v2568
        %v2662 = vunpack.c.h.b16 %v2568
        %v2663 = vunpack.c.l.b16 %v2569
        %v2664 = vunpack.c.h.b16 %v2569
        %v2665 = vunpack.c.l.b16 %v2570
        %v2666 = vunpack.c.h.b16 %v2570
        %v2667 = vunpack.c.l.b16 %v2571
        %v2668 = vunpack.c.h.b16 %v2571
        %v2669 = vunpack.c.l.b16 %v2572
        %v2670 = vunpack.c.h.b16 %v2572
        %v2671 = vunpack.c.l.b16 %v2573
        %v2672 = vunpack.c.h.b16 %v2573
        %v2673 = vunpack.c.l.b16 %v2574
        %v2674 = vunpack.c.h.b16 %v2574
        %v2675 = vunpack.c.l.b16 %v2575
        %v2676 = vunpack.c.h.b16 %v2575
        %v2677 = vunpack.c.l.b16 %v2576
        %v2678 = vunpack.c.h.b16 %v2576
        %v2679 = vunpack.c.l.b16 %v2577
        %v2680 = vunpack.c.h.b16 %v2577
        %v2681 = vunpack.c.l.b16 %v2578
        %v2682 = vunpack.c.h.b16 %v2578
        %v2683 = vunpack.c.l.b16 %v2579
        %v2684 = vunpack.c.h.b16 %v2579
        %v2685 = vunpack.c.l.b16 %v2580
        %v2686 = vunpack.c.h.b16 %v2580
        %v2687 = vunpack.c.l.b16 %v2581
        %v2688 = vunpack.c.h.b16 %v2581
        %v2689 = vunpack.c.l.b16 %v2582
        %v2690 = vunpack.c.h.b16 %v2582
        %v2691 = vunpack.c.l.b16 %v2583
        %v2692 = vunpack.c.h.b16 %v2583
        %v2693 = vunpack.c.l.b16 %v2584
        %v2694 = vunpack.c.h.b16 %v2584
        %v2695 = vunpack.c.l.b16 %v2585
        %v2696 = vunpack.c.h.b16 %v2585
        %v2697 = vunpack.c.l.b16 %v2586
        %v2698 = vunpack.c.h.b16 %v2586
        %v2699 = vunpack.c.l.b16 %v2587
        %v2700 = vunpack.c.h.b16 %v2587
        %v2701 = vunpack.c.l.b16 %v2588
        %v2702 = vunpack.c.h.b16 %v2588
        %v2703 = vunpack.c.l.b16 %v2589
        %v2704 = vunpack.c.h.b16 %v2589
        %v2705 = vunpack.c.l.b16 %v2590
        %v2706 = vunpack.c.h.b16 %v2590
        %v2707 = vunpack.c.l.b16 %v2591
        %v2708 = vunpack.c.h.b16 %v2591
        %v2709 = vunpack.c.l.b16 %v2592
        %v2710 = vunpack.c.h.b16 %v2592
        %v2711 = vpack.c.b16 %v2651, %v2647
        %v2712 = vpack.c.b16 %v2652, %v2648
        %v2713 = vpack.c.b16 %v2653, %v2649
        %v2714 = vpack.c.b16 %v2654, %v2650
        %v2715 = vpack.c.b16 %v2659, %v2655
        %v2716 = vpack.c.b16 %v2660, %v2656
        %v2717 = vpack.c.b16 %v2661, %v2657
        %v2718 = vpack.c.b16 %v2662, %v2658
        %v2719 = vpack.c.b16 %v2667, %v2663
        %v2720 = vpack.c.b16 %v2668, %v2664
        %v2721 = vpack.c.b16 %v2669, %v2665
        %v2722 = vpack.c.b16 %v2670, %v2666
        %v2723 = vpack.c.b16 %v2675, %v2671
        %v2724 = vpack.c.b16 %v2676, %v2672
        %v2725 = vpack.c.b16 %v2677, %v2673
        %v2726 = vpack.c.b16 %v2678, %v2674
        %v2727 = vpack.c.b16 %v2683, %v2679
        %v2728 = vpack.c.b16 %v2684, %v2680
        %v2729 = vpack.c.b16 %v2685, %v2681
        %v2730 = vpack.c.b16 %v2686, %v2682
        %v2731 = vpack.c.b16 %v2691, %v2687
        %v2732 = vpack.c.b16 %v2692, %v2688
        %v2733 = vpack.c.b16 %v2693, %v2689
        %v2734 = vpack.c.b16 %v2694, %v2690
        %v2735 = vpack.c.b16 %v2699, %v2695
        %v2736 = vpack.c.b16 %v2700, %v2696
        %v2737 = vpack.c.b16 %v2701, %v2697
        %v2738 = vpack.c.b16 %v2702, %v2698
        %v2739 = vpack.c.b16 %v2707, %v2703
        %v2740 = vpack.c.b16 %v2708, %v2704
        %v2741 = vpack.c.b16 %v2709, %v2705
        %v2742 = vpack.c.b16 %v2710, %v2706
        %2775 = vmatprep.subr.bf16.mxu0 %v2712
        %2776 = vmatpush1.bf16.msra.mxu0 %v2711
        %2777 = vmatprep.subr.bf16.mxu0 %v2716
        %2778 = vmatpush1.bf16.msra.mxu0 %v2715
        %2779 = vmatprep.subr.bf16.mxu0 %v2720
        %2780 = vmatpush1.bf16.msra.mxu0 %v2719
        %2781 = vmatprep.subr.bf16.mxu0 %v2724
        %2782 = vmatpush1.bf16.msra.mxu0 %v2723
        %2783 = vmatprep.subr.bf16.mxu0 %v2728
        %2784 = vmatpush1.bf16.msra.mxu0 %v2727
        %2785 = vmatprep.subr.bf16.mxu0 %v2732
        %2786 = vmatpush1.bf16.msra.mxu0 %v2731
        %2787 = vmatprep.subr.bf16.mxu0 %v2736
        %2788 = vmatpush1.bf16.msra.mxu0 %v2735
        %2789 = vmatprep.subr.bf16.mxu0 %v2740
        %2790 = vmatpush1.bf16.msra.mxu0 %v2739
        %2791 = vmatprep.subr.bf16.mxu0 0
        %2792 = vmatpush1.bf16.msra.mxu0 0
        %2793 = vmatprep.subr.bf16.mxu0 0
        %2794 = vmatpush1.bf16.msra.mxu0 0
        %2795 = vmatprep.subr.bf16.mxu0 0
        %2796 = vmatpush1.bf16.msra.mxu0 0
        %2797 = vmatprep.subr.bf16.mxu0 0
        %2798 = vmatpush1.bf16.msra.mxu0 0
        %2799 = vmatprep.subr.bf16.mxu0 0
        %2800 = vmatpush1.bf16.msra.mxu0 0
        %2801 = vmatprep.subr.bf16.mxu0 0
        %2802 = vmatpush1.bf16.msra.mxu0 0
        %2803 = vmatprep.subr.bf16.mxu0 0
        %2804 = vmatpush1.bf16.msra.mxu0 0
        %2805 = vmatprep.subr.bf16.mxu0 0
        %2806 = vmatpush1.bf16.msra.mxu0 0
        %2807 = vmatprep.mubr.bf16.mxu0 0
        %2808 = vmatmul.mubr.bf16.gmra.mrb[0].mxu0 %v2558
        %v2809 = vpop.f32.mrb[0].mxu0
        %v2810 = vadd.f32 %v2598, %v2809
        %v2811 = vpop.f32.mrb[0].mxu0
        %v2812 = vadd.f32 %v2602, %v2811
        %v2813 = vpop.f32.mrb[0].mxu0
        %v2814 = vadd.f32 %v2598, %v2813
        %v2815 = vpop.f32.mrb[0].mxu0
        %v2816 = vadd.f32 %v2602, %v2815
        %2817 = vmatprep.mubr.bf16.mxu0 0
        %2818 = vmatmul.mubr.bf16.gmra.mrb[0].mxu0 %v2559
        %v2819 = vpop.f32.mrb[0].mxu0
        %v2820 = vadd.f32 %v2598, %v2819
        %v2821 = vpop.f32.mrb[0].mxu0
        %v2822 = vadd.f32 %v2602, %v2821
        %v2823 = vpop.f32.mrb[0].mxu0
        %v2824 = vadd.f32 %v2598, %v2823
        %v2825 = vpop.f32.mrb[0].mxu0
        %v2826 = vadd.f32 %v2602, %v2825
        %2827 = vmatprep.mubr.bf16.mxu0 0
        %2828 = vmatmul.mubr.bf16.gmra.mrb[0].mxu0 %v2560
        %v2829 = vpop.f32.mrb[0].mxu0
        %v2830 = vadd.f32 %v2598, %v2829
        %v2831 = vpop.f32.mrb[0].mxu0
        %v2832 = vadd.f32 %v2602, %v2831
        %v2833 = vpop.f32.mrb[0].mxu0
        %v2834 = vadd.f32 %v2598, %v2833
        %v2835 = vpop.f32.mrb[0].mxu0
        %v2836 = vadd.f32 %v2602, %v2835
        %2837 = vdwg.mxu0
        %2838 = vmatprep.subr.bf16.mxu0 %v2714
        %2839 = vmatpush1.bf16.msra.mxu0 %v2713
        %2840 = vmatprep.subr.bf16.mxu0 %v2718
        %2841 = vmatpush1.bf16.msra.mxu0 %v2717
        %2842 = vmatprep.subr.bf16.mxu0 %v2722
        %2843 = vmatpush1.bf16.msra.mxu0 %v2721
        %2844 = vmatprep.subr.bf16.mxu0 %v2726
        %2845 = vmatpush1.bf16.msra.mxu0 %v2725
        %2846 = vmatprep.subr.bf16.mxu0 %v2730
        %2847 = vmatpush1.bf16.msra.mxu0 %v2729
        %2848 = vmatprep.subr.bf16.mxu0 %v2734
        %2849 = vmatpush1.bf16.msra.mxu0 %v2733
        %2850 = vmatprep.subr.bf16.mxu0 %v2738
        %2851 = vmatpush1.bf16.msra.mxu0 %v2737
        %2852 = vmatprep.subr.bf16.mxu0 %v2742
        %2853 = vmatpush1.bf16.msra.mxu0 %v2741
        %2854 = vmatprep.subr.bf16.mxu0 0
        %2855 = vmatpush1.bf16.msra.mxu0 0
        %2856 = vmatprep.subr.bf16.mxu0 0
        %2857 = vmatpush1.bf16.msra.mxu0 0
        %2858 = vmatprep.subr.bf16.mxu0 0
        %2859 = vmatpush1.bf16.msra.mxu0 0
        %2860 = vmatprep.subr.bf16.mxu0 0
        %2861 = vmatpush1.bf16.msra.mxu0 0
        %2862 = vmatprep.subr.bf16.mxu0 0
        %2863 = vmatpush1.bf16.msra.mxu0 0
        %2864 = vmatprep.subr.bf16.mxu0 0
        %2865 = vmatpush1.bf16.msra.mxu0 0
        %2866 = vmatprep.subr.bf16.mxu0 0
        %2867 = vmatpush1.bf16.msra.mxu0 0
        %2868 = vmatprep.subr.bf16.mxu0 0
        %2869 = vmatpush1.bf16.msra.mxu0 0
        %2870 = vmatprep.mubr.bf16.mxu0 0
        %2871 = vmatmul.mubr.bf16.gmra.mrb[0].mxu0 %v2558
        %v2872 = vpop.f32.mrb[0].mxu0
        %v2873 = vadd.f32 %v2606, %v2872
        %v2874 = vpop.f32.mrb[0].mxu0
        %v2875 = vadd.f32 %v2610, %v2874
        %v2876 = vpop.f32.mrb[0].mxu0
        %v2877 = vadd.f32 %v2606, %v2876
        %v2878 = vpop.f32.mrb[0].mxu0
        %v2879 = vadd.f32 %v2610, %v2878
        %2880 = vmatprep.mubr.bf16.mxu0 0
        %2881 = vmatmul.mubr.bf16.gmra.mrb[0].mxu0 %v2559
        %v2882 = vpop.f32.mrb[0].mxu0
        %v2883 = vadd.f32 %v2606, %v2882
        %v2884 = vpop.f32.mrb[0].mxu0
        %v2885 = vadd.f32 %v2610, %v2884
        %v2886 = vpop.f32.mrb[0].mxu0
        %v2887 = vadd.f32 %v2606, %v2886
        %v2888 = vpop.f32.mrb[0].mxu0
        %v2889 = vadd.f32 %v2610, %v2888
        %2890 = vmatprep.mubr.bf16.mxu0 0
        %2891 = vmatmul.mubr.bf16.gmra.mrb[0].mxu0 %v2560
        %v2892 = vpop.f32.mrb[0].mxu0
        %v2893 = vadd.f32 %v2606, %v2892
        %v2894 = vpop.f32.mrb[0].mxu0
        %v2895 = vadd.f32 %v2610, %v2894
        %v2896 = vpop.f32.mrb[0].mxu0
        %v2897 = vadd.f32 %v2606, %v2896
        %v2898 = vpop.f32.mrb[0].mxu0
        %v2899 = vadd.f32 %v2610, %v2898
        %2900 = vdwg.mxu0
        %v2901 = vmax.f32 %v2810, 0.0
        %v2902 = vmax.f32 %v2812, 0.0
        %v2903 = vmax.f32 %v2873, 0.0
        %v2904 = vmax.f32 %v2875, 0.0
        %v2905 = vmax.f32 %v2814, 0.0
        %v2906 = vmax.f32 %v2816, 0.0
        %v2907 = vmax.f32 %v2877, 0.0
        %v2908 = vmax.f32 %v2879, 0.0
        %v2909 = vmax.f32 %v2820, 0.0
        %v2910 = vmax.f32 %v2822, 0.0
        %v2911 = vmax.f32 %v2883, 0.0
        %v2912 = vmax.f32 %v2885, 0.0
        %v2913 = vmax.f32 %v2824, 0.0
        %v2914 = vmax.f32 %v2826, 0.0
        %v2915 = vmax.f32 %v2887, 0.0
        %v2916 = vmax.f32 %v2889, 0.0
        %v2917 = vmax.f32 %v2830, 0.0
        %v2918 = vmax.f32 %v2832, 0.0
        %v2919 = vmax.f32 %v2893, 0.0
        %v2920 = vmax.f32 %v2895, 0.0
        %v2921 = vmax.f32 %v2834, 0.0
        %v2922 = vmax.f32 %v2836, 0.0
        %v2923 = vmax.f32 %v2897, 0.0
        %v2924 = vmax.f32 %v2899, 0.0
        %v2925 = vpack.c.bf16 %v2905, %v2901
        %v2926 = vpack.c.bf16 %v2906, %v2902
        %v2927 = vpack.c.bf16 %v2907, %v2903
        %v2928 = vpack.c.bf16 %v2908, %v2904
        %v2929 = vpack.c.bf16 %v2913, %v2909
        %v2930 = vpack.c.bf16 %v2914, %v2910
        %v2931 = vpack.c.bf16 %v2915, %v2911
        %v2932 = vpack.c.bf16 %v2916, %v2912
        %v2933 = vpack.c.bf16 %v2921, %v2917
        %v2934 = vpack.c.bf16 %v2922, %v2918
        %v2935 = vpack.c.bf16 %v2923, %v2919
        %v2936 = vpack.c.bf16 %v2924, %v2920
        %v2937 = vld [vmem:[#allocation27] sm:$0xf]
        %v2938 = vld [vmem:[#allocation27 + $0x4] sm:$0xf]
        %v2939 = vld [vmem:[#allocation27 + $0x8] sm:$0xf]
        %v2940 = vld [vmem:[#allocation27 + $0xc] sm:$0xf]
        %v2941 = vld [vmem:[#allocation27 + $0x10] sm:$0xf]
        %v2942 = vld [vmem:[#allocation27 + $0x14] sm:$0xf]
        %v2943 = vld [vmem:[#allocation27 + $0x18] sm:$0xf]
        %v2944 = vld [vmem:[#allocation27 + $0x1c] sm:$0xf]
        %v2945 = vld [vmem:[#allocation27 + $0x20] sm:$0xf]
        %v2946 = vld [vmem:[#allocation27 + $0x24] sm:$0xf]
        %v2947 = vld [vmem:[#allocation27 + $0x28] sm:$0xf]
        %v2948 = vld [vmem:[#allocation27 + $0x2c] sm:$0xf]
        %v2949 = vld [vmem:[#allocation27 + $0x30] sm:$0xf]
        %v2950 = vld [vmem:[#allocation27 + $0x34] sm:$0xf]
        %v2951 = vld [vmem:[#allocation27 + $0x38] sm:$0xf]
        %v2952 = vld [vmem:[#allocation27 + $0x3c] sm:$0xf]
        %v2953 = vld [vmem:[#allocation27 + $0x40] sm:$0xf]
        %v2954 = vld [vmem:[#allocation27 + $0x44] sm:$0xf]
        %v2955 = vld [vmem:[#allocation27 + $0x48] sm:$0xf]
        %v2956 = vld [vmem:[#allocation27 + $0x4c] sm:$0xf]
        %v2957 = vld [vmem:[#allocation27 + $0x50] sm:$0xf]
        %v2958 = vld [vmem:[#allocation27 + $0x54] sm:$0xf]
        %v2959 = vld [vmem:[#allocation27 + $0x58] sm:$0xf]
        %v2960 = vld [vmem:[#allocation27 + $0x5c] sm:$0xf]
        %v2961 = vld [vmem:[#allocation27 + $0x60] sm:$0xf]
        %v2962 = vld [vmem:[#allocation27 + $0x64] sm:$0xf]
        %v2963 = vld [vmem:[#allocation27 + $0x68] sm:$0xf]
        %v2964 = vld [vmem:[#allocation27 + $0x6c] sm:$0xf]
        %v2965 = vld [vmem:[#allocation27 + $0x70] sm:$0xf]
        %v2966 = vld [vmem:[#allocation27 + $0x74] sm:$0xf]
        %v2967 = vld [vmem:[#allocation27 + $0x78] sm:$0xf]
        %v2968 = vld [vmem:[#allocation27 + $0x7c] sm:$0xf]
        %v2969 = vld [vmem:[#allocation27 + $0x80] sm:$0xf]
        %v2970 = vld [vmem:[#allocation27 + $0x84] sm:$0xf]
        %v2971 = vld [vmem:[#allocation27 + $0x88] sm:$0xf]
        %v2972 = vld [vmem:[#allocation27 + $0x8c] sm:$0xf]
        %v2973 = vld [vmem:[#allocation27 + $0x90] sm:$0xf]
        %v2974 = vld [vmem:[#allocation27 + $0x94] sm:$0xf]
        %v2975 = vld [vmem:[#allocation27 + $0x98] sm:$0xf]
        %v2976 = vld [vmem:[#allocation27 + $0x9c] sm:$0xf]
        %v2977 = vld [vmem:[#allocation27 + $0xa0] sm:$0xf]
        %v2978 = vld [vmem:[#allocation27 + $0xa4] sm:$0xf]
        %v2979 = vld [vmem:[#allocation27 + $0xa8] sm:$0xf]
        %v2980 = vld [vmem:[#allocation27 + $0xac] sm:$0xf]
        %v2981 = vld [vmem:[#allocation27 + $0xb0] sm:$0xf]
        %v2982 = vld [vmem:[#allocation27 + $0xb4] sm:$0xf]
        %v2983 = vld [vmem:[#allocation27 + $0xb8] sm:$0xf]
        %v2984 = vld [vmem:[#allocation27 + $0xbc] sm:$0xf]
        %v2985 = vld [vmem:[#allocation27 + $0xc0] sm:$0xf]
        %v2986 = vld [vmem:[#allocation27 + $0xc4] sm:$0xf]
        %v2987 = vld [vmem:[#allocation27 + $0xc8] sm:$0xf]
        %v2988 = vld [vmem:[#allocation27 + $0xcc] sm:$0xf]
        %v2989 = vld [vmem:[#allocation27 + $0xd0] sm:$0xf]
        %v2990 = vld [vmem:[#allocation27 + $0xd4] sm:$0xf]
        %v2991 = vld [vmem:[#allocation27 + $0xd8] sm:$0xf]
        %v2992 = vld [vmem:[#allocation27 + $0xdc] sm:$0xf]
        %v2993 = vld [vmem:[#allocation27 + $0xe0] sm:$0xf]
        %v2994 = vld [vmem:[#allocation27 + $0xe4] sm:$0xf]
        %v2995 = vld [vmem:[#allocation27 + $0xe8] sm:$0xf]
        %v2996 = vld [vmem:[#allocation27 + $0xec] sm:$0xf]
        %v2997 = vld [vmem:[#allocation27 + $0xf0] sm:$0xf]
        %v2998 = vld [vmem:[#allocation27 + $0xf4] sm:$0xf]
        %v2999 = vld [vmem:[#allocation27 + $0xf8] sm:$0xf]
        %v3000 = vld [vmem:[#allocation27 + $0xfc] sm:$0xf]
        %v3001 = vld [vmem:[#allocation28] sm:$0x1]
        %v3003 = vlaneseq
        %v3004 = vshrl.u32 %v3003, 7
        %v3005 = vsub.s32 0, %v3004
        %v3006 = vrot.slane %v3001, %v3005
        %v3072 = vunpack.c.l.b16 %v2937
        %v3073 = vunpack.c.l.b16 %v2938
        %v3074 = vunpack.c.l.b16 %v2939
        %v3075 = vunpack.c.l.b16 %v2940
        %v3076 = vunpack.c.l.b16 %v2941
        %v3077 = vunpack.c.l.b16 %v2942
        %v3078 = vunpack.c.l.b16 %v2943
        %v3079 = vunpack.c.l.b16 %v2944
        %v3080 = vunpack.c.l.b16 %v2945
        %v3081 = vunpack.c.l.b16 %v2946
        %v3082 = vunpack.c.l.b16 %v2947
        %v3083 = vunpack.c.l.b16 %v2948
        %v3084 = vunpack.c.l.b16 %v2949
        %v3085 = vunpack.c.l.b16 %v2950
        %v3086 = vunpack.c.l.b16 %v2951
        %v3087 = vunpack.c.l.b16 %v2952
        %v3088 = vunpack.c.l.b16 %v2953
        %v3089 = vunpack.c.l.b16 %v2954
        %v3090 = vunpack.c.l.b16 %v2955
        %v3091 = vunpack.c.l.b16 %v2956
        %v3092 = vunpack.c.l.b16 %v2957
        %v3093 = vunpack.c.l.b16 %v2958
        %v3094 = vunpack.c.l.b16 %v2959
        %v3095 = vunpack.c.l.b16 %v2960
        %v3096 = vunpack.c.l.b16 %v2961
        %v3097 = vunpack.c.l.b16 %v2962
        %v3098 = vunpack.c.l.b16 %v2963
        %v3099 = vunpack.c.l.b16 %v2964
        %v3100 = vunpack.c.l.b16 %v2965
        %v3101 = vunpack.c.l.b16 %v2966
        %v3102 = vunpack.c.l.b16 %v2967
        %v3103 = vunpack.c.l.b16 %v2968
        %v3104 = vunpack.c.l.b16 %v2969
        %v3105 = vunpack.c.l.b16 %v2970
        %v3106 = vunpack.c.l.b16 %v2971
        %v3107 = vunpack.c.l.b16 %v2972
        %v3108 = vunpack.c.l.b16 %v2973
        %v3109 = vunpack.c.l.b16 %v2974
        %v3110 = vunpack.c.l.b16 %v2975
        %v3111 = vunpack.c.l.b16 %v2976
        %v3112 = vunpack.c.l.b16 %v2977
        %v3113 = vunpack.c.l.b16 %v2978
        %v3114 = vunpack.c.l.b16 %v2979
        %v3115 = vunpack.c.l.b16 %v2980
        %v3116 = vunpack.c.l.b16 %v2981
        %v3117 = vunpack.c.l.b16 %v2982
        %v3118 = vunpack.c.l.b16 %v2983
        %v3119 = vunpack.c.l.b16 %v2984
        %v3120 = vunpack.c.l.b16 %v2985
        %v3121 = vunpack.c.l.b16 %v2986
        %v3122 = vunpack.c.l.b16 %v2987
        %v3123 = vunpack.c.l.b16 %v2988
        %v3124 = vunpack.c.l.b16 %v2989
        %v3125 = vunpack.c.l.b16 %v2990
        %v3126 = vunpack.c.l.b16 %v2991
        %v3127 = vunpack.c.l.b16 %v2992
        %v3128 = vunpack.c.l.b16 %v2993
        %v3129 = vunpack.c.l.b16 %v2994
        %v3130 = vunpack.c.l.b16 %v2995
        %v3131 = vunpack.c.l.b16 %v2996
        %v3132 = vunpack.c.l.b16 %v2997
        %v3133 = vunpack.c.l.b16 %v2998
        %v3134 = vunpack.c.l.b16 %v2999
        %v3135 = vunpack.c.l.b16 %v3000
        %v3136 = vpack.c.b16 %v3073, %v3072
        %v3137 = vpack.c.b16 %v3075, %v3074
        %v3138 = vpack.c.b16 %v3077, %v3076
        %v3139 = vpack.c.b16 %v3079, %v3078
        %v3140 = vpack.c.b16 %v3081, %v3080
        %v3141 = vpack.c.b16 %v3083, %v3082
        %v3142 = vpack.c.b16 %v3085, %v3084
        %v3143 = vpack.c.b16 %v3087, %v3086
        %v3144 = vpack.c.b16 %v3089, %v3088
        %v3145 = vpack.c.b16 %v3091, %v3090
        %v3146 = vpack.c.b16 %v3093, %v3092
        %v3147 = vpack.c.b16 %v3095, %v3094
        %v3148 = vpack.c.b16 %v3097, %v3096
        %v3149 = vpack.c.b16 %v3099, %v3098
        %v3150 = vpack.c.b16 %v3101, %v3100
        %v3151 = vpack.c.b16 %v3103, %v3102
        %v3152 = vpack.c.b16 %v3105, %v3104
        %v3153 = vpack.c.b16 %v3107, %v3106
        %v3154 = vpack.c.b16 %v3109, %v3108
        %v3155 = vpack.c.b16 %v3111, %v3110
        %v3156 = vpack.c.b16 %v3113, %v3112
        %v3157 = vpack.c.b16 %v3115, %v3114
        %v3158 = vpack.c.b16 %v3117, %v3116
        %v3159 = vpack.c.b16 %v3119, %v3118
        %v3160 = vpack.c.b16 %v3121, %v3120
        %v3161 = vpack.c.b16 %v3123, %v3122
        %v3162 = vpack.c.b16 %v3125, %v3124
        %v3163 = vpack.c.b16 %v3127, %v3126
        %v3164 = vpack.c.b16 %v3129, %v3128
        %v3165 = vpack.c.b16 %v3131, %v3130
        %v3166 = vpack.c.b16 %v3133, %v3132
        %v3167 = vpack.c.b16 %v3135, %v3134
        %3200 = vmatprep.subr.bf16.mxu0 0
        %3201 = vmatpush1.bf16.msra.mxu0 %v3136
        %3202 = vmatprep.subr.bf16.mxu0 0
        %3203 = vmatpush1.bf16.msra.mxu0 %v3137
        %3204 = vmatprep.subr.bf16.mxu0 0
        %3205 = vmatpush1.bf16.msra.mxu0 %v3138
        %3206 = vmatprep.subr.bf16.mxu0 0
        %3207 = vmatpush1.bf16.msra.mxu0 %v3139
        %3208 = vmatprep.subr.bf16.mxu0 0
        %3209 = vmatpush1.bf16.msra.mxu0 %v3140
        %3210 = vmatprep.subr.bf16.mxu0 0
        %3211 = vmatpush1.bf16.msra.mxu0 %v3141
        %3212 = vmatprep.subr.bf16.mxu0 0
        %3213 = vmatpush1.bf16.msra.mxu0 %v3142
        %3214 = vmatprep.subr.bf16.mxu0 0
        %3215 = vmatpush1.bf16.msra.mxu0 %v3143
        %3216 = vmatprep.subr.bf16.mxu0 0
        %3217 = vmatpush1.bf16.msra.mxu0 %v3144
        %3218 = vmatprep.subr.bf16.mxu0 0
        %3219 = vmatpush1.bf16.msra.mxu0 %v3145
        %3220 = vmatprep.subr.bf16.mxu0 0
        %3221 = vmatpush1.bf16.msra.mxu0 %v3146
        %3222 = vmatprep.subr.bf16.mxu0 0
        %3223 = vmatpush1.bf16.msra.mxu0 %v3147
        %3224 = vmatprep.subr.bf16.mxu0 0
        %3225 = vmatpush1.bf16.msra.mxu0 %v3148
        %3226 = vmatprep.subr.bf16.mxu0 0
        %3227 = vmatpush1.bf16.msra.mxu0 %v3149
        %3228 = vmatprep.subr.bf16.mxu0 0
        %3229 = vmatpush1.bf16.msra.mxu0 %v3150
        %3230 = vmatprep.subr.bf16.mxu0 0
        %3231 = vmatpush1.bf16.msra.mxu0 %v3151
        %3232 = vmatprep.mubr.bf16.mxu0 %v2926
        %3233 = vmatmul.mubr.bf16.gmra.mrb[0].mxu0 %v2925
        %v3234 = vpop.f32.mrb[0].mxu0
        %v3235 = vadd.f32 %v3006, %v3234
        %v3236 = vpop.f32.mrb[0].mxu0
        %v3237 = vpop.f32.mrb[0].mxu0
        %v3238 = vadd.f32 %v3006, %v3237
        %v3239 = vpop.f32.mrb[0].mxu0
        %3240 = vmatprep.mubr.bf16.mxu0 %v2930
        %3241 = vmatmul.mubr.bf16.gmra.mrb[0].mxu0 %v2929
        %v3242 = vpop.f32.mrb[0].mxu0
        %v3243 = vadd.f32 %v3006, %v3242
        %v3244 = vpop.f32.mrb[0].mxu0
        %v3245 = vpop.f32.mrb[0].mxu0
        %v3246 = vadd.f32 %v3006, %v3245
        %v3247 = vpop.f32.mrb[0].mxu0
        %3248 = vmatprep.mubr.bf16.mxu0 %v2934
        %3249 = vmatmul.mubr.bf16.gmra.mrb[0].mxu0 %v2933
        %v3250 = vpop.f32.mrb[0].mxu0
        %v3251 = vadd.f32 %v3006, %v3250
        %v3252 = vpop.f32.mrb[0].mxu0
        %v3253 = vpop.f32.mrb[0].mxu0
        %v3254 = vadd.f32 %v3006, %v3253
        %v3255 = vpop.f32.mrb[0].mxu0
        %3256 = vdwg.mxu0
        %3257 = vmatprep.subr.bf16.mxu0 0
        %3258 = vmatpush1.bf16.msra.mxu0 %v3152
        %3259 = vmatprep.subr.bf16.mxu0 0
        %3260 = vmatpush1.bf16.msra.mxu0 %v3153
        %3261 = vmatprep.subr.bf16.mxu0 0
        %3262 = vmatpush1.bf16.msra.mxu0 %v3154
        %3263 = vmatprep.subr.bf16.mxu0 0
        %3264 = vmatpush1.bf16.msra.mxu0 %v3155
        %3265 = vmatprep.subr.bf16.mxu0 0
        %3266 = vmatpush1.bf16.msra.mxu0 %v3156
        %3267 = vmatprep.subr.bf16.mxu0 0
        %3268 = vmatpush1.bf16.msra.mxu0 %v3157
        %3269 = vmatprep.subr.bf16.mxu0 0
        %3270 = vmatpush1.bf16.msra.mxu0 %v3158
        %3271 = vmatprep.subr.bf16.mxu0 0
        %3272 = vmatpush1.bf16.msra.mxu0 %v3159
        %3273 = vmatprep.subr.bf16.mxu0 0
        %3274 = vmatpush1.bf16.msra.mxu0 %v3160
        %3275 = vmatprep.subr.bf16.mxu0 0
        %3276 = vmatpush1.bf16.msra.mxu0 %v3161
        %3277 = vmatprep.subr.bf16.mxu0 0
        %3278 = vmatpush1.bf16.msra.mxu0 %v3162
        %3279 = vmatprep.subr.bf16.mxu0 0
        %3280 = vmatpush1.bf16.msra.mxu0 %v3163
        %3281 = vmatprep.subr.bf16.mxu0 0
        %3282 = vmatpush1.bf16.msra.mxu0 %v3164
        %3283 = vmatprep.subr.bf16.mxu0 0
        %3284 = vmatpush1.bf16.msra.mxu0 %v3165
        %3285 = vmatprep.subr.bf16.mxu0 0
        %3286 = vmatpush1.bf16.msra.mxu0 %v3166
        %3287 = vmatprep.subr.bf16.mxu0 0
        %3288 = vmatpush1.bf16.msra.mxu0 %v3167
        %3289 = vmatprep.mubr.bf16.mxu0 %v2928
        %3290 = vmatmul.mubr.bf16.gmra.mrb[0].mxu0 %v2927
        %v3291 = vpop.f32.mrb[0].mxu0
        %v3292 = vadd.f32 %v3235, %v3291
        %v3293 = vpop.f32.mrb[0].mxu0
        %v3294 = vpop.f32.mrb[0].mxu0
        %v3295 = vadd.f32 %v3238, %v3294
        %v3296 = vpop.f32.mrb[0].mxu0
        %3297 = vmatprep.mubr.bf16.mxu0 %v2932
        %3298 = vmatmul.mubr.bf16.gmra.mrb[0].mxu0 %v2931
        %v3299 = vpop.f32.mrb[0].mxu0
        %v3300 = vadd.f32 %v3243, %v3299
        %v3301 = vpop.f32.mrb[0].mxu0
        %v3302 = vpop.f32.mrb[0].mxu0
        %v3303 = vadd.f32 %v3246, %v3302
        %v3304 = vpop.f32.mrb[0].mxu0
        %3305 = vmatprep.mubr.bf16.mxu0 %v2936
        %3306 = vmatmul.mubr.bf16.gmra.mrb[0].mxu0 %v2935
        %v3307 = vpop.f32.mrb[0].mxu0
        %v3308 = vadd.f32 %v3251, %v3307
        %v3309 = vpop.f32.mrb[0].mxu0
        %v3310 = vpop.f32.mrb[0].mxu0
        %v3311 = vadd.f32 %v3254, %v3310
        %v3312 = vpop.f32.mrb[0].mxu0
        %3313 = vdwg.mxu0
        %v3314 = vadd.f32 %v2460, %v3292
        %v3315 = vadd.f32 %v2461, %v3295
        %v3316 = vadd.f32 %v2462, %v3300
        %v3317 = vadd.f32 %v2463, %v3303
        %v3318 = vadd.f32 %v2464, %v3308
        %v3319 = vadd.f32 %v2465, %v3311
        %s3320 = scalar_lea.vmem [#allocation12], 1
        %v3321 = vld [vmem:[%s3320] sm:$0x1]
        %s3322 = scalar_lea.vmem [#allocation13], 1
        %v3323 = vld [vmem:[%s3322] sm:$0x1]
        %3324 = vadd.xlane.f32.xlu0 %v3314
        %v3325 = vpop.xlane.xlu0 %3324
        %3326 = vadd.xlane.f32.xlu0 %v3315
        %v3327 = vpop.xlane.xlu0 %3326
        %3328 = vadd.xlane.f32.xlu0 %v3316
        %v3329 = vpop.xlane.xlu0 %3328
        %3330 = vadd.xlane.f32.xlu0 %v3317
        %v3331 = vpop.xlane.xlu0 %3330
        %3332 = vadd.xlane.f32.xlu0 %v3318
        %v3333 = vpop.xlane.xlu0 %3332
        %3334 = vadd.xlane.f32.xlu0 %v3319
        %v3335 = vpop.xlane.xlu0 %3334
        %v3336 = vmul.f32 %v3325, %v923
        %v3337 = vmul.f32 %v3327, %v923
        %v3338 = vmul.f32 %v3329, %v923
        %v3339 = vmul.f32 %v3331, %v923
        %v3340 = vmul.f32 %v3333, %v923
        %v3341 = vmul.f32 %v3335, %v923
        %v3342 = vsub.f32 %v3314, %v3336
        %v3343 = vsub.f32 %v3315, %v3337
        %v3344 = vsub.f32 %v3316, %v3338
        %v3345 = vsub.f32 %v3317, %v3339
        %v3346 = vsub.f32 %v3318, %v3340
        %v3347 = vsub.f32 %v3319, %v3341
        %v3348 = vmul.f32 %v3342, %v3342
        %v3349 = vmul.f32 %v3343, %v3343
        %v3350 = vmul.f32 %v3344, %v3344
        %v3351 = vmul.f32 %v3345, %v3345
        %v3352 = vmul.f32 %v3346, %v3346
        %v3353 = vmul.f32 %v3347, %v3347
        %3354 = vadd.xlane.f32.xlu0 %v3348
        %v3355 = vpop.xlane.xlu0 %3354
        %3356 = vadd.xlane.f32.xlu0 %v3349
        %v3357 = vpop.xlane.xlu0 %3356
        %3358 = vadd.xlane.f32.xlu0 %v3350
        %v3359 = vpop.xlane.xlu0 %3358
        %3360 = vadd.xlane.f32.xlu0 %v3351
        %v3361 = vpop.xlane.xlu0 %3360
        %3362 = vadd.xlane.f32.xlu0 %v3352
        %v3363 = vpop.xlane.xlu0 %3362
        %3364 = vadd.xlane.f32.xlu0 %v3353
        %v3365 = vpop.xlane.xlu0 %3364
        %v3366 = vmul.f32 %v3355, %v923
        %v3367 = vmul.f32 %v3357, %v923
        %v3368 = vmul.f32 %v3359, %v923
        %v3369 = vmul.f32 %v3361, %v923
        %v3370 = vmul.f32 %v3363, %v923
        %v3371 = vmul.f32 %v3365, %v923
        %v3372 = vadd.f32 %v3366, 1e-05
        %v3373 = vadd.f32 %v3367, 1e-05
        %v3374 = vadd.f32 %v3368, 1e-05
        %v3375 = vadd.f32 %v3369, 1e-05
        %v3376 = vadd.f32 %v3370, 1e-05
        %v3377 = vadd.f32 %v3371, 1e-05
        %v3378 = vrsqrt.pop %v3372
        %v3379 = vrsqrt.pop %v3373
        %v3380 = vrsqrt.pop %v3374
        %v3381 = vrsqrt.pop %v3375
        %v3382 = vrsqrt.pop %v3376
        %v3383 = vrsqrt.pop %v3377
        %v3384 = vmul.f32 %v3342, %v3378
        %v3385 = vmul.f32 %v3343, %v3379
        %v3386 = vmul.f32 %v3344, %v3380
        %v3387 = vmul.f32 %v3345, %v3381
        %v3388 = vmul.f32 %v3346, %v3382
        %v3389 = vmul.f32 %v3347, %v3383
        %v3391 = vlaneseq
        %v3392 = vshrl.u32 %v3391, 7
        %v3393 = vsub.s32 0, %v3392
        %v3394 = vrot.slane %v3321, %v3393
        %v3396 = vmul.f32 %v3384, %v3394
        %v3397 = vmul.f32 %v3385, %v3394
        %v3398 = vmul.f32 %v3386, %v3394
        %v3399 = vmul.f32 %v3387, %v3394
        %v3400 = vmul.f32 %v3388, %v3394
        %v3401 = vmul.f32 %v3389, %v3394
        %v3403 = vlaneseq
        %v3404 = vshrl.u32 %v3403, 7
        %v3405 = vsub.s32 0, %v3404
        %v3406 = vrot.slane %v3323, %v3405
        %v3408 = vadd.f32 %v3396, %v3406
        %v3409 = vadd.f32 %v3397, %v3406
        %v3410 = vadd.f32 %v3398, %v3406
        %v3411 = vadd.f32 %v3399, %v3406
        %v3412 = vadd.f32 %v3400, %v3406
        %v3413 = vadd.f32 %v3401, %v3406
        %v3414 = vpack.c.bf16 %v3409, %v3408
        %v3415 = vpack.c.bf16 %v3411, %v3410
        %v3416 = vpack.c.bf16 %v3413, %v3412
        %s3417 = scalar_lea.vmem [#allocation15], 192
        %v3418 = vld [vmem:[%s3417] sm:$0xff]
        %v3419 = vld [vmem:[%s3417 + $0x8] sm:$0xf]
        %v3420 = vld [vmem:[%s3417 + $0xc] sm:$0xff]
        %v3421 = vld [vmem:[%s3417 + $0x14] sm:$0xf]
        %v3422 = vld [vmem:[%s3417 + $0x18] sm:$0xff]
        %v3423 = vld [vmem:[%s3417 + $0x20] sm:$0xf]
        %v3424 = vld [vmem:[%s3417 + $0x24] sm:$0xff]
        %v3425 = vld [vmem:[%s3417 + $0x2c] sm:$0xf]
        %v3426 = vld [vmem:[%s3417 + $0x30] sm:$0xff]
        %v3427 = vld [vmem:[%s3417 + $0x38] sm:$0xf]
        %v3428 = vld [vmem:[%s3417 + $0x3c] sm:$0xff]
        %v3429 = vld [vmem:[%s3417 + $0x44] sm:$0xf]
        %v3430 = vld [vmem:[%s3417 + $0x48] sm:$0xff]
        %v3431 = vld [vmem:[%s3417 + $0x50] sm:$0xf]
        %v3432 = vld [vmem:[%s3417 + $0x54] sm:$0xff]
        %v3433 = vld [vmem:[%s3417 + $0x5c] sm:$0xf]
        %v3434 = vld [vmem:[%s3417 + $0x60] sm:$0xff]
        %v3435 = vld [vmem:[%s3417 + $0x68] sm:$0xf]
        %v3436 = vld [vmem:[%s3417 + $0x6c] sm:$0xff]
        %v3437 = vld [vmem:[%s3417 + $0x74] sm:$0xf]
        %v3438 = vld [vmem:[%s3417 + $0x78] sm:$0xff]
        %v3439 = vld [vmem:[%s3417 + $0x80] sm:$0xf]
        %v3440 = vld [vmem:[%s3417 + $0x84] sm:$0xff]
        %v3441 = vld [vmem:[%s3417 + $0x8c] sm:$0xf]
        %v3442 = vld [vmem:[%s3417 + $0x90] sm:$0xff]
        %v3443 = vld [vmem:[%s3417 + $0x98] sm:$0xf]
        %v3444 = vld [vmem:[%s3417 + $0x9c] sm:$0xff]
        %v3445 = vld [vmem:[%s3417 + $0xa4] sm:$0xf]
        %v3446 = vld [vmem:[%s3417 + $0xa8] sm:$0xff]
        %v3447 = vld [vmem:[%s3417 + $0xb0] sm:$0xf]
        %v3448 = vld [vmem:[%s3417 + $0xb4] sm:$0xff]
        %v3449 = vld [vmem:[%s3417 + $0xbc] sm:$0xf]
        %s3450 = scalar_lea.vmem [#allocation16], 3
        %v3451 = vld [vmem:[%s3450] sm:$0x7]
        %v3453 = vlaneseq
        %v3454 = vshrl.u32 %v3453, 7
        %v3455 = vsub.s32 0, %v3454
        %v3456 = vrot.slane %v3451, %v3455
        %v3457 = vlaneseq
        %v3458 = vshrl.u32 %v3457, 7
        %v3459 = vsub.s32 1, %v3458
        %v3460 = vrot.slane %v3451, %v3459
        %v3461 = vlaneseq
        %v3462 = vshrl.u32 %v3461, 7
        %v3463 = vsub.s32 2, %v3462
        %v3464 = vrot.slane %v3451, %v3463
        %v3500 = vunpack.c.l.b16 %v3418
        %v3501 = vunpack.c.h.b16 %v3418
        %v3502 = vunpack.c.l.b16 %v3419
        %v3503 = vunpack.c.l.b16 %v3420
        %v3504 = vunpack.c.h.b16 %v3420
        %v3505 = vunpack.c.l.b16 %v3421
        %v3506 = vunpack.c.l.b16 %v3422
        %v3507 = vunpack.c.h.b16 %v3422
        %v3508 = vunpack.c.l.b16 %v3423
        %v3509 = vunpack.c.l.b16 %v3424
        %v3510 = vunpack.c.h.b16 %v3424
        %v3511 = vunpack.c.l.b16 %v3425
        %v3512 = vunpack.c.l.b16 %v3426
        %v3513 = vunpack.c.h.b16 %v3426
        %v3514 = vunpack.c.l.b16 %v3427
        %v3515 = vunpack.c.l.b16 %v3428
        %v3516 = vunpack.c.h.b16 %v3428
        %v3517 = vunpack.c.l.b16 %v3429
        %v3518 = vunpack.c.l.b16 %v3430
        %v3519 = vunpack.c.h.b16 %v3430
        %v3520 = vunpack.c.l.b16 %v3431
        %v3521 = vunpack.c.l.b16 %v3432
        %v3522 = vunpack.c.h.b16 %v3432
        %v3523 = vunpack.c.l.b16 %v3433
        %v3524 = vunpack.c.l.b16 %v3434
        %v3525 = vunpack.c.h.b16 %v3434
        %v3526 = vunpack.c.l.b16 %v3435
        %v3527 = vunpack.c.l.b16 %v3436
        %v3528 = vunpack.c.h.b16 %v3436
        %v3529 = vunpack.c.l.b16 %v3437
        %v3530 = vunpack.c.l.b16 %v3438
        %v3531 = vunpack.c.h.b16 %v3438
        %v3532 = vunpack.c.l.b16 %v3439
        %v3533 = vunpack.c.l.b16 %v3440
        %v3534 = vunpack.c.h.b16 %v3440
        %v3535 = vunpack.c.l.b16 %v3441
        %v3536 = vunpack.c.l.b16 %v3442
        %v3537 = vunpack.c.h.b16 %v3442
        %v3538 = vunpack.c.l.b16 %v3443
        %v3539 = vunpack.c.l.b16 %v3444
        %v3540 = vunpack.c.h.b16 %v3444
        %v3541 = vunpack.c.l.b16 %v3445
        %v3542 = vunpack.c.l.b16 %v3446
        %v3543 = vunpack.c.h.b16 %v3446
        %v3544 = vunpack.c.l.b16 %v3447
        %v3545 = vunpack.c.l.b16 %v3448
        %v3546 = vunpack.c.h.b16 %v3448
        %v3547 = vunpack.c.l.b16 %v3449
        %v3548 = vpack.c.b16 %v3503, %v3500
        %v3549 = vpack.c.b16 %v3504, %v3501
        %v3550 = vpack.c.b16 %v3505, %v3502
        %v3551 = vpack.c.b16 %v3509, %v3506
        %v3552 = vpack.c.b16 %v3510, %v3507
        %v3553 = vpack.c.b16 %v3511, %v3508
        %v3554 = vpack.c.b16 %v3515, %v3512
        %v3555 = vpack.c.b16 %v3516, %v3513
        %v3556 = vpack.c.b16 %v3517, %v3514
        %v3557 = vpack.c.b16 %v3521, %v3518
        %v3558 = vpack.c.b16 %v3522, %v3519
        %v3559 = vpack.c.b16 %v3523, %v3520
        %v3560 = vpack.c.b16 %v3527, %v3524
        %v3561 = vpack.c.b16 %v3528, %v3525
        %v3562 = vpack.c.b16 %v3529, %v3526
        %v3563 = vpack.c.b16 %v3533, %v3530
        %v3564 = vpack.c.b16 %v3534, %v3531
        %v3565 = vpack.c.b16 %v3535, %v3532
        %v3566 = vpack.c.b16 %v3539, %v3536
        %v3567 = vpack.c.b16 %v3540, %v3537
        %v3568 = vpack.c.b16 %v3541, %v3538
        %v3569 = vpack.c.b16 %v3545, %v3542
        %v3570 = vpack.c.b16 %v3546, %v3543
        %v3571 = vpack.c.b16 %v3547, %v3544
        %3596 = vmatprep.subr.bf16.mxu0 %v3549
        %3597 = vmatpush1.bf16.msra.mxu0 %v3548
        %3598 = vmatprep.subr.bf16.mxu0 %v3552
        %3599 = vmatpush1.bf16.msra.mxu0 %v3551
        %3600 = vmatprep.subr.bf16.mxu0 %v3555
        %3601 = vmatpush1.bf16.msra.mxu0 %v3554
        %3602 = vmatprep.subr.bf16.mxu0 %v3558
        %3603 = vmatpush1.bf16.msra.mxu0 %v3557
        %3604 = vmatprep.subr.bf16.mxu0 %v3561
        %3605 = vmatpush1.bf16.msra.mxu0 %v3560
        %3606 = vmatprep.subr.bf16.mxu0 %v3564
        %3607 = vmatpush1.bf16.msra.mxu0 %v3563
        %3608 = vmatprep.subr.bf16.mxu0 %v3567
        %3609 = vmatpush1.bf16.msra.mxu0 %v3566
        %3610 = vmatprep.subr.bf16.mxu0 %v3570
        %3611 = vmatpush1.bf16.msra.mxu0 %v3569
        %3612 = vmatprep.subr.bf16.mxu0 0
        %3613 = vmatpush1.bf16.msra.mxu0 0
        %3614 = vmatprep.subr.bf16.mxu0 0
        %3615 = vmatpush1.bf16.msra.mxu0 0
        %3616 = vmatprep.subr.bf16.mxu0 0
        %3617 = vmatpush1.bf16.msra.mxu0 0
        %3618 = vmatprep.subr.bf16.mxu0 0
        %3619 = vmatpush1.bf16.msra.mxu0 0
        %3620 = vmatprep.subr.bf16.mxu0 0
        %3621 = vmatpush1.bf16.msra.mxu0 0
        %3622 = vmatprep.subr.bf16.mxu0 0
        %3623 = vmatpush1.bf16.msra.mxu0 0
        %3624 = vmatprep.subr.bf16.mxu0 0
        %3625 = vmatpush1.bf16.msra.mxu0 0
        %3626 = vmatprep.subr.bf16.mxu0 0
        %3627 = vmatpush1.bf16.msra.mxu0 0
        %3628 = vmatprep.mubr.bf16.mxu0 0
        %3629 = vmatmul.mubr.bf16.gmra.mrb[0].mxu0 %v3414
        %v3630 = vpop.f32.mrb[0].mxu0
        %v3631 = vadd.f32 %v3456, %v3630
        %v3632 = vpop.f32.mrb[0].mxu0
        %v3633 = vadd.f32 %v3460, %v3632
        %v3634 = vpop.f32.mrb[0].mxu0
        %v3635 = vadd.f32 %v3456, %v3634
        %v3636 = vpop.f32.mrb[0].mxu0
        %v3637 = vadd.f32 %v3460, %v3636
        %3638 = vmatprep.mubr.bf16.mxu0 0
        %3639 = vmatmul.mubr.bf16.gmra.mrb[0].mxu0 %v3415
        %v3640 = vpop.f32.mrb[0].mxu0
        %v3641 = vadd.f32 %v3456, %v3640
        %v3642 = vpop.f32.mrb[0].mxu0
        %v3643 = vadd.f32 %v3460, %v3642
        %v3644 = vpop.f32.mrb[0].mxu0
        %v3645 = vadd.f32 %v3456, %v3644
        %v3646 = vpop.f32.mrb[0].mxu0
        %v3647 = vadd.f32 %v3460, %v3646
        %3648 = vmatprep.mubr.bf16.mxu0 0
        %3649 = vmatmul.mubr.bf16.gmra.mrb[0].mxu0 %v3416
        %v3650 = vpop.f32.mrb[0].mxu0
        %v3651 = vadd.f32 %v3456, %v3650
        %v3652 = vpop.f32.mrb[0].mxu0
        %v3653 = vadd.f32 %v3460, %v3652
        %v3654 = vpop.f32.mrb[0].mxu0
        %v3655 = vadd.f32 %v3456, %v3654
        %v3656 = vpop.f32.mrb[0].mxu0
        %v3657 = vadd.f32 %v3460, %v3656
        %3658 = vdwg.mxu0
        %3659 = vmatprep.subr.bf16.mxu0 0
        %3660 = vmatpush1.bf16.msra.mxu0 %v3550
        %3661 = vmatprep.subr.bf16.mxu0 0
        %3662 = vmatpush1.bf16.msra.mxu0 %v3553
        %3663 = vmatprep.subr.bf16.mxu0 0
        %3664 = vmatpush1.bf16.msra.mxu0 %v3556
        %3665 = vmatprep.subr.bf16.mxu0 0
        %3666 = vmatpush1.bf16.msra.mxu0 %v3559
        %3667 = vmatprep.subr.bf16.mxu0 0
        %3668 = vmatpush1.bf16.msra.mxu0 %v3562
        %3669 = vmatprep.subr.bf16.mxu0 0
        %3670 = vmatpush1.bf16.msra.mxu0 %v3565
        %3671 = vmatprep.subr.bf16.mxu0 0
        %3672 = vmatpush1.bf16.msra.mxu0 %v3568
        %3673 = vmatprep.subr.bf16.mxu0 0
        %3674 = vmatpush1.bf16.msra.mxu0 %v3571
        %3675 = vmatprep.subr.bf16.mxu0 0
        %3676 = vmatpush1.bf16.msra.mxu0 0
        %3677 = vmatprep.subr.bf16.mxu0 0
        %3678 = vmatpush1.bf16.msra.mxu0 0
        %3679 = vmatprep.subr.bf16.mxu0 0
        %3680 = vmatpush1.bf16.msra.mxu0 0
        %3681 = vmatprep.subr.bf16.mxu0 0
        %3682 = vmatpush1.bf16.msra.mxu0 0
        %3683 = vmatprep.subr.bf16.mxu0 0
        %3684 = vmatpush1.bf16.msra.mxu0 0
        %3685 = vmatprep.subr.bf16.mxu0 0
        %3686 = vmatpush1.bf16.msra.mxu0 0
        %3687 = vmatprep.subr.bf16.mxu0 0
        %3688 = vmatpush1.bf16.msra.mxu0 0
        %3689 = vmatprep.subr.bf16.mxu0 0
        %3690 = vmatpush1.bf16.msra.mxu0 0
        %3691 = vmatprep.mubr.bf16.mxu0 0
        %3692 = vmatmul.mubr.bf16.gmra.mrb[0].mxu0 %v3414
        %v3693 = vpop.f32.mrb[0].mxu0
        %v3694 = vadd.f32 %v3464, %v3693
        %v3695 = vpop.f32.mrb[0].mxu0
        %v3696 = vpop.f32.mrb[0].mxu0
        %v3697 = vadd.f32 %v3464, %v3696
        %v3698 = vpop.f32.mrb[0].mxu0
        %3699 = vmatprep.mubr.bf16.mxu0 0
        %3700 = vmatmul.mubr.bf16.gmra.mrb[0].mxu0 %v3415
        %v3701 = vpop.f32.mrb[0].mxu0
        %v3702 = vadd.f32 %v3464, %v3701
        %v3703 = vpop.f32.mrb[0].mxu0
        %v3704 = vpop.f32.mrb[0].mxu0
        %v3705 = vadd.f32 %v3464, %v3704
        %v3706 = vpop.f32.mrb[0].mxu0
        %3707 = vmatprep.mubr.bf16.mxu0 0
        %3708 = vmatmul.mubr.bf16.gmra.mrb[0].mxu0 %v3416
        %v3709 = vpop.f32.mrb[0].mxu0
        %v3710 = vadd.f32 %v3464, %v3709
        %v3711 = vpop.f32.mrb[0].mxu0
        %v3712 = vpop.f32.mrb[0].mxu0
        %v3713 = vadd.f32 %v3464, %v3712
        %v3714 = vpop.f32.mrb[0].mxu0
        %3715 = vdwg.mxu0
        %v3716 = vmul.f32 %v3631, 0.17677669
        %v3717 = vmul.f32 %v3635, 0.17677669
        %v3718 = vmul.f32 %v3641, 0.17677669
        %v3719 = vmul.f32 %v3645, 0.17677669
        %v3720 = vmul.f32 %v3651, 0.17677669
        %v3721 = vmul.f32 %v3655, 0.17677669
        %v3722 = vpack.c.bf16 %v3717, %v3716
        %v3723 = vpack.c.bf16 %v3719, %v3718
        %v3724 = vpack.c.bf16 %v3721, %v3720
        %v3725 = vpack.c.bf16 %v3637, %v3633
        %v3726 = vpack.c.bf16 %v3647, %v3643
        %v3727 = vpack.c.bf16 %v3657, %v3653
        %v3728 = vpack.c.bf16 %v3697, %v3694
        %v3729 = vpack.c.bf16 %v3705, %v3702
        %v3730 = vpack.c.bf16 %v3713, %v3710
        %v3732 = vsel %vm1317, %v3722, 0
        %v3735 = vsel %vm1317, %v3723, 0
        %v3738 = vsel %vm1317, %v3724, 0
        %v3741 = vsel %vm1317, %v3725, 0
        %v3744 = vsel %vm1317, %v3726, 0
        %v3747 = vsel %vm1317, %v3727, 0
        %3749 = vmatprep.subr.bf16.mxu0 0
        %3750 = vmatpush1.bf16.xpose.msra.mxu0 %v3741
        %3751 = vmatprep.subr.bf16.mxu0 0
        %3752 = vmatpush1.bf16.xpose.msra.mxu0 %v3744
        %3753 = vmatprep.subr.bf16.mxu0 0
        %3754 = vmatpush1.bf16.xpose.msra.mxu0 %v3747
        %3755 = vmatprep.subr.bf16.mxu0 0
        %3756 = vmatpush1.bf16.xpose.msra.mxu0 0
        %3757 = vmatprep.subr.bf16.mxu0 0
        %3758 = vmatpush1.bf16.xpose.msra.mxu0 0
        %3759 = vmatprep.subr.bf16.mxu0 0
        %3760 = vmatpush1.bf16.xpose.msra.mxu0 0
        %3761 = vmatprep.subr.bf16.mxu0 0
        %3762 = vmatpush1.bf16.xpose.msra.mxu0 0
        %3763 = vmatprep.subr.bf16.mxu0 0
        %3764 = vmatpush1.bf16.xpose.msra.mxu0 0
        %3765 = vmatprep.subr.bf16.mxu0 0
        %3766 = vmatpush1.bf16.xpose.msra.mxu0 0
        %3767 = vmatprep.subr.bf16.mxu0 0
        %3768 = vmatpush1.bf16.xpose.msra.mxu0 0
        %3769 = vmatprep.subr.bf16.mxu0 0
        %3770 = vmatpush1.bf16.xpose.msra.mxu0 0
        %3771 = vmatprep.subr.bf16.mxu0 0
        %3772 = vmatpush1.bf16.xpose.msra.mxu0 0
        %3773 = vmatprep.subr.bf16.mxu0 0
        %3774 = vmatpush1.bf16.xpose.msra.mxu0 0
        %3775 = vmatprep.subr.bf16.mxu0 0
        %3776 = vmatpush1.bf16.xpose.msra.mxu0 0
        %3777 = vmatprep.subr.bf16.mxu0 0
        %3778 = vmatpush1.bf16.xpose.msra.mxu0 0
        %3779 = vmatprep.subr.bf16.mxu0 0
        %3780 = vmatpush1.bf16.xpose.msra.mxu0 0
        %3781 = vmatprep.mubr.bf16.mxu0 0
        %3782 = vmatmul.mubr.bf16.gmra.mrb[0].mxu0 %v3732
        %v3783 = vpop.f32.mrb[0].mxu0
        %v3784 = vadd.f32 0.0, %v3783
        %v3785 = vpop.f32.mrb[0].mxu0
        %v3786 = vpop.f32.mrb[0].mxu0
        %v3787 = vadd.f32 0.0, %v3786
        %v3788 = vpop.f32.mrb[0].mxu0
        %3789 = vmatprep.mubr.bf16.mxu0 0
        %3790 = vmatmul.mubr.bf16.gmra.mrb[0].mxu0 %v3735
        %v3791 = vpop.f32.mrb[0].mxu0
        %v3792 = vadd.f32 0.0, %v3791
        %v3793 = vpop.f32.mrb[0].mxu0
        %v3794 = vpop.f32.mrb[0].mxu0
        %v3795 = vadd.f32 0.0, %v3794
        %v3796 = vpop.f32.mrb[0].mxu0
        %3797 = vmatprep.mubr.bf16.mxu0 0
        %3798 = vmatmul.mubr.bf16.gmra.mrb[0].mxu0 %v3738
        %v3799 = vpop.f32.mrb[0].mxu0
        %v3800 = vadd.f32 0.0, %v3799
        %v3801 = vpop.f32.mrb[0].mxu0
        %v3802 = vpop.f32.mrb[0].mxu0
        %v3803 = vadd.f32 0.0, %v3802
        %v3804 = vpop.f32.mrb[0].mxu0
        %3805 = vdwg.mxu0
        %v3806 = vsel %vm1393, %v3784, -inf
        %3807 = vmax.xlane.f32.xlu0 %v3806
        %v3808 = vpop.xlane.xlu0 %3807
        %v3809 = vsel %vm1393, %v3787, -inf
        %3810 = vmax.xlane.f32.xlu0 %v3809
        %v3811 = vpop.xlane.xlu0 %3810
        %v3812 = vsel %vm1393, %v3792, -inf
        %3813 = vmax.xlane.f32.xlu0 %v3812
        %v3814 = vpop.xlane.xlu0 %3813
        %v3815 = vsel %vm1393, %v3795, -inf
        %3816 = vmax.xlane.f32.xlu0 %v3815
        %v3817 = vpop.xlane.xlu0 %3816
        %v3818 = vsel %vm1393, %v3800, -inf
        %3819 = vmax.xlane.f32.xlu0 %v3818
        %v3820 = vpop.xlane.xlu0 %3819
        %v3821 = vsel %vm1393, %v3803, -inf
        %3822 = vmax.xlane.f32.xlu0 %v3821
        %v3823 = vpop.xlane.xlu0 %3822
        %v3824 = vsub.f32 %v3784, %v3808
        %v3825 = vsub.f32 %v3787, %v3811
        %v3826 = vsub.f32 %v3792, %v3814
        %v3827 = vsub.f32 %v3795, %v3817
        %v3828 = vsub.f32 %v3800, %v3820
        %v3829 = vsub.f32 %v3803, %v3823
        %v3830 = vmul.f32 %v3824, 1.442695
        %v3831 = vpow.pop %v3830
        %v3832 = vmul.f32 %v3825, 1.442695
        %v3833 = vpow.pop %v3832
        %v3834 = vmul.f32 %v3826, 1.442695
        %v3835 = vpow.pop %v3834
        %v3836 = vmul.f32 %v3827, 1.442695
        %v3837 = vpow.pop %v3836
        %v3838 = vmul.f32 %v3828, 1.442695
        %v3839 = vpow.pop %v3838
        %v3840 = vmul.f32 %v3829, 1.442695
        %v3841 = vpow.pop %v3840
        %v3842 = vsel %vm1393, %v3831, 0.0
        %3843 = vadd.xlane.f32.xlu0 %v3842
        %v3844 = vpop.xlane.xlu0 %3843
        %v3845 = vsel %vm1393, %v3833, 0.0
        %3846 = vadd.xlane.f32.xlu0 %v3845
        %v3847 = vpop.xlane.xlu0 %3846
        %v3848 = vsel %vm1393, %v3835, 0.0
        %3849 = vadd.xlane.f32.xlu0 %v3848
        %v3850 = vpop.xlane.xlu0 %3849
        %v3851 = vsel %vm1393, %v3837, 0.0
        %3852 = vadd.xlane.f32.xlu0 %v3851
        %v3853 = vpop.xlane.xlu0 %3852
        %v3854 = vsel %vm1393, %v3839, 0.0
        %3855 = vadd.xlane.f32.xlu0 %v3854
        %v3856 = vpop.xlane.xlu0 %3855
        %v3857 = vsel %vm1393, %v3841, 0.0
        %3858 = vadd.xlane.f32.xlu0 %v3857
        %v3859 = vpop.xlane.xlu0 %3858
        %v3860 = vrcp.pop %v3844
        %v3861 = vrcp.pop %v3847
        %v3862 = vrcp.pop %v3850
        %v3863 = vrcp.pop %v3853
        %v3864 = vrcp.pop %v3856
        %v3865 = vrcp.pop %v3859
        %v3866 = vmul.f32 %v3831, %v3860
        %v3867 = vmul.f32 %v3833, %v3861
        %v3868 = vmul.f32 %v3835, %v3862
        %v3869 = vmul.f32 %v3837, %v3863
        %v3870 = vmul.f32 %v3839, %v3864
        %v3871 = vmul.f32 %v3841, %v3865
        %v3872 = vpack.c.bf16 %v3867, %v3866
        %v3873 = vpack.c.bf16 %v3869, %v3868
        %v3874 = vpack.c.bf16 %v3871, %v3870
        %v3876 = vsel %vm1393, %v3872, 0
        %v3879 = vsel %vm1393, %v3873, 0
        %v3882 = vsel %vm1393, %v3874, 0
        %3884 = vmatprep.subr.bf16.mxu0 0
        %3885 = vmatpush1.bf16.msra.mxu0 %v3728
        %3886 = vmatprep.subr.bf16.mxu0 0
        %3887 = vmatpush1.bf16.msra.mxu0 %v3729
        %3888 = vmatprep.subr.bf16.mxu0 0
        %3889 = vmatpush1.bf16.msra.mxu0 %v3730
        %3890 = vmatprep.subr.bf16.mxu0 0
        %3891 = vmatpush1.bf16.msra.mxu0 0
        %3892 = vmatprep.subr.bf16.mxu0 0
        %3893 = vmatpush1.bf16.msra.mxu0 0
        %3894 = vmatprep.subr.bf16.mxu0 0
        %3895 = vmatpush1.bf16.msra.mxu0 0
        %3896 = vmatprep.subr.bf16.mxu0 0
        %3897 = vmatpush1.bf16.msra.mxu0 0
        %3898 = vmatprep.subr.bf16.mxu0 0
        %3899 = vmatpush1.bf16.msra.mxu0 0
        %3900 = vmatprep.subr.bf16.mxu0 0
        %3901 = vmatpush1.bf16.msra.mxu0 0
        %3902 = vmatprep.subr.bf16.mxu0 0
        %3903 = vmatpush1.bf16.msra.mxu0 0
        %3904 = vmatprep.subr.bf16.mxu0 0
        %3905 = vmatpush1.bf16.msra.mxu0 0
        %3906 = vmatprep.subr.bf16.mxu0 0
        %3907 = vmatpush1.bf16.msra.mxu0 0
        %3908 = vmatprep.subr.bf16.mxu0 0
        %3909 = vmatpush1.bf16.msra.mxu0 0
        %3910 = vmatprep.subr.bf16.mxu0 0
        %3911 = vmatpush1.bf16.msra.mxu0 0
        %3912 = vmatprep.subr.bf16.mxu0 0
        %3913 = vmatpush1.bf16.msra.mxu0 0
        %3914 = vmatprep.subr.bf16.mxu0 0
        %3915 = vmatpush1.bf16.msra.mxu0 0
        %3916 = vmatprep.mubr.bf16.mxu0 0
        %3917 = vmatmul.mubr.bf16.gmra.mrb[0].mxu0 %v3876
        %v3918 = vpop.f32.mrb[0].mxu0
        %v3919 = vadd.f32 0.0, %v3918
        %v3920 = vpop.f32.mrb[0].mxu0
        %v3921 = vpop.f32.mrb[0].mxu0
        %v3922 = vadd.f32 0.0, %v3921
        %v3923 = vpop.f32.mrb[0].mxu0
        %3924 = vmatprep.mubr.bf16.mxu0 0
        %3925 = vmatmul.mubr.bf16.gmra.mrb[0].mxu0 %v3879
        %v3926 = vpop.f32.mrb[0].mxu0
        %v3927 = vadd.f32 0.0, %v3926
        %v3928 = vpop.f32.mrb[0].mxu0
        %v3929 = vpop.f32.mrb[0].mxu0
        %v3930 = vadd.f32 0.0, %v3929
        %v3931 = vpop.f32.mrb[0].mxu0
        %3932 = vmatprep.mubr.bf16.mxu0 0
        %3933 = vmatmul.mubr.bf16.gmra.mrb[0].mxu0 %v3882
        %v3934 = vpop.f32.mrb[0].mxu0
        %v3935 = vadd.f32 0.0, %v3934
        %v3936 = vpop.f32.mrb[0].mxu0
        %v3937 = vpop.f32.mrb[0].mxu0
        %v3938 = vadd.f32 0.0, %v3937
        %v3939 = vpop.f32.mrb[0].mxu0
        %3940 = vdwg.mxu0
        %3944 = vrot.lane.b32.xlu0 %v3722, 96
        %v3945 = vpop.permute.xlu0 %3944
        %3946 = vrot.lane.b32.xlu0 %v3723, 96
        %v3947 = vpop.permute.xlu0 %3946
        %3948 = vrot.lane.b32.xlu0 %v3724, 96
        %v3949 = vpop.permute.xlu0 %3948
        %3953 = vrot.lane.b32.xlu0 %v3725, 96
        %v3954 = vpop.permute.xlu0 %3953
        %3955 = vrot.lane.b32.xlu0 %v3726, 96
        %v3956 = vpop.permute.xlu0 %3955
        %3957 = vrot.lane.b32.xlu0 %v3727, 96
        %v3958 = vpop.permute.xlu0 %3957
        %v3960 = vsel %vm1317, %v3945, 0
        %v3963 = vsel %vm1317, %v3947, 0
        %v3966 = vsel %vm1317, %v3949, 0
        %v3969 = vsel %vm1317, %v3954, 0
        %v3972 = vsel %vm1317, %v3956, 0
        %v3975 = vsel %vm1317, %v3958, 0
        %3977 = vmatprep.subr.bf16.mxu0 0
        %3978 = vmatpush1.bf16.xpose.msra.mxu0 %v3969
        %3979 = vmatprep.subr.bf16.mxu0 0
        %3980 = vmatpush1.bf16.xpose.msra.mxu0 %v3972
        %3981 = vmatprep.subr.bf16.mxu0 0
        %3982 = vmatpush1.bf16.xpose.msra.mxu0 %v3975
        %3983 = vmatprep.subr.bf16.mxu0 0
        %3984 = vmatpush1.bf16.xpose.msra.mxu0 0
        %3985 = vmatprep.subr.bf16.mxu0 0
        %3986 = vmatpush1.bf16.xpose.msra.mxu0 0
        %3987 = vmatprep.subr.bf16.mxu0 0
        %3988 = vmatpush1.bf16.xpose.msra.mxu0 0
        %3989 = vmatprep.subr.bf16.mxu0 0
        %3990 = vmatpush1.bf16.xpose.msra.mxu0 0
        %3991 = vmatprep.subr.bf16.mxu0 0
        %3992 = vmatpush1.bf16.xpose.msra.mxu0 0
        %3993 = vmatprep.subr.bf16.mxu0 0
        %3994 = vmatpush1.bf16.xpose.msra.mxu0 0
        %3995 = vmatprep.subr.bf16.mxu0 0
        %3996 = vmatpush1.bf16.xpose.msra.mxu0 0
        %3997 = vmatprep.subr.bf16.mxu0 0
        %3998 = vmatpush1.bf16.xpose.msra.mxu0 0
        %3999 = vmatprep.subr.bf16.mxu0 0
        %4000 = vmatpush1.bf16.xpose.msra.mxu0 0
        %4001 = vmatprep.subr.bf16.mxu0 0
        %4002 = vmatpush1.bf16.xpose.msra.mxu0 0
        %4003 = vmatprep.subr.bf16.mxu0 0
        %4004 = vmatpush1.bf16.xpose.msra.mxu0 0
        %4005 = vmatprep.subr.bf16.mxu0 0
        %4006 = vmatpush1.bf16.xpose.msra.mxu0 0
        %4007 = vmatprep.subr.bf16.mxu0 0
        %4008 = vmatpush1.bf16.xpose.msra.mxu0 0
        %4009 = vmatprep.mubr.bf16.mxu0 0
        %4010 = vmatmul.mubr.bf16.gmra.mrb[0].mxu0 %v3960
        %v4011 = vpop.f32.mrb[0].mxu0
        %v4012 = vadd.f32 0.0, %v4011
        %v4013 = vpop.f32.mrb[0].mxu0
        %v4014 = vpop.f32.mrb[0].mxu0
        %v4015 = vadd.f32 0.0, %v4014
        %v4016 = vpop.f32.mrb[0].mxu0
        %4017 = vmatprep.mubr.bf16.mxu0 0
        %4018 = vmatmul.mubr.bf16.gmra.mrb[0].mxu0 %v3963
        %v4019 = vpop.f32.mrb[0].mxu0
        %v4020 = vadd.f32 0.0, %v4019
        %v4021 = vpop.f32.mrb[0].mxu0
        %v4022 = vpop.f32.mrb[0].mxu0
        %v4023 = vadd.f32 0.0, %v4022
        %v4024 = vpop.f32.mrb[0].mxu0
        %4025 = vmatprep.mubr.bf16.mxu0 0
        %4026 = vmatmul.mubr.bf16.gmra.mrb[0].mxu0 %v3966
        %v4027 = vpop.f32.mrb[0].mxu0
        %v4028 = vadd.f32 0.0, %v4027
        %v4029 = vpop.f32.mrb[0].mxu0
        %v4030 = vpop.f32.mrb[0].mxu0
        %v4031 = vadd.f32 0.0, %v4030
        %v4032 = vpop.f32.mrb[0].mxu0
        %4033 = vdwg.mxu0
        %v4034 = vsel %vm1393, %v4012, -inf
        %4035 = vmax.xlane.f32.xlu0 %v4034
        %v4036 = vpop.xlane.xlu0 %4035
        %v4037 = vsel %vm1393, %v4015, -inf
        %4038 = vmax.xlane.f32.xlu0 %v4037
        %v4039 = vpop.xlane.xlu0 %4038
        %v4040 = vsel %vm1393, %v4020, -inf
        %4041 = vmax.xlane.f32.xlu0 %v4040
        %v4042 = vpop.xlane.xlu0 %4041
        %v4043 = vsel %vm1393, %v4023, -inf
        %4044 = vmax.xlane.f32.xlu0 %v4043
        %v4045 = vpop.xlane.xlu0 %4044
        %v4046 = vsel %vm1393, %v4028, -inf
        %4047 = vmax.xlane.f32.xlu0 %v4046
        %v4048 = vpop.xlane.xlu0 %4047
        %v4049 = vsel %vm1393, %v4031, -inf
        %4050 = vmax.xlane.f32.xlu0 %v4049
        %v4051 = vpop.xlane.xlu0 %4050
        %v4052 = vsub.f32 %v4012, %v4036
        %v4053 = vsub.f32 %v4015, %v4039
        %v4054 = vsub.f32 %v4020, %v4042
        %v4055 = vsub.f32 %v4023, %v4045
        %v4056 = vsub.f32 %v4028, %v4048
        %v4057 = vsub.f32 %v4031, %v4051
        %v4058 = vmul.f32 %v4052, 1.442695
        %v4059 = vpow.pop %v4058
        %v4060 = vmul.f32 %v4053, 1.442695
        %v4061 = vpow.pop %v4060
        %v4062 = vmul.f32 %v4054, 1.442695
        %v4063 = vpow.pop %v4062
        %v4064 = vmul.f32 %v4055, 1.442695
        %v4065 = vpow.pop %v4064
        %v4066 = vmul.f32 %v4056, 1.442695
        %v4067 = vpow.pop %v4066
        %v4068 = vmul.f32 %v4057, 1.442695
        %v4069 = vpow.pop %v4068
        %v4070 = vsel %vm1393, %v4059, 0.0
        %4071 = vadd.xlane.f32.xlu0 %v4070
        %v4072 = vpop.xlane.xlu0 %4071
        %v4073 = vsel %vm1393, %v4061, 0.0
        %4074 = vadd.xlane.f32.xlu0 %v4073
        %v4075 = vpop.xlane.xlu0 %4074
        %v4076 = vsel %vm1393, %v4063, 0.0
        %4077 = vadd.xlane.f32.xlu0 %v4076
        %v4078 = vpop.xlane.xlu0 %4077
        %v4079 = vsel %vm1393, %v4065, 0.0
        %4080 = vadd.xlane.f32.xlu0 %v4079
        %v4081 = vpop.xlane.xlu0 %4080
        %v4082 = vsel %vm1393, %v4067, 0.0
        %4083 = vadd.xlane.f32.xlu0 %v4082
        %v4084 = vpop.xlane.xlu0 %4083
        %v4085 = vsel %vm1393, %v4069, 0.0
        %4086 = vadd.xlane.f32.xlu0 %v4085
        %v4087 = vpop.xlane.xlu0 %4086
        %v4088 = vrcp.pop %v4072
        %v4089 = vrcp.pop %v4075
        %v4090 = vrcp.pop %v4078
        %v4091 = vrcp.pop %v4081
        %v4092 = vrcp.pop %v4084
        %v4093 = vrcp.pop %v4087
        %v4094 = vmul.f32 %v4059, %v4088
        %v4095 = vmul.f32 %v4061, %v4089
        %v4096 = vmul.f32 %v4063, %v4090
        %v4097 = vmul.f32 %v4065, %v4091
        %v4098 = vmul.f32 %v4067, %v4092
        %v4099 = vmul.f32 %v4069, %v4093
        %v4100 = vpack.c.bf16 %v4095, %v4094
        %v4101 = vpack.c.bf16 %v4097, %v4096
        %v4102 = vpack.c.bf16 %v4099, %v4098
        %4106 = vrot.lane.b32.xlu0 %v3728, 96
        %v4107 = vpop.permute.xlu0 %4106
        %4108 = vrot.lane.b32.xlu0 %v3729, 96
        %v4109 = vpop.permute.xlu0 %4108
        %4110 = vrot.lane.b32.xlu0 %v3730, 96
        %v4111 = vpop.permute.xlu0 %4110
        %v4116 = vsel %vm1393, %v4100, 0
        %v4119 = vsel %vm1393, %v4101, 0
        %v4122 = vsel %vm1393, %v4102, 0
        %4124 = vmatprep.subr.bf16.mxu0 0
        %4125 = vmatpush1.bf16.msra.mxu0 %v4107
        %4126 = vmatprep.subr.bf16.mxu0 0
        %4127 = vmatpush1.bf16.msra.mxu0 %v4109
        %4128 = vmatprep.subr.bf16.mxu0 0
        %4129 = vmatpush1.bf16.msra.mxu0 %v4111
        %4130 = vmatprep.subr.bf16.mxu0 0
        %4131 = vmatpush1.bf16.msra.mxu0 0
        %4132 = vmatprep.subr.bf16.mxu0 0
        %4133 = vmatpush1.bf16.msra.mxu0 0
        %4134 = vmatprep.subr.bf16.mxu0 0
        %4135 = vmatpush1.bf16.msra.mxu0 0
        %4136 = vmatprep.subr.bf16.mxu0 0
        %4137 = vmatpush1.bf16.msra.mxu0 0
        %4138 = vmatprep.subr.bf16.mxu0 0
        %4139 = vmatpush1.bf16.msra.mxu0 0
        %4140 = vmatprep.subr.bf16.mxu0 0
        %4141 = vmatpush1.bf16.msra.mxu0 0
        %4142 = vmatprep.subr.bf16.mxu0 0
        %4143 = vmatpush1.bf16.msra.mxu0 0
        %4144 = vmatprep.subr.bf16.mxu0 0
        %4145 = vmatpush1.bf16.msra.mxu0 0
        %4146 = vmatprep.subr.bf16.mxu0 0
        %4147 = vmatpush1.bf16.msra.mxu0 0
        %4148 = vmatprep.subr.bf16.mxu0 0
        %4149 = vmatpush1.bf16.msra.mxu0 0
        %4150 = vmatprep.subr.bf16.mxu0 0
        %4151 = vmatpush1.bf16.msra.mxu0 0
        %4152 = vmatprep.subr.bf16.mxu0 0
        %4153 = vmatpush1.bf16.msra.mxu0 0
        %4154 = vmatprep.subr.bf16.mxu0 0
        %4155 = vmatpush1.bf16.msra.mxu0 0
        %4156 = vmatprep.mubr.bf16.mxu0 0
        %4157 = vmatmul.mubr.bf16.gmra.mrb[0].mxu0 %v4116
        %v4158 = vpop.f32.mrb[0].mxu0
        %v4159 = vadd.f32 0.0, %v4158
        %v4160 = vpop.f32.mrb[0].mxu0
        %v4161 = vpop.f32.mrb[0].mxu0
        %v4162 = vadd.f32 0.0, %v4161
        %v4163 = vpop.f32.mrb[0].mxu0
        %4164 = vmatprep.mubr.bf16.mxu0 0
        %4165 = vmatmul.mubr.bf16.gmra.mrb[0].mxu0 %v4119
        %v4166 = vpop.f32.mrb[0].mxu0
        %v4167 = vadd.f32 0.0, %v4166
        %v4168 = vpop.f32.mrb[0].mxu0
        %v4169 = vpop.f32.mrb[0].mxu0
        %v4170 = vadd.f32 0.0, %v4169
        %v4171 = vpop.f32.mrb[0].mxu0
        %4172 = vmatprep.mubr.bf16.mxu0 0
        %4173 = vmatmul.mubr.bf16.gmra.mrb[0].mxu0 %v4122
        %v4174 = vpop.f32.mrb[0].mxu0
        %v4175 = vadd.f32 0.0, %v4174
        %v4176 = vpop.f32.mrb[0].mxu0
        %v4177 = vpop.f32.mrb[0].mxu0
        %v4178 = vadd.f32 0.0, %v4177
        %v4179 = vpop.f32.mrb[0].mxu0
        %4180 = vdwg.mxu0
        %4181 = vrot.lane.b32.xlu0 %v3722, 64
        %v4182 = vpop.permute.xlu0 %4181
        %4183 = vrot.lane.b32.xlu0 %v3723, 64
        %v4184 = vpop.permute.xlu0 %4183
        %4185 = vrot.lane.b32.xlu0 %v3724, 64
        %v4186 = vpop.permute.xlu0 %4185
        %4187 = vrot.lane.b32.xlu0 %v3725, 64
        %v4188 = vpop.permute.xlu0 %4187
        %4189 = vrot.lane.b32.xlu0 %v3726, 64
        %v4190 = vpop.permute.xlu0 %4189
        %4191 = vrot.lane.b32.xlu0 %v3727, 64
        %v4192 = vpop.permute.xlu0 %4191
        %v4194 = vsel %vm1317, %v4182, 0
        %v4197 = vsel %vm1317, %v4184, 0
        %v4200 = vsel %vm1317, %v4186, 0
        %v4203 = vsel %vm1317, %v4188, 0
        %v4206 = vsel %vm1317, %v4190, 0
        %v4209 = vsel %vm1317, %v4192, 0
        %4211 = vmatprep.subr.bf16.mxu0 0
        %4212 = vmatpush1.bf16.xpose.msra.mxu0 %v4203
        %4213 = vmatprep.subr.bf16.mxu0 0
        %4214 = vmatpush1.bf16.xpose.msra.mxu0 %v4206
        %4215 = vmatprep.subr.bf16.mxu0 0
        %4216 = vmatpush1.bf16.xpose.msra.mxu0 %v4209
        %4217 = vmatprep.subr.bf16.mxu0 0
        %4218 = vmatpush1.bf16.xpose.msra.mxu0 0
        %4219 = vmatprep.subr.bf16.mxu0 0
        %4220 = vmatpush1.bf16.xpose.msra.mxu0 0
        %4221 = vmatprep.subr.bf16.mxu0 0
        %4222 = vmatpush1.bf16.xpose.msra.mxu0 0
        %4223 = vmatprep.subr.bf16.mxu0 0
        %4224 = vmatpush1.bf16.xpose.msra.mxu0 0
        %4225 = vmatprep.subr.bf16.mxu0 0
        %4226 = vmatpush1.bf16.xpose.msra.mxu0 0
        %4227 = vmatprep.subr.bf16.mxu0 0
        %4228 = vmatpush1.bf16.xpose.msra.mxu0 0
        %4229 = vmatprep.subr.bf16.mxu0 0
        %4230 = vmatpush1.bf16.xpose.msra.mxu0 0
        %4231 = vmatprep.subr.bf16.mxu0 0
        %4232 = vmatpush1.bf16.xpose.msra.mxu0 0
        %4233 = vmatprep.subr.bf16.mxu0 0
        %4234 = vmatpush1.bf16.xpose.msra.mxu0 0
        %4235 = vmatprep.subr.bf16.mxu0 0
        %4236 = vmatpush1.bf16.xpose.msra.mxu0 0
        %4237 = vmatprep.subr.bf16.mxu0 0
        %4238 = vmatpush1.bf16.xpose.msra.mxu0 0
        %4239 = vmatprep.subr.bf16.mxu0 0
        %4240 = vmatpush1.bf16.xpose.msra.mxu0 0
        %4241 = vmatprep.subr.bf16.mxu0 0
        %4242 = vmatpush1.bf16.xpose.msra.mxu0 0
        %4243 = vmatprep.mubr.bf16.mxu0 0
        %4244 = vmatmul.mubr.bf16.gmra.mrb[0].mxu0 %v4194
        %v4245 = vpop.f32.mrb[0].mxu0
        %v4246 = vadd.f32 0.0, %v4245
        %v4247 = vpop.f32.mrb[0].mxu0
        %v4248 = vpop.f32.mrb[0].mxu0
        %v4249 = vadd.f32 0.0, %v4248
        %v4250 = vpop.f32.mrb[0].mxu0
        %4251 = vmatprep.mubr.bf16.mxu0 0
        %4252 = vmatmul.mubr.bf16.gmra.mrb[0].mxu0 %v4197
        %v4253 = vpop.f32.mrb[0].mxu0
        %v4254 = vadd.f32 0.0, %v4253
        %v4255 = vpop.f32.mrb[0].mxu0
        %v4256 = vpop.f32.mrb[0].mxu0
        %v4257 = vadd.f32 0.0, %v4256
        %v4258 = vpop.f32.mrb[0].mxu0
        %4259 = vmatprep.mubr.bf16.mxu0 0
        %4260 = vmatmul.mubr.bf16.gmra.mrb[0].mxu0 %v4200
        %v4261 = vpop.f32.mrb[0].mxu0
        %v4262 = vadd.f32 0.0, %v4261
        %v4263 = vpop.f32.mrb[0].mxu0
        %v4264 = vpop.f32.mrb[0].mxu0
        %v4265 = vadd.f32 0.0, %v4264
        %v4266 = vpop.f32.mrb[0].mxu0
        %4267 = vdwg.mxu0
        %v4268 = vsel %vm1393, %v4246, -inf
        %4269 = vmax.xlane.f32.xlu0 %v4268
        %v4270 = vpop.xlane.xlu0 %4269
        %v4271 = vsel %vm1393, %v4249, -inf
        %4272 = vmax.xlane.f32.xlu0 %v4271
        %v4273 = vpop.xlane.xlu0 %4272
        %v4274 = vsel %vm1393, %v4254, -inf
        %4275 = vmax.xlane.f32.xlu0 %v4274
        %v4276 = vpop.xlane.xlu0 %4275
        %v4277 = vsel %vm1393, %v4257, -inf
        %4278 = vmax.xlane.f32.xlu0 %v4277
        %v4279 = vpop.xlane.xlu0 %4278
        %v4280 = vsel %vm1393, %v4262, -inf
        %4281 = vmax.xlane.f32.xlu0 %v4280
        %v4282 = vpop.xlane.xlu0 %4281
        %v4283 = vsel %vm1393, %v4265, -inf
        %4284 = vmax.xlane.f32.xlu0 %v4283
        %v4285 = vpop.xlane.xlu0 %4284
        %v4286 = vsub.f32 %v4246, %v4270
        %v4287 = vsub.f32 %v4249, %v4273
        %v4288 = vsub.f32 %v4254, %v4276
        %v4289 = vsub.f32 %v4257, %v4279
        %v4290 = vsub.f32 %v4262, %v4282
        %v4291 = vsub.f32 %v4265, %v4285
        %v4292 = vmul.f32 %v4286, 1.442695
        %v4293 = vpow.pop %v4292
        %v4294 = vmul.f32 %v4287, 1.442695
        %v4295 = vpow.pop %v4294
        %v4296 = vmul.f32 %v4288, 1.442695
        %v4297 = vpow.pop %v4296
        %v4298 = vmul.f32 %v4289, 1.442695
        %v4299 = vpow.pop %v4298
        %v4300 = vmul.f32 %v4290, 1.442695
        %v4301 = vpow.pop %v4300
        %v4302 = vmul.f32 %v4291, 1.442695
        %v4303 = vpow.pop %v4302
        %v4304 = vsel %vm1393, %v4293, 0.0
        %4305 = vadd.xlane.f32.xlu0 %v4304
        %v4306 = vpop.xlane.xlu0 %4305
        %v4307 = vsel %vm1393, %v4295, 0.0
        %4308 = vadd.xlane.f32.xlu0 %v4307
        %v4309 = vpop.xlane.xlu0 %4308
        %v4310 = vsel %vm1393, %v4297, 0.0
        %4311 = vadd.xlane.f32.xlu0 %v4310
        %v4312 = vpop.xlane.xlu0 %4311
        %v4313 = vsel %vm1393, %v4299, 0.0
        %4314 = vadd.xlane.f32.xlu0 %v4313
        %v4315 = vpop.xlane.xlu0 %4314
        %v4316 = vsel %vm1393, %v4301, 0.0
        %4317 = vadd.xlane.f32.xlu0 %v4316
        %v4318 = vpop.xlane.xlu0 %4317
        %v4319 = vsel %vm1393, %v4303, 0.0
        %4320 = vadd.xlane.f32.xlu0 %v4319
        %v4321 = vpop.xlane.xlu0 %4320
        %v4322 = vrcp.pop %v4306
        %v4323 = vrcp.pop %v4309
        %v4324 = vrcp.pop %v4312
        %v4325 = vrcp.pop %v4315
        %v4326 = vrcp.pop %v4318
        %v4327 = vrcp.pop %v4321
        %v4328 = vmul.f32 %v4293, %v4322
        %v4329 = vmul.f32 %v4295, %v4323
        %v4330 = vmul.f32 %v4297, %v4324
        %v4331 = vmul.f32 %v4299, %v4325
        %v4332 = vmul.f32 %v4301, %v4326
        %v4333 = vmul.f32 %v4303, %v4327
        %v4334 = vpack.c.bf16 %v4329, %v4328
        %v4335 = vpack.c.bf16 %v4331, %v4330
        %v4336 = vpack.c.bf16 %v4333, %v4332
        %4337 = vrot.lane.b32.xlu0 %v3728, 64
        %v4338 = vpop.permute.xlu0 %4337
        %4339 = vrot.lane.b32.xlu0 %v3729, 64
        %v4340 = vpop.permute.xlu0 %4339
        %4341 = vrot.lane.b32.xlu0 %v3730, 64
        %v4342 = vpop.permute.xlu0 %4341
        %v4347 = vsel %vm1393, %v4334, 0
        %v4350 = vsel %vm1393, %v4335, 0
        %v4353 = vsel %vm1393, %v4336, 0
        %4355 = vmatprep.subr.bf16.mxu0 0
        %4356 = vmatpush1.bf16.msra.mxu0 %v4338
        %4357 = vmatprep.subr.bf16.mxu0 0
        %4358 = vmatpush1.bf16.msra.mxu0 %v4340
        %4359 = vmatprep.subr.bf16.mxu0 0
        %4360 = vmatpush1.bf16.msra.mxu0 %v4342
        %4361 = vmatprep.subr.bf16.mxu0 0
        %4362 = vmatpush1.bf16.msra.mxu0 0
        %4363 = vmatprep.subr.bf16.mxu0 0
        %4364 = vmatpush1.bf16.msra.mxu0 0
        %4365 = vmatprep.subr.bf16.mxu0 0
        %4366 = vmatpush1.bf16.msra.mxu0 0
        %4367 = vmatprep.subr.bf16.mxu0 0
        %4368 = vmatpush1.bf16.msra.mxu0 0
        %4369 = vmatprep.subr.bf16.mxu0 0
        %4370 = vmatpush1.bf16.msra.mxu0 0
        %4371 = vmatprep.subr.bf16.mxu0 0
        %4372 = vmatpush1.bf16.msra.mxu0 0
        %4373 = vmatprep.subr.bf16.mxu0 0
        %4374 = vmatpush1.bf16.msra.mxu0 0
        %4375 = vmatprep.subr.bf16.mxu0 0
        %4376 = vmatpush1.bf16.msra.mxu0 0
        %4377 = vmatprep.subr.bf16.mxu0 0
        %4378 = vmatpush1.bf16.msra.mxu0 0
        %4379 = vmatprep.subr.bf16.mxu0 0
        %4380 = vmatpush1.bf16.msra.mxu0 0
        %4381 = vmatprep.subr.bf16.mxu0 0
        %4382 = vmatpush1.bf16.msra.mxu0 0
        %4383 = vmatprep.subr.bf16.mxu0 0
        %4384 = vmatpush1.bf16.msra.mxu0 0
        %4385 = vmatprep.subr.bf16.mxu0 0
        %4386 = vmatpush1.bf16.msra.mxu0 0
        %4387 = vmatprep.mubr.bf16.mxu0 0
        %4388 = vmatmul.mubr.bf16.gmra.mrb[0].mxu0 %v4347
        %v4389 = vpop.f32.mrb[0].mxu0
        %v4390 = vadd.f32 0.0, %v4389
        %v4391 = vpop.f32.mrb[0].mxu0
        %v4392 = vpop.f32.mrb[0].mxu0
        %v4393 = vadd.f32 0.0, %v4392
        %v4394 = vpop.f32.mrb[0].mxu0
        %4395 = vmatprep.mubr.bf16.mxu0 0
        %4396 = vmatmul.mubr.bf16.gmra.mrb[0].mxu0 %v4350
        %v4397 = vpop.f32.mrb[0].mxu0
        %v4398 = vadd.f32 0.0, %v4397
        %v4399 = vpop.f32.mrb[0].mxu0
        %v4400 = vpop.f32.mrb[0].mxu0
        %v4401 = vadd.f32 0.0, %v4400
        %v4402 = vpop.f32.mrb[0].mxu0
        %4403 = vmatprep.mubr.bf16.mxu0 0
        %4404 = vmatmul.mubr.bf16.gmra.mrb[0].mxu0 %v4353
        %v4405 = vpop.f32.mrb[0].mxu0
        %v4406 = vadd.f32 0.0, %v4405
        %v4407 = vpop.f32.mrb[0].mxu0
        %v4408 = vpop.f32.mrb[0].mxu0
        %v4409 = vadd.f32 0.0, %v4408
        %v4410 = vpop.f32.mrb[0].mxu0
        %4411 = vdwg.mxu0
        %4412 = vrot.lane.b32.xlu0 %v3722, 32
        %v4413 = vpop.permute.xlu0 %4412
        %4414 = vrot.lane.b32.xlu0 %v3723, 32
        %v4415 = vpop.permute.xlu0 %4414
        %4416 = vrot.lane.b32.xlu0 %v3724, 32
        %v4417 = vpop.permute.xlu0 %4416
        %4418 = vrot.lane.b32.xlu0 %v3725, 32
        %v4419 = vpop.permute.xlu0 %4418
        %4420 = vrot.lane.b32.xlu0 %v3726, 32
        %v4421 = vpop.permute.xlu0 %4420
        %4422 = vrot.lane.b32.xlu0 %v3727, 32
        %v4423 = vpop.permute.xlu0 %4422
        %v4425 = vsel %vm1317, %v4413, 0
        %v4428 = vsel %vm1317, %v4415, 0
        %v4431 = vsel %vm1317, %v4417, 0
        %v4434 = vsel %vm1317, %v4419, 0
        %v4437 = vsel %vm1317, %v4421, 0
        %v4440 = vsel %vm1317, %v4423, 0
        %4442 = vmatprep.subr.bf16.mxu0 0
        %4443 = vmatpush1.bf16.xpose.msra.mxu0 %v4434
        %4444 = vmatprep.subr.bf16.mxu0 0
        %4445 = vmatpush1.bf16.xpose.msra.mxu0 %v4437
        %4446 = vmatprep.subr.bf16.mxu0 0
        %4447 = vmatpush1.bf16.xpose.msra.mxu0 %v4440
        %4448 = vmatprep.subr.bf16.mxu0 0
        %4449 = vmatpush1.bf16.xpose.msra.mxu0 0
        %4450 = vmatprep.subr.bf16.mxu0 0
        %4451 = vmatpush1.bf16.xpose.msra.mxu0 0
        %4452 = vmatprep.subr.bf16.mxu0 0
        %4453 = vmatpush1.bf16.xpose.msra.mxu0 0
        %4454 = vmatprep.subr.bf16.mxu0 0
        %4455 = vmatpush1.bf16.xpose.msra.mxu0 0
        %4456 = vmatprep.subr.bf16.mxu0 0
        %4457 = vmatpush1.bf16.xpose.msra.mxu0 0
        %4458 = vmatprep.subr.bf16.mxu0 0
        %4459 = vmatpush1.bf16.xpose.msra.mxu0 0
        %4460 = vmatprep.subr.bf16.mxu0 0
        %4461 = vmatpush1.bf16.xpose.msra.mxu0 0
        %4462 = vmatprep.subr.bf16.mxu0 0
        %4463 = vmatpush1.bf16.xpose.msra.mxu0 0
        %4464 = vmatprep.subr.bf16.mxu0 0
        %4465 = vmatpush1.bf16.xpose.msra.mxu0 0
        %4466 = vmatprep.subr.bf16.mxu0 0
        %4467 = vmatpush1.bf16.xpose.msra.mxu0 0
        %4468 = vmatprep.subr.bf16.mxu0 0
        %4469 = vmatpush1.bf16.xpose.msra.mxu0 0
        %4470 = vmatprep.subr.bf16.mxu0 0
        %4471 = vmatpush1.bf16.xpose.msra.mxu0 0
        %4472 = vmatprep.subr.bf16.mxu0 0
        %4473 = vmatpush1.bf16.xpose.msra.mxu0 0
        %4474 = vmatprep.mubr.bf16.mxu0 0
        %4475 = vmatmul.mubr.bf16.gmra.mrb[0].mxu0 %v4425
        %v4476 = vpop.f32.mrb[0].mxu0
        %v4477 = vadd.f32 0.0, %v4476
        %v4478 = vpop.f32.mrb[0].mxu0
        %v4479 = vpop.f32.mrb[0].mxu0
        %v4480 = vadd.f32 0.0, %v4479
        %v4481 = vpop.f32.mrb[0].mxu0
        %4482 = vmatprep.mubr.bf16.mxu0 0
        %4483 = vmatmul.mubr.bf16.gmra.mrb[0].mxu0 %v4428
        %v4484 = vpop.f32.mrb[0].mxu0
        %v4485 = vadd.f32 0.0, %v4484
        %v4486 = vpop.f32.mrb[0].mxu0
        %v4487 = vpop.f32.mrb[0].mxu0
        %v4488 = vadd.f32 0.0, %v4487
        %v4489 = vpop.f32.mrb[0].mxu0
        %4490 = vmatprep.mubr.bf16.mxu0 0
        %4491 = vmatmul.mubr.bf16.gmra.mrb[0].mxu0 %v4431
        %v4492 = vpop.f32.mrb[0].mxu0
        %v4493 = vadd.f32 0.0, %v4492
        %v4494 = vpop.f32.mrb[0].mxu0
        %v4495 = vpop.f32.mrb[0].mxu0
        %v4496 = vadd.f32 0.0, %v4495
        %v4497 = vpop.f32.mrb[0].mxu0
        %4498 = vdwg.mxu0
        %v4499 = vsel %vm1393, %v4477, -inf
        %4500 = vmax.xlane.f32.xlu0 %v4499
        %v4501 = vpop.xlane.xlu0 %4500
        %v4502 = vsel %vm1393, %v4480, -inf
        %4503 = vmax.xlane.f32.xlu0 %v4502
        %v4504 = vpop.xlane.xlu0 %4503
        %v4505 = vsel %vm1393, %v4485, -inf
        %4506 = vmax.xlane.f32.xlu0 %v4505
        %v4507 = vpop.xlane.xlu0 %4506
        %v4508 = vsel %vm1393, %v4488, -inf
        %4509 = vmax.xlane.f32.xlu0 %v4508
        %v4510 = vpop.xlane.xlu0 %4509
        %v4511 = vsel %vm1393, %v4493, -inf
        %4512 = vmax.xlane.f32.xlu0 %v4511
        %v4513 = vpop.xlane.xlu0 %4512
        %v4514 = vsel %vm1393, %v4496, -inf
        %4515 = vmax.xlane.f32.xlu0 %v4514
        %v4516 = vpop.xlane.xlu0 %4515
        %v4517 = vsub.f32 %v4477, %v4501
        %v4518 = vsub.f32 %v4480, %v4504
        %v4519 = vsub.f32 %v4485, %v4507
        %v4520 = vsub.f32 %v4488, %v4510
        %v4521 = vsub.f32 %v4493, %v4513
        %v4522 = vsub.f32 %v4496, %v4516
        %v4523 = vmul.f32 %v4517, 1.442695
        %v4524 = vpow.pop %v4523
        %v4525 = vmul.f32 %v4518, 1.442695
        %v4526 = vpow.pop %v4525
        %v4527 = vmul.f32 %v4519, 1.442695
        %v4528 = vpow.pop %v4527
        %v4529 = vmul.f32 %v4520, 1.442695
        %v4530 = vpow.pop %v4529
        %v4531 = vmul.f32 %v4521, 1.442695
        %v4532 = vpow.pop %v4531
        %v4533 = vmul.f32 %v4522, 1.442695
        %v4534 = vpow.pop %v4533
        %v4535 = vsel %vm1393, %v4524, 0.0
        %4536 = vadd.xlane.f32.xlu0 %v4535
        %v4537 = vpop.xlane.xlu0 %4536
        %v4538 = vsel %vm1393, %v4526, 0.0
        %4539 = vadd.xlane.f32.xlu0 %v4538
        %v4540 = vpop.xlane.xlu0 %4539
        %v4541 = vsel %vm1393, %v4528, 0.0
        %4542 = vadd.xlane.f32.xlu0 %v4541
        %v4543 = vpop.xlane.xlu0 %4542
        %v4544 = vsel %vm1393, %v4530, 0.0
        %4545 = vadd.xlane.f32.xlu0 %v4544
        %v4546 = vpop.xlane.xlu0 %4545
        %v4547 = vsel %vm1393, %v4532, 0.0
        %4548 = vadd.xlane.f32.xlu0 %v4547
        %v4549 = vpop.xlane.xlu0 %4548
        %v4550 = vsel %vm1393, %v4534, 0.0
        %4551 = vadd.xlane.f32.xlu0 %v4550
        %v4552 = vpop.xlane.xlu0 %4551
        %v4553 = vrcp.pop %v4537
        %v4554 = vrcp.pop %v4540
        %v4555 = vrcp.pop %v4543
        %v4556 = vrcp.pop %v4546
        %v4557 = vrcp.pop %v4549
        %v4558 = vrcp.pop %v4552
        %v4559 = vmul.f32 %v4524, %v4553
        %v4560 = vmul.f32 %v4526, %v4554
        %v4561 = vmul.f32 %v4528, %v4555
        %v4562 = vmul.f32 %v4530, %v4556
        %v4563 = vmul.f32 %v4532, %v4557
        %v4564 = vmul.f32 %v4534, %v4558
        %v4565 = vpack.c.bf16 %v4560, %v4559
        %v4566 = vpack.c.bf16 %v4562, %v4561
        %v4567 = vpack.c.bf16 %v4564, %v4563
        %4568 = vrot.lane.b32.xlu0 %v3728, 32
        %v4569 = vpop.permute.xlu0 %4568
        %4570 = vrot.lane.b32.xlu0 %v3729, 32
        %v4571 = vpop.permute.xlu0 %4570
        %4572 = vrot.lane.b32.xlu0 %v3730, 32
        %v4573 = vpop.permute.xlu0 %4572
        %v4578 = vsel %vm1393, %v4565, 0
        %v4581 = vsel %vm1393, %v4566, 0
        %v4584 = vsel %vm1393, %v4567, 0
        %4586 = vmatprep.subr.bf16.mxu0 0
        %4587 = vmatpush1.bf16.msra.mxu0 %v4569
        %4588 = vmatprep.subr.bf16.mxu0 0
        %4589 = vmatpush1.bf16.msra.mxu0 %v4571
        %4590 = vmatprep.subr.bf16.mxu0 0
        %4591 = vmatpush1.bf16.msra.mxu0 %v4573
        %4592 = vmatprep.subr.bf16.mxu0 0
        %4593 = vmatpush1.bf16.msra.mxu0 0
        %4594 = vmatprep.subr.bf16.mxu0 0
        %4595 = vmatpush1.bf16.msra.mxu0 0
        %4596 = vmatprep.subr.bf16.mxu0 0
        %4597 = vmatpush1.bf16.msra.mxu0 0
        %4598 = vmatprep.subr.bf16.mxu0 0
        %4599 = vmatpush1.bf16.msra.mxu0 0
        %4600 = vmatprep.subr.bf16.mxu0 0
        %4601 = vmatpush1.bf16.msra.mxu0 0
        %4602 = vmatprep.subr.bf16.mxu0 0
        %4603 = vmatpush1.bf16.msra.mxu0 0
        %4604 = vmatprep.subr.bf16.mxu0 0
        %4605 = vmatpush1.bf16.msra.mxu0 0
        %4606 = vmatprep.subr.bf16.mxu0 0
        %4607 = vmatpush1.bf16.msra.mxu0 0
        %4608 = vmatprep.subr.bf16.mxu0 0
        %4609 = vmatpush1.bf16.msra.mxu0 0
        %4610 = vmatprep.subr.bf16.mxu0 0
        %4611 = vmatpush1.bf16.msra.mxu0 0
        %4612 = vmatprep.subr.bf16.mxu0 0
        %4613 = vmatpush1.bf16.msra.mxu0 0
        %4614 = vmatprep.subr.bf16.mxu0 0
        %4615 = vmatpush1.bf16.msra.mxu0 0
        %4616 = vmatprep.subr.bf16.mxu0 0
        %4617 = vmatpush1.bf16.msra.mxu0 0
        %4618 = vmatprep.mubr.bf16.mxu0 0
        %4619 = vmatmul.mubr.bf16.gmra.mrb[0].mxu0 %v4578
        %v4620 = vpop.f32.mrb[0].mxu0
        %v4621 = vadd.f32 0.0, %v4620
        %v4622 = vpop.f32.mrb[0].mxu0
        %v4623 = vpop.f32.mrb[0].mxu0
        %v4624 = vadd.f32 0.0, %v4623
        %v4625 = vpop.f32.mrb[0].mxu0
        %4626 = vmatprep.mubr.bf16.mxu0 0
        %4627 = vmatmul.mubr.bf16.gmra.mrb[0].mxu0 %v4581
        %v4628 = vpop.f32.mrb[0].mxu0
        %v4629 = vadd.f32 0.0, %v4628
        %v4630 = vpop.f32.mrb[0].mxu0
        %v4631 = vpop.f32.mrb[0].mxu0
        %v4632 = vadd.f32 0.0, %v4631
        %v4633 = vpop.f32.mrb[0].mxu0
        %4634 = vmatprep.mubr.bf16.mxu0 0
        %4635 = vmatmul.mubr.bf16.gmra.mrb[0].mxu0 %v4584
        %v4636 = vpop.f32.mrb[0].mxu0
        %v4637 = vadd.f32 0.0, %v4636
        %v4638 = vpop.f32.mrb[0].mxu0
        %v4639 = vpop.f32.mrb[0].mxu0
        %v4640 = vadd.f32 0.0, %v4639
        %v4641 = vpop.f32.mrb[0].mxu0
        %4642 = vdwg.mxu0
        %4649 = vrot.lane.b32.xlu0 %v4159, 32
        %v4650 = vpop.permute.xlu0 %4649
        %4651 = vrot.lane.b32.xlu0 %v4162, 32
        %v4652 = vpop.permute.xlu0 %4651
        %4653 = vrot.lane.b32.xlu0 %v4167, 32
        %v4654 = vpop.permute.xlu0 %4653
        %4655 = vrot.lane.b32.xlu0 %v4170, 32
        %v4656 = vpop.permute.xlu0 %4655
        %4657 = vrot.lane.b32.xlu0 %v4175, 32
        %v4658 = vpop.permute.xlu0 %4657
        %4659 = vrot.lane.b32.xlu0 %v4178, 32
        %v4660 = vpop.permute.xlu0 %4659
        %4673 = vrot.lane.b32.xlu0 %v4390, 64
        %v4674 = vpop.permute.xlu0 %4673
        %4675 = vrot.lane.b32.xlu0 %v4393, 64
        %v4676 = vpop.permute.xlu0 %4675
        %4677 = vrot.lane.b32.xlu0 %v4398, 64
        %v4678 = vpop.permute.xlu0 %4677
        %4679 = vrot.lane.b32.xlu0 %v4401, 64
        %v4680 = vpop.permute.xlu0 %4679
        %4681 = vrot.lane.b32.xlu0 %v4406, 64
        %v4682 = vpop.permute.xlu0 %4681
        %4683 = vrot.lane.b32.xlu0 %v4409, 64
        %v4684 = vpop.permute.xlu0 %4683
        %4697 = vrot.lane.b32.xlu0 %v4621, 96
        %v4698 = vpop.permute.xlu0 %4697
        %4699 = vrot.lane.b32.xlu0 %v4624, 96
        %v4700 = vpop.permute.xlu0 %4699
        %4701 = vrot.lane.b32.xlu0 %v4629, 96
        %v4702 = vpop.permute.xlu0 %4701
        %4703 = vrot.lane.b32.xlu0 %v4632, 96
        %v4704 = vpop.permute.xlu0 %4703
        %4705 = vrot.lane.b32.xlu0 %v4637, 96
        %v4706 = vpop.permute.xlu0 %4705
        %4707 = vrot.lane.b32.xlu0 %v4640, 96
        %v4708 = vpop.permute.xlu0 %4707
        %v4715 = vsel %vm1317, %v3919, %v4650
        %v4716 = vsel %vm1317, %v3922, %v4652
        %v4717 = vsel %vm1317, %v3927, %v4654
        %v4718 = vsel %vm1317, %v3930, %v4656
        %v4719 = vsel %vm1317, %v3935, %v4658
        %v4720 = vsel %vm1317, %v3938, %v4660
        %v4721 = vsel %vm2309, %v4715, %v4674
        %v4722 = vsel %vm2309, %v4716, %v4676
        %v4723 = vsel %vm2309, %v4717, %v4678
        %v4724 = vsel %vm2309, %v4718, %v4680
        %v4725 = vsel %vm2309, %v4719, %v4682
        %v4726 = vsel %vm2309, %v4720, %v4684
        %v4727 = vsel %vm2316, %v4721, %v4698
        %v4728 = vsel %vm2316, %v4722, %v4700
        %v4729 = vsel %vm2316, %v4723, %v4702
        %v4730 = vsel %vm2316, %v4724, %v4704
        %v4731 = vsel %vm2316, %v4725, %v4706
        %v4732 = vsel %vm2316, %v4726, %v4708
        %v4733 = vpack.c.bf16 %v4728, %v4727
        %v4734 = vpack.c.bf16 %v4730, %v4729
        %v4735 = vpack.c.bf16 %v4732, %v4731
        %s4736 = scalar_lea.vmem [#allocation18], 64
        %v4737 = vld [vmem:[%s4736] sm:$0xf]
        %v4738 = vld [vmem:[%s4736 + $0x4] sm:$0xf]
        %v4739 = vld [vmem:[%s4736 + $0x8] sm:$0xf]
        %v4740 = vld [vmem:[%s4736 + $0xc] sm:$0xf]
        %v4741 = vld [vmem:[%s4736 + $0x10] sm:$0xf]
        %v4742 = vld [vmem:[%s4736 + $0x14] sm:$0xf]
        %v4743 = vld [vmem:[%s4736 + $0x18] sm:$0xf]
        %v4744 = vld [vmem:[%s4736 + $0x1c] sm:$0xf]
        %v4745 = vld [vmem:[%s4736 + $0x20] sm:$0xf]
        %v4746 = vld [vmem:[%s4736 + $0x24] sm:$0xf]
        %v4747 = vld [vmem:[%s4736 + $0x28] sm:$0xf]
        %v4748 = vld [vmem:[%s4736 + $0x2c] sm:$0xf]
        %v4749 = vld [vmem:[%s4736 + $0x30] sm:$0xf]
        %v4750 = vld [vmem:[%s4736 + $0x34] sm:$0xf]
        %v4751 = vld [vmem:[%s4736 + $0x38] sm:$0xf]
        %v4752 = vld [vmem:[%s4736 + $0x3c] sm:$0xf]
        %v4769 = vunpack.c.l.b16 %v4737
        %v4770 = vunpack.c.l.b16 %v4738
        %v4771 = vunpack.c.l.b16 %v4739
        %v4772 = vunpack.c.l.b16 %v4740
        %v4773 = vunpack.c.l.b16 %v4741
        %v4774 = vunpack.c.l.b16 %v4742
        %v4775 = vunpack.c.l.b16 %v4743
        %v4776 = vunpack.c.l.b16 %v4744
        %v4777 = vunpack.c.l.b16 %v4745
        %v4778 = vunpack.c.l.b16 %v4746
        %v4779 = vunpack.c.l.b16 %v4747
        %v4780 = vunpack.c.l.b16 %v4748
        %v4781 = vunpack.c.l.b16 %v4749
        %v4782 = vunpack.c.l.b16 %v4750
        %v4783 = vunpack.c.l.b16 %v4751
        %v4784 = vunpack.c.l.b16 %v4752
        %v4785 = vpack.c.b16 %v4770, %v4769
        %v4786 = vpack.c.b16 %v4772, %v4771
        %v4787 = vpack.c.b16 %v4774, %v4773
        %v4788 = vpack.c.b16 %v4776, %v4775
        %v4789 = vpack.c.b16 %v4778, %v4777
        %v4790 = vpack.c.b16 %v4780, %v4779
        %v4791 = vpack.c.b16 %v4782, %v4781
        %v4792 = vpack.c.b16 %v4784, %v4783
        %4801 = vmatprep.subr.bf16.mxu0 0
        %4802 = vmatpush1.bf16.msra.mxu0 %v4785
        %4803 = vmatprep.subr.bf16.mxu0 0
        %4804 = vmatpush1.bf16.msra.mxu0 %v4786
        %4805 = vmatprep.subr.bf16.mxu0 0
        %4806 = vmatpush1.bf16.msra.mxu0 %v4787
        %4807 = vmatprep.subr.bf16.mxu0 0
        %4808 = vmatpush1.bf16.msra.mxu0 %v4788
        %4809 = vmatprep.subr.bf16.mxu0 0
        %4810 = vmatpush1.bf16.msra.mxu0 %v4789
        %4811 = vmatprep.subr.bf16.mxu0 0
        %4812 = vmatpush1.bf16.msra.mxu0 %v4790
        %4813 = vmatprep.subr.bf16.mxu0 0
        %4814 = vmatpush1.bf16.msra.mxu0 %v4791
        %4815 = vmatprep.subr.bf16.mxu0 0
        %4816 = vmatpush1.bf16.msra.mxu0 %v4792
        %4817 = vmatprep.subr.bf16.mxu0 0
        %4818 = vmatpush1.bf16.msra.mxu0 0
        %4819 = vmatprep.subr.bf16.mxu0 0
        %4820 = vmatpush1.bf16.msra.mxu0 0
        %4821 = vmatprep.subr.bf16.mxu0 0
        %4822 = vmatpush1.bf16.msra.mxu0 0
        %4823 = vmatprep.subr.bf16.mxu0 0
        %4824 = vmatpush1.bf16.msra.mxu0 0
        %4825 = vmatprep.subr.bf16.mxu0 0
        %4826 = vmatpush1.bf16.msra.mxu0 0
        %4827 = vmatprep.subr.bf16.mxu0 0
        %4828 = vmatpush1.bf16.msra.mxu0 0
        %4829 = vmatprep.subr.bf16.mxu0 0
        %4830 = vmatpush1.bf16.msra.mxu0 0
        %4831 = vmatprep.subr.bf16.mxu0 0
        %4832 = vmatpush1.bf16.msra.mxu0 0
        %4833 = vmatprep.mubr.bf16.mxu0 0
        %4834 = vmatmul.mubr.bf16.gmra.mrb[0].mxu0 %v4733
        %v4835 = vpop.f32.mrb[0].mxu0
        %v4836 = vadd.f32 0.0, %v4835
        %v4837 = vpop.f32.mrb[0].mxu0
        %v4838 = vpop.f32.mrb[0].mxu0
        %v4839 = vadd.f32 0.0, %v4838
        %v4840 = vpop.f32.mrb[0].mxu0
        %4841 = vmatprep.mubr.bf16.mxu0 0
        %4842 = vmatmul.mubr.bf16.gmra.mrb[0].mxu0 %v4734
        %v4843 = vpop.f32.mrb[0].mxu0
        %v4844 = vadd.f32 0.0, %v4843
        %v4845 = vpop.f32.mrb[0].mxu0
        %v4846 = vpop.f32.mrb[0].mxu0
        %v4847 = vadd.f32 0.0, %v4846
        %v4848 = vpop.f32.mrb[0].mxu0
        %4849 = vmatprep.mubr.bf16.mxu0 0
        %4850 = vmatmul.mubr.bf16.gmra.mrb[0].mxu0 %v4735
        %v4851 = vpop.f32.mrb[0].mxu0
        %v4852 = vadd.f32 0.0, %v4851
        %v4853 = vpop.f32.mrb[0].mxu0
        %v4854 = vpop.f32.mrb[0].mxu0
        %v4855 = vadd.f32 0.0, %v4854
        %v4856 = vpop.f32.mrb[0].mxu0
        %4857 = vdwg.mxu0
        %v4858 = vadd.f32 %v3314, %v4836
        %v4859 = vadd.f32 %v3315, %v4839
        %v4860 = vadd.f32 %v3316, %v4844
        %v4861 = vadd.f32 %v3317, %v4847
        %v4862 = vadd.f32 %v3318, %v4852
        %v4863 = vadd.f32 %v3319, %v4855
        %s4864 = scalar_lea.vmem [#allocation19], 1
        %v4865 = vld [vmem:[%s4864] sm:$0x1]
        %v4867 = vlaneseq
        %v4868 = vshrl.u32 %v4867, 7
        %v4869 = vsub.s32 0, %v4868
        %v4870 = vrot.slane %v4865, %v4869
        %v4872 = vadd.f32 %v4858, %v4870
        %v4873 = vadd.f32 %v4859, %v4870
        %v4874 = vadd.f32 %v4860, %v4870
        %v4875 = vadd.f32 %v4861, %v4870
        %v4876 = vadd.f32 %v4862, %v4870
        %v4877 = vadd.f32 %v4863, %v4870
        %s4878 = scalar_lea.vmem [#allocation21], 1
        %v4879 = vld [vmem:[%s4878] sm:$0x1]
        %s4880 = scalar_lea.vmem [#allocation22], 1
        %v4881 = vld [vmem:[%s4880] sm:$0x1]
        %4882 = vadd.xlane.f32.xlu0 %v4872
        %v4883 = vpop.xlane.xlu0 %4882
        %4884 = vadd.xlane.f32.xlu0 %v4873
        %v4885 = vpop.xlane.xlu0 %4884
        %4886 = vadd.xlane.f32.xlu0 %v4874
        %v4887 = vpop.xlane.xlu0 %4886
        %4888 = vadd.xlane.f32.xlu0 %v4875
        %v4889 = vpop.xlane.xlu0 %4888
        %4890 = vadd.xlane.f32.xlu0 %v4876
        %v4891 = vpop.xlane.xlu0 %4890
        %4892 = vadd.xlane.f32.xlu0 %v4877
        %v4893 = vpop.xlane.xlu0 %4892
        %v4894 = vmul.f32 %v4883, %v923
        %v4895 = vmul.f32 %v4885, %v923
        %v4896 = vmul.f32 %v4887, %v923
        %v4897 = vmul.f32 %v4889, %v923
        %v4898 = vmul.f32 %v4891, %v923
        %v4899 = vmul.f32 %v4893, %v923
        %v4900 = vsub.f32 %v4872, %v4894
        %v4901 = vsub.f32 %v4873, %v4895
        %v4902 = vsub.f32 %v4874, %v4896
        %v4903 = vsub.f32 %v4875, %v4897
        %v4904 = vsub.f32 %v4876, %v4898
        %v4905 = vsub.f32 %v4877, %v4899
        %v4906 = vmul.f32 %v4900, %v4900
        %v4907 = vmul.f32 %v4901, %v4901
        %v4908 = vmul.f32 %v4902, %v4902
        %v4909 = vmul.f32 %v4903, %v4903
        %v4910 = vmul.f32 %v4904, %v4904
        %v4911 = vmul.f32 %v4905, %v4905
        %4912 = vadd.xlane.f32.xlu0 %v4906
        %v4913 = vpop.xlane.xlu0 %4912
        %4914 = vadd.xlane.f32.xlu0 %v4907
        %v4915 = vpop.xlane.xlu0 %4914
        %4916 = vadd.xlane.f32.xlu0 %v4908
        %v4917 = vpop.xlane.xlu0 %4916
        %4918 = vadd.xlane.f32.xlu0 %v4909
        %v4919 = vpop.xlane.xlu0 %4918
        %4920 = vadd.xlane.f32.xlu0 %v4910
        %v4921 = vpop.xlane.xlu0 %4920
        %4922 = vadd.xlane.f32.xlu0 %v4911
        %v4923 = vpop.xlane.xlu0 %4922
        %v4924 = vmul.f32 %v4913, %v923
        %v4925 = vmul.f32 %v4915, %v923
        %v4926 = vmul.f32 %v4917, %v923
        %v4927 = vmul.f32 %v4919, %v923
        %v4928 = vmul.f32 %v4921, %v923
        %v4929 = vmul.f32 %v4923, %v923
        %v4930 = vadd.f32 %v4924, 1e-05
        %v4931 = vadd.f32 %v4925, 1e-05
        %v4932 = vadd.f32 %v4926, 1e-05
        %v4933 = vadd.f32 %v4927, 1e-05
        %v4934 = vadd.f32 %v4928, 1e-05
        %v4935 = vadd.f32 %v4929, 1e-05
        %v4936 = vrsqrt.pop %v4930
        %v4937 = vrsqrt.pop %v4931
        %v4938 = vrsqrt.pop %v4932
        %v4939 = vrsqrt.pop %v4933
        %v4940 = vrsqrt.pop %v4934
        %v4941 = vrsqrt.pop %v4935
        %v4942 = vmul.f32 %v4900, %v4936
        %v4943 = vmul.f32 %v4901, %v4937
        %v4944 = vmul.f32 %v4902, %v4938
        %v4945 = vmul.f32 %v4903, %v4939
        %v4946 = vmul.f32 %v4904, %v4940
        %v4947 = vmul.f32 %v4905, %v4941
        %v4949 = vlaneseq
        %v4950 = vshrl.u32 %v4949, 7
        %v4951 = vsub.s32 0, %v4950
        %v4952 = vrot.slane %v4879, %v4951
        %v4954 = vmul.f32 %v4942, %v4952
        %v4955 = vmul.f32 %v4943, %v4952
        %v4956 = vmul.f32 %v4944, %v4952
        %v4957 = vmul.f32 %v4945, %v4952
        %v4958 = vmul.f32 %v4946, %v4952
        %v4959 = vmul.f32 %v4947, %v4952
        %v4961 = vlaneseq
        %v4962 = vshrl.u32 %v4961, 7
        %v4963 = vsub.s32 0, %v4962
        %v4964 = vrot.slane %v4881, %v4963
        %v4966 = vadd.f32 %v4954, %v4964
        %v4967 = vadd.f32 %v4955, %v4964
        %v4968 = vadd.f32 %v4956, %v4964
        %v4969 = vadd.f32 %v4957, %v4964
        %v4970 = vadd.f32 %v4958, %v4964
        %v4971 = vadd.f32 %v4959, %v4964
        %v4972 = vpack.c.bf16 %v4967, %v4966
        %v4973 = vpack.c.bf16 %v4969, %v4968
        %v4974 = vpack.c.bf16 %v4971, %v4970
        %s4975 = scalar_lea.vmem [#allocation24], 256
        %v4976 = vld [vmem:[%s4975] sm:$0xff]
        %v4977 = vld [vmem:[%s4975 + $0x8] sm:$0xff]
        %v4978 = vld [vmem:[%s4975 + $0x10] sm:$0xff]
        %v4979 = vld [vmem:[%s4975 + $0x18] sm:$0xff]
        %v4980 = vld [vmem:[%s4975 + $0x20] sm:$0xff]
        %v4981 = vld [vmem:[%s4975 + $0x28] sm:$0xff]
        %v4982 = vld [vmem:[%s4975 + $0x30] sm:$0xff]
        %v4983 = vld [vmem:[%s4975 + $0x38] sm:$0xff]
        %v4984 = vld [vmem:[%s4975 + $0x40] sm:$0xff]
        %v4985 = vld [vmem:[%s4975 + $0x48] sm:$0xff]
        %v4986 = vld [vmem:[%s4975 + $0x50] sm:$0xff]
        %v4987 = vld [vmem:[%s4975 + $0x58] sm:$0xff]
        %v4988 = vld [vmem:[%s4975 + $0x60] sm:$0xff]
        %v4989 = vld [vmem:[%s4975 + $0x68] sm:$0xff]
        %v4990 = vld [vmem:[%s4975 + $0x70] sm:$0xff]
        %v4991 = vld [vmem:[%s4975 + $0x78] sm:$0xff]
        %v4992 = vld [vmem:[%s4975 + $0x80] sm:$0xff]
        %v4993 = vld [vmem:[%s4975 + $0x88] sm:$0xff]
        %v4994 = vld [vmem:[%s4975 + $0x90] sm:$0xff]
        %v4995 = vld [vmem:[%s4975 + $0x98] sm:$0xff]
        %v4996 = vld [vmem:[%s4975 + $0xa0] sm:$0xff]
        %v4997 = vld [vmem:[%s4975 + $0xa8] sm:$0xff]
        %v4998 = vld [vmem:[%s4975 + $0xb0] sm:$0xff]
        %v4999 = vld [vmem:[%s4975 + $0xb8] sm:$0xff]
        %v5000 = vld [vmem:[%s4975 + $0xc0] sm:$0xff]
        %v5001 = vld [vmem:[%s4975 + $0xc8] sm:$0xff]
        %v5002 = vld [vmem:[%s4975 + $0xd0] sm:$0xff]
        %v5003 = vld [vmem:[%s4975 + $0xd8] sm:$0xff]
        %v5004 = vld [vmem:[%s4975 + $0xe0] sm:$0xff]
        %v5005 = vld [vmem:[%s4975 + $0xe8] sm:$0xff]
        %v5006 = vld [vmem:[%s4975 + $0xf0] sm:$0xff]
        %v5007 = vld [vmem:[%s4975 + $0xf8] sm:$0xff]
        %s5008 = scalar_lea.vmem [#allocation25], 4
        %v5009 = vld [vmem:[%s5008] sm:$0xf]
        %v5011 = vlaneseq
        %v5012 = vshrl.u32 %v5011, 7
        %v5013 = vsub.s32 0, %v5012
        %v5014 = vrot.slane %v5009, %v5013
        %v5015 = vlaneseq
        %v5016 = vshrl.u32 %v5015, 7
        %v5017 = vsub.s32 1, %v5016
        %v5018 = vrot.slane %v5009, %v5017
        %v5019 = vlaneseq
        %v5020 = vshrl.u32 %v5019, 7
        %v5021 = vsub.s32 2, %v5020
        %v5022 = vrot.slane %v5009, %v5021
        %v5023 = vlaneseq
        %v5024 = vshrl.u32 %v5023, 7
        %v5025 = vsub.s32 3, %v5024
        %v5026 = vrot.slane %v5009, %v5025
        %v5063 = vunpack.c.l.b16 %v4976
        %v5064 = vunpack.c.h.b16 %v4976
        %v5065 = vunpack.c.l.b16 %v4977
        %v5066 = vunpack.c.h.b16 %v4977
        %v5067 = vunpack.c.l.b16 %v4978
        %v5068 = vunpack.c.h.b16 %v4978
        %v5069 = vunpack.c.l.b16 %v4979
        %v5070 = vunpack.c.h.b16 %v4979
        %v5071 = vunpack.c.l.b16 %v4980
        %v5072 = vunpack.c.h.b16 %v4980
        %v5073 = vunpack.c.l.b16 %v4981
        %v5074 = vunpack.c.h.b16 %v4981
        %v5075 = vunpack.c.l.b16 %v4982
        %v5076 = vunpack.c.h.b16 %v4982
        %v5077 = vunpack.c.l.b16 %v4983
        %v5078 = vunpack.c.h.b16 %v4983
        %v5079 = vunpack.c.l.b16 %v4984
        %v5080 = vunpack.c.h.b16 %v4984
        %v5081 = vunpack.c.l.b16 %v4985
        %v5082 = vunpack.c.h.b16 %v4985
        %v5083 = vunpack.c.l.b16 %v4986
        %v5084 = vunpack.c.h.b16 %v4986
        %v5085 = vunpack.c.l.b16 %v4987
        %v5086 = vunpack.c.h.b16 %v4987
        %v5087 = vunpack.c.l.b16 %v4988
        %v5088 = vunpack.c.h.b16 %v4988
        %v5089 = vunpack.c.l.b16 %v4989
        %v5090 = vunpack.c.h.b16 %v4989
        %v5091 = vunpack.c.l.b16 %v4990
        %v5092 = vunpack.c.h.b16 %v4990
        %v5093 = vunpack.c.l.b16 %v4991
        %v5094 = vunpack.c.h.b16 %v4991
        %v5095 = vunpack.c.l.b16 %v4992
        %v5096 = vunpack.c.h.b16 %v4992
        %v5097 = vunpack.c.l.b16 %v4993
        %v5098 = vunpack.c.h.b16 %v4993
        %v5099 = vunpack.c.l.b16 %v4994
        %v5100 = vunpack.c.h.b16 %v4994
        %v5101 = vunpack.c.l.b16 %v4995
        %v5102 = vunpack.c.h.b16 %v4995
        %v5103 = vunpack.c.l.b16 %v4996
        %v5104 = vunpack.c.h.b16 %v4996
        %v5105 = vunpack.c.l.b16 %v4997
        %v5106 = vunpack.c.h.b16 %v4997
        %v5107 = vunpack.c.l.b16 %v4998
        %v5108 = vunpack.c.h.b16 %v4998
        %v5109 = vunpack.c.l.b16 %v4999
        %v5110 = vunpack.c.h.b16 %v4999
        %v5111 = vunpack.c.l.b16 %v5000
        %v5112 = vunpack.c.h.b16 %v5000
        %v5113 = vunpack.c.l.b16 %v5001
        %v5114 = vunpack.c.h.b16 %v5001
        %v5115 = vunpack.c.l.b16 %v5002
        %v5116 = vunpack.c.h.b16 %v5002
        %v5117 = vunpack.c.l.b16 %v5003
        %v5118 = vunpack.c.h.b16 %v5003
        %v5119 = vunpack.c.l.b16 %v5004
        %v5120 = vunpack.c.h.b16 %v5004
        %v5121 = vunpack.c.l.b16 %v5005
        %v5122 = vunpack.c.h.b16 %v5005
        %v5123 = vunpack.c.l.b16 %v5006
        %v5124 = vunpack.c.h.b16 %v5006
        %v5125 = vunpack.c.l.b16 %v5007
        %v5126 = vunpack.c.h.b16 %v5007
        %v5127 = vpack.c.b16 %v5067, %v5063
        %v5128 = vpack.c.b16 %v5068, %v5064
        %v5129 = vpack.c.b16 %v5069, %v5065
        %v5130 = vpack.c.b16 %v5070, %v5066
        %v5131 = vpack.c.b16 %v5075, %v5071
        %v5132 = vpack.c.b16 %v5076, %v5072
        %v5133 = vpack.c.b16 %v5077, %v5073
        %v5134 = vpack.c.b16 %v5078, %v5074
        %v5135 = vpack.c.b16 %v5083, %v5079
        %v5136 = vpack.c.b16 %v5084, %v5080
        %v5137 = vpack.c.b16 %v5085, %v5081
        %v5138 = vpack.c.b16 %v5086, %v5082
        %v5139 = vpack.c.b16 %v5091, %v5087
        %v5140 = vpack.c.b16 %v5092, %v5088
        %v5141 = vpack.c.b16 %v5093, %v5089
        %v5142 = vpack.c.b16 %v5094, %v5090
        %v5143 = vpack.c.b16 %v5099, %v5095
        %v5144 = vpack.c.b16 %v5100, %v5096
        %v5145 = vpack.c.b16 %v5101, %v5097
        %v5146 = vpack.c.b16 %v5102, %v5098
        %v5147 = vpack.c.b16 %v5107, %v5103
        %v5148 = vpack.c.b16 %v5108, %v5104
        %v5149 = vpack.c.b16 %v5109, %v5105
        %v5150 = vpack.c.b16 %v5110, %v5106
        %v5151 = vpack.c.b16 %v5115, %v5111
        %v5152 = vpack.c.b16 %v5116, %v5112
        %v5153 = vpack.c.b16 %v5117, %v5113
        %v5154 = vpack.c.b16 %v5118, %v5114
        %v5155 = vpack.c.b16 %v5123, %v5119
        %v5156 = vpack.c.b16 %v5124, %v5120
        %v5157 = vpack.c.b16 %v5125, %v5121
        %v5158 = vpack.c.b16 %v5126, %v5122
        %5191 = vmatprep.subr.bf16.mxu0 %v5128
        %5192 = vmatpush1.bf16.msra.mxu0 %v5127
        %5193 = vmatprep.subr.bf16.mxu0 %v5132
        %5194 = vmatpush1.bf16.msra.mxu0 %v5131
        %5195 = vmatprep.subr.bf16.mxu0 %v5136
        %5196 = vmatpush1.bf16.msra.mxu0 %v5135
        %5197 = vmatprep.subr.bf16.mxu0 %v5140
        %5198 = vmatpush1.bf16.msra.mxu0 %v5139
        %5199 = vmatprep.subr.bf16.mxu0 %v5144
        %5200 = vmatpush1.bf16.msra.mxu0 %v5143
        %5201 = vmatprep.subr.bf16.mxu0 %v5148
        %5202 = vmatpush1.bf16.msra.mxu0 %v5147
        %5203 = vmatprep.subr.bf16.mxu0 %v5152
        %5204 = vmatpush1.bf16.msra.mxu0 %v5151
        %5205 = vmatprep.subr.bf16.mxu0 %v5156
        %5206 = vmatpush1.bf16.msra.mxu0 %v5155
        %5207 = vmatprep.subr.bf16.mxu0 0
        %5208 = vmatpush1.bf16.msra.mxu0 0
        %5209 = vmatprep.subr.bf16.mxu0 0
        %5210 = vmatpush1.bf16.msra.mxu0 0
        %5211 = vmatprep.subr.bf16.mxu0 0
        %5212 = vmatpush1.bf16.msra.mxu0 0
        %5213 = vmatprep.subr.bf16.mxu0 0
        %5214 = vmatpush1.bf16.msra.mxu0 0
        %5215 = vmatprep.subr.bf16.mxu0 0
        %5216 = vmatpush1.bf16.msra.mxu0 0
        %5217 = vmatprep.subr.bf16.mxu0 0
        %5218 = vmatpush1.bf16.msra.mxu0 0
        %5219 = vmatprep.subr.bf16.mxu0 0
        %5220 = vmatpush1.bf16.msra.mxu0 0
        %5221 = vmatprep.subr.bf16.mxu0 0
        %5222 = vmatpush1.bf16.msra.mxu0 0
        %5223 = vmatprep.mubr.bf16.mxu0 0
        %5224 = vmatmul.mubr.bf16.gmra.mrb[0].mxu0 %v4972
        %v5225 = vpop.f32.mrb[0].mxu0
        %v5226 = vadd.f32 %v5014, %v5225
        %v5227 = vpop.f32.mrb[0].mxu0
        %v5228 = vadd.f32 %v5018, %v5227
        %v5229 = vpop.f32.mrb[0].mxu0
        %v5230 = vadd.f32 %v5014, %v5229
        %v5231 = vpop.f32.mrb[0].mxu0
        %v5232 = vadd.f32 %v5018, %v5231
        %5233 = vmatprep.mubr.bf16.mxu0 0
        %5234 = vmatmul.mubr.bf16.gmra.mrb[0].mxu0 %v4973
        %v5235 = vpop.f32.mrb[0].mxu0
        %v5236 = vadd.f32 %v5014, %v5235
        %v5237 = vpop.f32.mrb[0].mxu0
        %v5238 = vadd.f32 %v5018, %v5237
        %v5239 = vpop.f32.mrb[0].mxu0
        %v5240 = vadd.f32 %v5014, %v5239
        %v5241 = vpop.f32.mrb[0].mxu0
        %v5242 = vadd.f32 %v5018, %v5241
        %5243 = vmatprep.mubr.bf16.mxu0 0
        %5244 = vmatmul.mubr.bf16.gmra.mrb[0].mxu0 %v4974
        %v5245 = vpop.f32.mrb[0].mxu0
        %v5246 = vadd.f32 %v5014, %v5245
        %v5247 = vpop.f32.mrb[0].mxu0
        %v5248 = vadd.f32 %v5018, %v5247
        %v5249 = vpop.f32.mrb[0].mxu0
        %v5250 = vadd.f32 %v5014, %v5249
        %v5251 = vpop.f32.mrb[0].mxu0
        %v5252 = vadd.f32 %v5018, %v5251
        %5253 = vdwg.mxu0
        %5254 = vmatprep.subr.bf16.mxu0 %v5130
        %5255 = vmatpush1.bf16.msra.mxu0 %v5129
        %5256 = vmatprep.subr.bf16.mxu0 %v5134
        %5257 = vmatpush1.bf16.msra.mxu0 %v5133
        %5258 = vmatprep.subr.bf16.mxu0 %v5138
        %5259 = vmatpush1.bf16.msra.mxu0 %v5137
        %5260 = vmatprep.subr.bf16.mxu0 %v5142
        %5261 = vmatpush1.bf16.msra.mxu0 %v5141
        %5262 = vmatprep.subr.bf16.mxu0 %v5146
        %5263 = vmatpush1.bf16.msra.mxu0 %v5145
        %5264 = vmatprep.subr.bf16.mxu0 %v5150
        %5265 = vmatpush1.bf16.msra.mxu0 %v5149
        %5266 = vmatprep.subr.bf16.mxu0 %v5154
        %5267 = vmatpush1.bf16.msra.mxu0 %v5153
        %5268 = vmatprep.subr.bf16.mxu0 %v5158
        %5269 = vmatpush1.bf16.msra.mxu0 %v5157
        %5270 = vmatprep.subr.bf16.mxu0 0
        %5271 = vmatpush1.bf16.msra.mxu0 0
        %5272 = vmatprep.subr.bf16.mxu0 0
        %5273 = vmatpush1.bf16.msra.mxu0 0
        %5274 = vmatprep.subr.bf16.mxu0 0
        %5275 = vmatpush1.bf16.msra.mxu0 0
        %5276 = vmatprep.subr.bf16.mxu0 0
        %5277 = vmatpush1.bf16.msra.mxu0 0
        %5278 = vmatprep.subr.bf16.mxu0 0
        %5279 = vmatpush1.bf16.msra.mxu0 0
        %5280 = vmatprep.subr.bf16.mxu0 0
        %5281 = vmatpush1.bf16.msra.mxu0 0
        %5282 = vmatprep.subr.bf16.mxu0 0
        %5283 = vmatpush1.bf16.msra.mxu0 0
        %5284 = vmatprep.subr.bf16.mxu0 0
        %5285 = vmatpush1.bf16.msra.mxu0 0
        %5286 = vmatprep.mubr.bf16.mxu0 0
        %5287 = vmatmul.mubr.bf16.gmra.mrb[0].mxu0 %v4972
        %v5288 = vpop.f32.mrb[0].mxu0
        %v5289 = vadd.f32 %v5022, %v5288
        %v5290 = vpop.f32.mrb[0].mxu0
        %v5291 = vadd.f32 %v5026, %v5290
        %v5292 = vpop.f32.mrb[0].mxu0
        %v5293 = vadd.f32 %v5022, %v5292
        %v5294 = vpop.f32.mrb[0].mxu0
        %v5295 = vadd.f32 %v5026, %v5294
        %5296 = vmatprep.mubr.bf16.mxu0 0
        %5297 = vmatmul.mubr.bf16.gmra.mrb[0].mxu0 %v4973
        %v5298 = vpop.f32.mrb[0].mxu0
        %v5299 = vadd.f32 %v5022, %v5298
        %v5300 = vpop.f32.mrb[0].mxu0
        %v5301 = vadd.f32 %v5026, %v5300
        %v5302 = vpop.f32.mrb[0].mxu0
        %v5303 = vadd.f32 %v5022, %v5302
        %v5304 = vpop.f32.mrb[0].mxu0
        %v5305 = vadd.f32 %v5026, %v5304
        %5306 = vmatprep.mubr.bf16.mxu0 0
        %5307 = vmatmul.mubr.bf16.gmra.mrb[0].mxu0 %v4974
        %v5308 = vpop.f32.mrb[0].mxu0
        %v5309 = vadd.f32 %v5022, %v5308
        %v5310 = vpop.f32.mrb[0].mxu0
        %v5311 = vadd.f32 %v5026, %v5310
        %v5312 = vpop.f32.mrb[0].mxu0
        %v5313 = vadd.f32 %v5022, %v5312
        %v5314 = vpop.f32.mrb[0].mxu0
        %v5315 = vadd.f32 %v5026, %v5314
        %5316 = vdwg.mxu0
        %v5317 = vmax.f32 %v5226, 0.0
        %v5318 = vmax.f32 %v5228, 0.0
        %v5319 = vmax.f32 %v5289, 0.0
        %v5320 = vmax.f32 %v5291, 0.0
        %v5321 = vmax.f32 %v5230, 0.0
        %v5322 = vmax.f32 %v5232, 0.0
        %v5323 = vmax.f32 %v5293, 0.0
        %v5324 = vmax.f32 %v5295, 0.0
        %v5325 = vmax.f32 %v5236, 0.0
        %v5326 = vmax.f32 %v5238, 0.0
        %v5327 = vmax.f32 %v5299, 0.0
        %v5328 = vmax.f32 %v5301, 0.0
        %v5329 = vmax.f32 %v5240, 0.0
        %v5330 = vmax.f32 %v5242, 0.0
        %v5331 = vmax.f32 %v5303, 0.0
        %v5332 = vmax.f32 %v5305, 0.0
        %v5333 = vmax.f32 %v5246, 0.0
        %v5334 = vmax.f32 %v5248, 0.0
        %v5335 = vmax.f32 %v5309, 0.0
        %v5336 = vmax.f32 %v5311, 0.0
        %v5337 = vmax.f32 %v5250, 0.0
        %v5338 = vmax.f32 %v5252, 0.0
        %v5339 = vmax.f32 %v5313, 0.0
        %v5340 = vmax.f32 %v5315, 0.0
        %v5341 = vpack.c.bf16 %v5321, %v5317
        %v5342 = vpack.c.bf16 %v5322, %v5318
        %v5343 = vpack.c.bf16 %v5323, %v5319
        %v5344 = vpack.c.bf16 %v5324, %v5320
        %v5345 = vpack.c.bf16 %v5329, %v5325
        %v5346 = vpack.c.bf16 %v5330, %v5326
        %v5347 = vpack.c.bf16 %v5331, %v5327
        %v5348 = vpack.c.bf16 %v5332, %v5328
        %v5349 = vpack.c.bf16 %v5337, %v5333
        %v5350 = vpack.c.bf16 %v5338, %v5334
        %v5351 = vpack.c.bf16 %v5339, %v5335
        %v5352 = vpack.c.bf16 %v5340, %v5336
        %s5353 = scalar_lea.vmem [#allocation27], 256
        %v5354 = vld [vmem:[%s5353] sm:$0xf]
        %v5355 = vld [vmem:[%s5353 + $0x4] sm:$0xf]
        %v5356 = vld [vmem:[%s5353 + $0x8] sm:$0xf]
        %v5357 = vld [vmem:[%s5353 + $0xc] sm:$0xf]
        %v5358 = vld [vmem:[%s5353 + $0x10] sm:$0xf]
        %v5359 = vld [vmem:[%s5353 + $0x14] sm:$0xf]
        %v5360 = vld [vmem:[%s5353 + $0x18] sm:$0xf]
        %v5361 = vld [vmem:[%s5353 + $0x1c] sm:$0xf]
        %v5362 = vld [vmem:[%s5353 + $0x20] sm:$0xf]
        %v5363 = vld [vmem:[%s5353 + $0x24] sm:$0xf]
        %v5364 = vld [vmem:[%s5353 + $0x28] sm:$0xf]
        %v5365 = vld [vmem:[%s5353 + $0x2c] sm:$0xf]
        %v5366 = vld [vmem:[%s5353 + $0x30] sm:$0xf]
        %v5367 = vld [vmem:[%s5353 + $0x34] sm:$0xf]
        %v5368 = vld [vmem:[%s5353 + $0x38] sm:$0xf]
        %v5369 = vld [vmem:[%s5353 + $0x3c] sm:$0xf]
        %v5370 = vld [vmem:[%s5353 + $0x40] sm:$0xf]
        %v5371 = vld [vmem:[%s5353 + $0x44] sm:$0xf]
        %v5372 = vld [vmem:[%s5353 + $0x48] sm:$0xf]
        %v5373 = vld [vmem:[%s5353 + $0x4c] sm:$0xf]
        %v5374 = vld [vmem:[%s5353 + $0x50] sm:$0xf]
        %v5375 = vld [vmem:[%s5353 + $0x54] sm:$0xf]
        %v5376 = vld [vmem:[%s5353 + $0x58] sm:$0xf]
        %v5377 = vld [vmem:[%s5353 + $0x5c] sm:$0xf]
        %v5378 = vld [vmem:[%s5353 + $0x60] sm:$0xf]
        %v5379 = vld [vmem:[%s5353 + $0x64] sm:$0xf]
        %v5380 = vld [vmem:[%s5353 + $0x68] sm:$0xf]
        %v5381 = vld [vmem:[%s5353 + $0x6c] sm:$0xf]
        %v5382 = vld [vmem:[%s5353 + $0x70] sm:$0xf]
        %v5383 = vld [vmem:[%s5353 + $0x74] sm:$0xf]
        %v5384 = vld [vmem:[%s5353 + $0x78] sm:$0xf]
        %v5385 = vld [vmem:[%s5353 + $0x7c] sm:$0xf]
        %v5386 = vld [vmem:[%s5353 + $0x80] sm:$0xf]
        %v5387 = vld [vmem:[%s5353 + $0x84] sm:$0xf]
        %v5388 = vld [vmem:[%s5353 + $0x88] sm:$0xf]
        %v5389 = vld [vmem:[%s5353 + $0x8c] sm:$0xf]
        %v5390 = vld [vmem:[%s5353 + $0x90] sm:$0xf]
        %v5391 = vld [vmem:[%s5353 + $0x94] sm:$0xf]
        %v5392 = vld [vmem:[%s5353 + $0x98] sm:$0xf]
        %v5393 = vld [vmem:[%s5353 + $0x9c] sm:$0xf]
        %v5394 = vld [vmem:[%s5353 + $0xa0] sm:$0xf]
        %v5395 = vld [vmem:[%s5353 + $0xa4] sm:$0xf]
        %v5396 = vld [vmem:[%s5353 + $0xa8] sm:$0xf]
        %v5397 = vld [vmem:[%s5353 + $0xac] sm:$0xf]
        %v5398 = vld [vmem:[%s5353 + $0xb0] sm:$0xf]
        %v5399 = vld [vmem:[%s5353 + $0xb4] sm:$0xf]
        %v5400 = vld [vmem:[%s5353 + $0xb8] sm:$0xf]
        %v5401 = vld [vmem:[%s5353 + $0xbc] sm:$0xf]
        %v5402 = vld [vmem:[%s5353 + $0xc0] sm:$0xf]
        %v5403 = vld [vmem:[%s5353 + $0xc4] sm:$0xf]
        %v5404 = vld [vmem:[%s5353 + $0xc8] sm:$0xf]
        %v5405 = vld [vmem:[%s5353 + $0xcc] sm:$0xf]
        %v5406 = vld [vmem:[%s5353 + $0xd0] sm:$0xf]
        %v5407 = vld [vmem:[%s5353 + $0xd4] sm:$0xf]
        %v5408 = vld [vmem:[%s5353 + $0xd8] sm:$0xf]
        %v5409 = vld [vmem:[%s5353 + $0xdc] sm:$0xf]
        %v5410 = vld [vmem:[%s5353 + $0xe0] sm:$0xf]
        %v5411 = vld [vmem:[%s5353 + $0xe4] sm:$0xf]
        %v5412 = vld [vmem:[%s5353 + $0xe8] sm:$0xf]
        %v5413 = vld [vmem:[%s5353 + $0xec] sm:$0xf]
        %v5414 = vld [vmem:[%s5353 + $0xf0] sm:$0xf]
        %v5415 = vld [vmem:[%s5353 + $0xf4] sm:$0xf]
        %v5416 = vld [vmem:[%s5353 + $0xf8] sm:$0xf]
        %v5417 = vld [vmem:[%s5353 + $0xfc] sm:$0xf]
        %s5418 = scalar_lea.vmem [#allocation28], 1
        %v5419 = vld [vmem:[%s5418] sm:$0x1]
        %v5421 = vlaneseq
        %v5422 = vshrl.u32 %v5421, 7
        %v5423 = vsub.s32 0, %v5422
        %v5424 = vrot.slane %v5419, %v5423
        %v5490 = vunpack.c.l.b16 %v5354
        %v5491 = vunpack.c.l.b16 %v5355
        %v5492 = vunpack.c.l.b16 %v5356
        %v5493 = vunpack.c.l.b16 %v5357
        %v5494 = vunpack.c.l.b16 %v5358
        %v5495 = vunpack.c.l.b16 %v5359
        %v5496 = vunpack.c.l.b16 %v5360
        %v5497 = vunpack.c.l.b16 %v5361
        %v5498 = vunpack.c.l.b16 %v5362
        %v5499 = vunpack.c.l.b16 %v5363
        %v5500 = vunpack.c.l.b16 %v5364
        %v5501 = vunpack.c.l.b16 %v5365
        %v5502 = vunpack.c.l.b16 %v5366
        %v5503 = vunpack.c.l.b16 %v5367
        %v5504 = vunpack.c.l.b16 %v5368
        %v5505 = vunpack.c.l.b16 %v5369
        %v5506 = vunpack.c.l.b16 %v5370
        %v5507 = vunpack.c.l.b16 %v5371
        %v5508 = vunpack.c.l.b16 %v5372
        %v5509 = vunpack.c.l.b16 %v5373
        %v5510 = vunpack.c.l.b16 %v5374
        %v5511 = vunpack.c.l.b16 %v5375
        %v5512 = vunpack.c.l.b16 %v5376
        %v5513 = vunpack.c.l.b16 %v5377
        %v5514 = vunpack.c.l.b16 %v5378
        %v5515 = vunpack.c.l.b16 %v5379
        %v5516 = vunpack.c.l.b16 %v5380
        %v5517 = vunpack.c.l.b16 %v5381
        %v5518 = vunpack.c.l.b16 %v5382
        %v5519 = vunpack.c.l.b16 %v5383
        %v5520 = vunpack.c.l.b16 %v5384
        %v5521 = vunpack.c.l.b16 %v5385
        %v5522 = vunpack.c.l.b16 %v5386
        %v5523 = vunpack.c.l.b16 %v5387
        %v5524 = vunpack.c.l.b16 %v5388
        %v5525 = vunpack.c.l.b16 %v5389
        %v5526 = vunpack.c.l.b16 %v5390
        %v5527 = vunpack.c.l.b16 %v5391
        %v5528 = vunpack.c.l.b16 %v5392
        %v5529 = vunpack.c.l.b16 %v5393
        %v5530 = vunpack.c.l.b16 %v5394
        %v5531 = vunpack.c.l.b16 %v5395
        %v5532 = vunpack.c.l.b16 %v5396
        %v5533 = vunpack.c.l.b16 %v5397
        %v5534 = vunpack.c.l.b16 %v5398
        %v5535 = vunpack.c.l.b16 %v5399
        %v5536 = vunpack.c.l.b16 %v5400
        %v5537 = vunpack.c.l.b16 %v5401
        %v5538 = vunpack.c.l.b16 %v5402
        %v5539 = vunpack.c.l.b16 %v5403
        %v5540 = vunpack.c.l.b16 %v5404
        %v5541 = vunpack.c.l.b16 %v5405
        %v5542 = vunpack.c.l.b16 %v5406
        %v5543 = vunpack.c.l.b16 %v5407
        %v5544 = vunpack.c.l.b16 %v5408
        %v5545 = vunpack.c.l.b16 %v5409
        %v5546 = vunpack.c.l.b16 %v5410
        %v5547 = vunpack.c.l.b16 %v5411
        %v5548 = vunpack.c.l.b16 %v5412
        %v5549 = vunpack.c.l.b16 %v5413
        %v5550 = vunpack.c.l.b16 %v5414
        %v5551 = vunpack.c.l.b16 %v5415
        %v5552 = vunpack.c.l.b16 %v5416
        %v5553 = vunpack.c.l.b16 %v5417
        %v5554 = vpack.c.b16 %v5491, %v5490
        %v5555 = vpack.c.b16 %v5493, %v5492
        %v5556 = vpack.c.b16 %v5495, %v5494
        %v5557 = vpack.c.b16 %v5497, %v5496
        %v5558 = vpack.c.b16 %v5499, %v5498
        %v5559 = vpack.c.b16 %v5501, %v5500
        %v5560 = vpack.c.b16 %v5503, %v5502
        %v5561 = vpack.c.b16 %v5505, %v5504
        %v5562 = vpack.c.b16 %v5507, %v5506
        %v5563 = vpack.c.b16 %v5509, %v5508
        %v5564 = vpack.c.b16 %v5511, %v5510
        %v5565 = vpack.c.b16 %v5513, %v5512
        %v5566 = vpack.c.b16 %v5515, %v5514
        %v5567 = vpack.c.b16 %v5517, %v5516
        %v5568 = vpack.c.b16 %v5519, %v5518
        %v5569 = vpack.c.b16 %v5521, %v5520
        %v5570 = vpack.c.b16 %v5523, %v5522
        %v5571 = vpack.c.b16 %v5525, %v5524
        %v5572 = vpack.c.b16 %v5527, %v5526
        %v5573 = vpack.c.b16 %v5529, %v5528
        %v5574 = vpack.c.b16 %v5531, %v5530
        %v5575 = vpack.c.b16 %v5533, %v5532
        %v5576 = vpack.c.b16 %v5535, %v5534
        %v5577 = vpack.c.b16 %v5537, %v5536
        %v5578 = vpack.c.b16 %v5539, %v5538
        %v5579 = vpack.c.b16 %v5541, %v5540
        %v5580 = vpack.c.b16 %v5543, %v5542
        %v5581 = vpack.c.b16 %v5545, %v5544
        %v5582 = vpack.c.b16 %v5547, %v5546
        %v5583 = vpack.c.b16 %v5549, %v5548
        %v5584 = vpack.c.b16 %v5551, %v5550
        %v5585 = vpack.c.b16 %v5553, %v5552
        %5618 = vmatprep.subr.bf16.mxu0 0
        %5619 = vmatpush1.bf16.msra.mxu0 %v5554
        %5620 = vmatprep.subr.bf16.mxu0 0
        %5621 = vmatpush1.bf16.msra.mxu0 %v5555
        %5622 = vmatprep.subr.bf16.mxu0 0
        %5623 = vmatpush1.bf16.msra.mxu0 %v5556
        %5624 = vmatprep.subr.bf16.mxu0 0
        %5625 = vmatpush1.bf16.msra.mxu0 %v5557
        %5626 = vmatprep.subr.bf16.mxu0 0
        %5627 = vmatpush1.bf16.msra.mxu0 %v5558
        %5628 = vmatprep.subr.bf16.mxu0 0
        %5629 = vmatpush1.bf16.msra.mxu0 %v5559
        %5630 = vmatprep.subr.bf16.mxu0 0
        %5631 = vmatpush1.bf16.msra.mxu0 %v5560
        %5632 = vmatprep.subr.bf16.mxu0 0
        %5633 = vmatpush1.bf16.msra.mxu0 %v5561
        %5634 = vmatprep.subr.bf16.mxu0 0
        %5635 = vmatpush1.bf16.msra.mxu0 %v5562
        %5636 = vmatprep.subr.bf16.mxu0 0
        %5637 = vmatpush1.bf16.msra.mxu0 %v5563
        %5638 = vmatprep.subr.bf16.mxu0 0
        %5639 = vmatpush1.bf16.msra.mxu0 %v5564
        %5640 = vmatprep.subr.bf16.mxu0 0
        %5641 = vmatpush1.bf16.msra.mxu0 %v5565
        %5642 = vmatprep.subr.bf16.mxu0 0
        %5643 = vmatpush1.bf16.msra.mxu0 %v5566
        %5644 = vmatprep.subr.bf16.mxu0 0
        %5645 = vmatpush1.bf16.msra.mxu0 %v5567
        %5646 = vmatprep.subr.bf16.mxu0 0
        %5647 = vmatpush1.bf16.msra.mxu0 %v5568
        %5648 = vmatprep.subr.bf16.mxu0 0
        %5649 = vmatpush1.bf16.msra.mxu0 %v5569
        %5650 = vmatprep.mubr.bf16.mxu0 %v5342
        %5651 = vmatmul.mubr.bf16.gmra.mrb[0].mxu0 %v5341
        %v5652 = vpop.f32.mrb[0].mxu0
        %v5653 = vadd.f32 %v5424, %v5652
        %v5654 = vpop.f32.mrb[0].mxu0
        %v5655 = vpop.f32.mrb[0].mxu0
        %v5656 = vadd.f32 %v5424, %v5655
        %v5657 = vpop.f32.mrb[0].mxu0
        %5658 = vmatprep.mubr.bf16.mxu0 %v5346
        %5659 = vmatmul.mubr.bf16.gmra.mrb[0].mxu0 %v5345
        %v5660 = vpop.f32.mrb[0].mxu0
        %v5661 = vadd.f32 %v5424, %v5660
        %v5662 = vpop.f32.mrb[0].mxu0
        %v5663 = vpop.f32.mrb[0].mxu0
        %v5664 = vadd.f32 %v5424, %v5663
        %v5665 = vpop.f32.mrb[0].mxu0
        %5666 = vmatprep.mubr.bf16.mxu0 %v5350
        %5667 = vmatmul.mubr.bf16.gmra.mrb[0].mxu0 %v5349
        %v5668 = vpop.f32.mrb[0].mxu0
        %v5669 = vadd.f32 %v5424, %v5668
        %v5670 = vpop.f32.mrb[0].mxu0
        %v5671 = vpop.f32.mrb[0].mxu0
        %v5672 = vadd.f32 %v5424, %v5671
        %v5673 = vpop.f32.mrb[0].mxu0
        %5674 = vdwg.mxu0
        %5675 = vmatprep.subr.bf16.mxu0 0
        %5676 = vmatpush1.bf16.msra.mxu0 %v5570
        %5677 = vmatprep.subr.bf16.mxu0 0
        %5678 = vmatpush1.bf16.msra.mxu0 %v5571
        %5679 = vmatprep.subr.bf16.mxu0 0
        %5680 = vmatpush1.bf16.msra.mxu0 %v5572
        %5681 = vmatprep.subr.bf16.mxu0 0
        %5682 = vmatpush1.bf16.msra.mxu0 %v5573
        %5683 = vmatprep.subr.bf16.mxu0 0
        %5684 = vmatpush1.bf16.msra.mxu0 %v5574
        %5685 = vmatprep.subr.bf16.mxu0 0
        %5686 = vmatpush1.bf16.msra.mxu0 %v5575
        %5687 = vmatprep.subr.bf16.mxu0 0
        %5688 = vmatpush1.bf16.msra.mxu0 %v5576
        %5689 = vmatprep.subr.bf16.mxu0 0
        %5690 = vmatpush1.bf16.msra.mxu0 %v5577
        %5691 = vmatprep.subr.bf16.mxu0 0
        %5692 = vmatpush1.bf16.msra.mxu0 %v5578
        %5693 = vmatprep.subr.bf16.mxu0 0
        %5694 = vmatpush1.bf16.msra.mxu0 %v5579
        %5695 = vmatprep.subr.bf16.mxu0 0
        %5696 = vmatpush1.bf16.msra.mxu0 %v5580
        %5697 = vmatprep.subr.bf16.mxu0 0
        %5698 = vmatpush1.bf16.msra.mxu0 %v5581
        %5699 = vmatprep.subr.bf16.mxu0 0
        %5700 = vmatpush1.bf16.msra.mxu0 %v5582
        %5701 = vmatprep.subr.bf16.mxu0 0
        %5702 = vmatpush1.bf16.msra.mxu0 %v5583
        %5703 = vmatprep.subr.bf16.mxu0 0
        %5704 = vmatpush1.bf16.msra.mxu0 %v5584
        %5705 = vmatprep.subr.bf16.mxu0 0
        %5706 = vmatpush1.bf16.msra.mxu0 %v5585
        %5707 = vmatprep.mubr.bf16.mxu0 %v5344
        %5708 = vmatmul.mubr.bf16.gmra.mrb[0].mxu0 %v5343
        %v5709 = vpop.f32.mrb[0].mxu0
        %v5710 = vadd.f32 %v5653, %v5709
        %v5711 = vpop.f32.mrb[0].mxu0
        %v5712 = vpop.f32.mrb[0].mxu0
        %v5713 = vadd.f32 %v5656, %v5712
        %v5714 = vpop.f32.mrb[0].mxu0
        %5715 = vmatprep.mubr.bf16.mxu0 %v5348
        %5716 = vmatmul.mubr.bf16.gmra.mrb[0].mxu0 %v5347
        %v5717 = vpop.f32.mrb[0].mxu0
        %v5718 = vadd.f32 %v5661, %v5717
        %v5719 = vpop.f32.mrb[0].mxu0
        %v5720 = vpop.f32.mrb[0].mxu0
        %v5721 = vadd.f32 %v5664, %v5720
        %v5722 = vpop.f32.mrb[0].mxu0
        %5723 = vmatprep.mubr.bf16.mxu0 %v5352
        %5724 = vmatmul.mubr.bf16.gmra.mrb[0].mxu0 %v5351
        %v5725 = vpop.f32.mrb[0].mxu0
        %v5726 = vadd.f32 %v5669, %v5725
        %v5727 = vpop.f32.mrb[0].mxu0
        %v5728 = vpop.f32.mrb[0].mxu0
        %v5729 = vadd.f32 %v5672, %v5728
        %v5730 = vpop.f32.mrb[0].mxu0
        %5731 = vdwg.mxu0
        %v5732 = vadd.f32 %v4872, %v5710
        %v5733 = vadd.f32 %v4873, %v5713
        %v5734 = vadd.f32 %v4874, %v5718
        %v5735 = vadd.f32 %v4875, %v5721
        %v5736 = vadd.f32 %v4876, %v5726
        %v5737 = vadd.f32 %v4877, %v5729
        %v5738 = vld [vmem:[#allocation30] sm:$0x1]
        %v5739 = vld [vmem:[#allocation31] sm:$0x1]
        %5740 = vadd.xlane.f32.xlu0 %v5732
        %v5741 = vpop.xlane.xlu0 %5740
        %5742 = vadd.xlane.f32.xlu0 %v5733
        %v5743 = vpop.xlane.xlu0 %5742
        %5744 = vadd.xlane.f32.xlu0 %v5734
        %v5745 = vpop.xlane.xlu0 %5744
        %5746 = vadd.xlane.f32.xlu0 %v5735
        %v5747 = vpop.xlane.xlu0 %5746
        %5748 = vadd.xlane.f32.xlu0 %v5736
        %v5749 = vpop.xlane.xlu0 %5748
        %5750 = vadd.xlane.f32.xlu0 %v5737
        %v5751 = vpop.xlane.xlu0 %5750
        %v5752 = vmul.f32 %v5741, %v923
        %v5753 = vmul.f32 %v5743, %v923
        %v5754 = vmul.f32 %v5745, %v923
        %v5755 = vmul.f32 %v5747, %v923
        %v5756 = vmul.f32 %v5749, %v923
        %v5757 = vmul.f32 %v5751, %v923
        %v5758 = vsub.f32 %v5732, %v5752
        %v5759 = vsub.f32 %v5733, %v5753
        %v5760 = vsub.f32 %v5734, %v5754
        %v5761 = vsub.f32 %v5735, %v5755
        %v5762 = vsub.f32 %v5736, %v5756
        %v5763 = vsub.f32 %v5737, %v5757
        %v5764 = vmul.f32 %v5758, %v5758
        %v5765 = vmul.f32 %v5759, %v5759
        %v5766 = vmul.f32 %v5760, %v5760
        %v5767 = vmul.f32 %v5761, %v5761
        %v5768 = vmul.f32 %v5762, %v5762
        %v5769 = vmul.f32 %v5763, %v5763
        %5770 = vadd.xlane.f32.xlu0 %v5764
        %v5771 = vpop.xlane.xlu0 %5770
        %5772 = vadd.xlane.f32.xlu0 %v5765
        %v5773 = vpop.xlane.xlu0 %5772
        %5774 = vadd.xlane.f32.xlu0 %v5766
        %v5775 = vpop.xlane.xlu0 %5774
        %5776 = vadd.xlane.f32.xlu0 %v5767
        %v5777 = vpop.xlane.xlu0 %5776
        %5778 = vadd.xlane.f32.xlu0 %v5768
        %v5779 = vpop.xlane.xlu0 %5778
        %5780 = vadd.xlane.f32.xlu0 %v5769
        %v5781 = vpop.xlane.xlu0 %5780
        %v5782 = vmul.f32 %v5771, %v923
        %v5783 = vmul.f32 %v5773, %v923
        %v5784 = vmul.f32 %v5775, %v923
        %v5785 = vmul.f32 %v5777, %v923
        %v5786 = vmul.f32 %v5779, %v923
        %v5787 = vmul.f32 %v5781, %v923
        %v5788 = vadd.f32 %v5782, 1e-05
        %v5789 = vadd.f32 %v5783, 1e-05
        %v5790 = vadd.f32 %v5784, 1e-05
        %v5791 = vadd.f32 %v5785, 1e-05
        %v5792 = vadd.f32 %v5786, 1e-05
        %v5793 = vadd.f32 %v5787, 1e-05
        %v5794 = vrsqrt.pop %v5788
        %v5795 = vrsqrt.pop %v5789
        %v5796 = vrsqrt.pop %v5790
        %v5797 = vrsqrt.pop %v5791
        %v5798 = vrsqrt.pop %v5792
        %v5799 = vrsqrt.pop %v5793
        %v5800 = vmul.f32 %v5758, %v5794
        %v5801 = vmul.f32 %v5759, %v5795
        %v5802 = vmul.f32 %v5760, %v5796
        %v5803 = vmul.f32 %v5761, %v5797
        %v5804 = vmul.f32 %v5762, %v5798
        %v5805 = vmul.f32 %v5763, %v5799
        %v5807 = vlaneseq
        %v5808 = vshrl.u32 %v5807, 7
        %v5809 = vsub.s32 0, %v5808
        %v5810 = vrot.slane %v5738, %v5809
        %v5812 = vmul.f32 %v5800, %v5810
        %v5813 = vmul.f32 %v5801, %v5810
        %v5814 = vmul.f32 %v5802, %v5810
        %v5815 = vmul.f32 %v5803, %v5810
        %v5816 = vmul.f32 %v5804, %v5810
        %v5817 = vmul.f32 %v5805, %v5810
        %v5819 = vlaneseq
        %v5820 = vshrl.u32 %v5819, 7
        %v5821 = vsub.s32 0, %v5820
        %v5822 = vrot.slane %v5739, %v5821
        %v5824 = vadd.f32 %v5812, %v5822
        %v5825 = vadd.f32 %v5813, %v5822
        %v5826 = vadd.f32 %v5814, %v5822
        %v5827 = vadd.f32 %v5815, %v5822
        %v5828 = vadd.f32 %v5816, %v5822
        %v5829 = vadd.f32 %v5817, %v5822
        %5830 = vst [vmem:[%s871] sm:$0xff] %v5824
        %5831 = vst [vmem:[%s871 + $0x8] sm:$0xff] %v5825
        %5832 = vst [vmem:[%s871 + $0x10] sm:$0xff] %v5826
        %5833 = vst [vmem:[%s871 + $0x18] sm:$0xff] %v5827
        %5834 = vst [vmem:[%s871 + $0x20] sm:$0xff] %v5828
        %5835 = vst [vmem:[%s871 + $0x28] sm:$0xff] %v5829
        %s5836 = sand.u32 %s458, 1
        %s5837 = scalar_lea.sflag [#allocation4], %s5836
        %s5838 = sand.u32 %s458, 1
        %s5839 = smul.addr %s5838, 48
        %s5840 = scalar_lea.vmem [#allocation33], %s5839
        // Predicated region
        $region173: #{gpt_forward.1} parent=95 // pred_check
          %p5841 = pneg %p468
        $region174: #{gpt_forward.1} parent=95 // pred_check_branch
          %5843 = sbr.rel (%p5841) target = $region176
        $region175: #{gpt_forward.1} parent=95 // pred_region
          %s5845 = ssub.s32 768, 768
          %5846 = vsyncadd %s5837, %s5845
          %s5847 = smul.addr %s46, 6
          %s5848 = smul.addr %s5847, 128
          %s5849 = scalar_lea.hbm %s19, %s5848
          %s5850 = sshll.u32 %s5840, 4
          %s5851 = int_to_ptr.vmem [resolvable:$true] %s5850
          %5856 = dma.vmem_to_hbm [thread:$0]  %s5851, 768, %s5849, %s5837, 128, 128, 8
        $region176: #{gpt_forward.1} parent=95 // pred_fallthru
          _
      $region96: #{gpt_forward.1} parent=5 // pred_fallthru
        _
      %p5857 = scmp.le.s32.totalorder 2, %s41
      // Predicated region
      $region177: #{gpt_forward.1} parent=5 // pred_check
        %p5858 = pneg %p5857
      $region178: #{gpt_forward.1} parent=5 // pred_check_branch
        %5860 = sbr.rel (%p5858) target = $region180
      $region179: #{gpt_forward.1} parent=5 // pred_region
        %s5861 = ssub.s32 %s41, 2
        // Predicated region
        $region181: #{gpt_forward.1} parent=179 // pred_check
          %p5862 = pneg %p474
        $region182: #{gpt_forward.1} parent=179 // pred_check_branch
          %5864 = sbr.rel (%p5862) target = $region184
        $region183: #{gpt_forward.1} parent=179 // pred_region
          %s5865 = sand.u32 %s459, 1
          %s5866 = scalar_lea.sflag [#allocation4], %s5865
          %s5867 = sand.u32 %s459, 1
          %s5868 = smul.addr %s5867, 48
          %s5869 = scalar_lea.vmem [#allocation33], %s5868
          %5870 = dma.done %s5866, 768
        $region184: #{gpt_forward.1} parent=179 // pred_fallthru
          _
      $region180: #{gpt_forward.1} parent=5 // pred_fallthru
        _
    $region6: #{gpt_forward.1} parent=1 // loop_footer
      %s45 = sadd.s32 1, %s41
    $region7: #{gpt_forward.1} parent=1 // loop_footer_branch
      %40 = sbr.rel target = $region3
    $region8: #{gpt_forward.1} parent=1 // loop_exit
      _
    %5871 = vsyncpa [#allocation3], 1
    %s5872 = scalar_lea.sflag [#allocation3], 1
    %5873 = vsyncpa %s5872, 1
    %5874 = vsyncpa [#allocation7], 1
    %5875 = vsyncpa [#allocation11], 1
    %5876 = vsyncpa [#allocation14], 1
    %5877 = vsyncpa [#allocation17], 1
    %5878 = vsyncpa [#allocation20], 1
    %5879 = vsyncpa [#allocation23], 1
    %5880 = vsyncpa [#allocation26], 1
    %5881 = vsyncpa [#allocation29], 1
    %5882 = vsyncpa [#allocation32], 1
    %5883 = vsyncpa [#allocation4], 1
    %s5884 = scalar_lea.sflag [#allocation4], 1
    %5885 = vsyncpa %s5884, 1
    %5886 = vsyncpa [#allocation5], 1
    %s5887 = scalar_lea.sflag [#allocation5], 1
    %5888 = vsyncpa %s5887, 1

</llo_original>
